<compile_context>
chip_gen: v5e
topology: v5e:2x2
jax: 0.10.0
libtpu: 0.0.40
codegen_flags: <defaults>
</compile_context>

<pallas_src>
import jax
import jax.numpy as jnp
from jax.experimental import pallas as pl
from jax.experimental.pallas import tpu as pltpu

HIDDEN = 256
COLOR_HIDDEN = 128
OUT_WIDTH = 8        # f32 output slab: col 0 = sigma, cols 1..3 = color, rest unused
NEG_BIAS = -1e9      # sigmoid(NEG_BIAS) == 0 exactly -> masks unused color lanes for free


def _round_up(v, m):
    return ((v + m - 1) // m) * m


def _mm(a, b):
    # bf16 x bf16 -> f32 accumulation on the MXU
    return jnp.dot(a, b, preferred_element_type=jnp.float32)


def _act(v):
    # ReLU in f32, then cast back to bf16 so the next matmul runs at bf16 MXU rate.
    return jnp.maximum(v, 0.0).astype(jnp.bfloat16)


def nerf_kernel(
    # activations (tiled over rows; original f32 feature widths, cast in-kernel)
    x_ref, d_ref,
    # dnn1: 5 Linear layers
    w1_0, b1_0, w1_1, b1_1, w1_2, b1_2, w1_3, b1_3, w1_4, b1_4,
    # dnn2: first Linear split into (F-part, x-part); last Linear split into
    # (feature columns, sigma column zero-padded to OUT_WIDTH)
    w2_0f, w2_0x, b2_0, w2_1, b2_1, w2_2, b2_2, w2_3, b2_3,
    w2_4f, b2_4f, w2_4s, b2_4s,
    # color head: first Linear split into (F-part, d-part); last Linear padded
    # so its real outputs land in columns 1..3 of the OUT_WIDTH slab, with
    # NEG_BIAS in the unused bias lanes (sigmoid -> exact 0).
    wc_0f, wc_0d, bc_0, wc_1, bc_1,
    # output: (rows, OUT_WIDTH) f32; col 0 = sigma, cols 1..3 = color
    out_ref,
):
    # bf16 cast happens here so the wrapper never materializes padded/cast
    # copies of x / d in HBM.
    x = x_ref[...].astype(jnp.bfloat16)     # (rows, dx)
    d = d_ref[...].astype(jnp.bfloat16)     # (rows, dd)

    # ---- dnn1 : 5 x (Linear + ReLU) --------------------------------------
    f = _act(_mm(x, w1_0[...]) + b1_0[...])
    f = _act(_mm(f, w1_1[...]) + b1_1[...])
    f = _act(_mm(f, w1_2[...]) + b1_2[...])
    f = _act(_mm(f, w1_3[...]) + b1_3[...])
    f = _act(_mm(f, w1_4[...]) + b1_4[...])

    # ---- dnn2 : cat((F, x)) then 5 x (Linear + ReLU) ---------------------
    g = _act(_mm(f, w2_0f[...]) + _mm(x, w2_0x[...]) + b2_0[...])
    g = _act(_mm(g, w2_1[...]) + b2_1[...])
    g = _act(_mm(g, w2_2[...]) + b2_2[...])
    g = _act(_mm(g, w2_3[...]) + b2_3[...])

    # last dnn2 layer: Linear(256, 257) + ReLU, split into sigma / features.
    # w2_4s / b2_4s are zero-padded to OUT_WIDTH columns, so sigma_slab holds
    # sigma in column 0 and exact zeros elsewhere.
    sigma_slab = jnp.maximum(_mm(g, w2_4s[...]) + b2_4s[...], 0.0)   # (rows, OUT_WIDTH) f32
    ff = _act(_mm(g, w2_4f[...]) + b2_4f[...])                        # (rows, 256) bf16

    # ---- color head : cat((F, d)) -> Linear+ReLU -> Linear+Sigmoid -------
    h = _act(_mm(ff, wc_0f[...]) + _mm(d, wc_0d[...]) + bc_0[...])
    # bc_1 carries NEG_BIAS in the unused lanes -> sigmoid is exactly 0 there,
    # so the sigma/color merge is a plain add (no iota/compare/select).
    col_slab = jax.nn.sigmoid(_mm(h, wc_1[...]) + bc_1[...])          # (rows, OUT_WIDTH) f32

    out_ref[...] = (sigma_slab + col_slab).astype(out_ref.dtype)


def init_params(key, Lp, Ld, homogeneous_projection=False):
    """Deterministic synthetic weights; Linear weights stored as (in, out)."""
    pos_dim = 3 + (1 if homogeneous_projection else 0)
    dx = 2 * pos_dim * Lp
    dd = 2 * 3 * Ld

    def linear(k, fan_in, fan_out):
        kw, kb = jax.random.split(k)
        scale = 1.0 / jnp.sqrt(fan_in)
        w = jax.random.uniform(kw, (fan_in, fan_out), jnp.float32, -scale, scale)
        b = jax.random.uniform(kb, (1, fan_out), jnp.float32, -scale, scale)
        return w, b

    keys = jax.random.split(key, 12)
    p = {}
    # dnn1
    p["w1_0"], p["b1_0"] = linear(keys[0], dx, HIDDEN)
    p["w1_1"], p["b1_1"] = linear(keys[1], HIDDEN, HIDDEN)
    p["w1_2"], p["b1_2"] = linear(keys[2], HIDDEN, HIDDEN)
    p["w1_3"], p["b1_3"] = linear(keys[3], HIDDEN, HIDDEN)
    p["w1_4"], p["b1_4"] = linear(keys[4], HIDDEN, HIDDEN)
    # dnn2 (first layer input is cat(F, x) -> split weight into F/x parts)
    w2_0, p["b2_0"] = linear(keys[5], HIDDEN + dx, HIDDEN)
    p["w2_0f"], p["w2_0x"] = w2_0[:HIDDEN], w2_0[HIDDEN:]
    p["w2_1"], p["b2_1"] = linear(keys[6], HIDDEN, HIDDEN)
    p["w2_2"], p["b2_2"] = linear(keys[7], HIDDEN, HIDDEN)
    p["w2_3"], p["b2_3"] = linear(keys[8], HIDDEN, HIDDEN)
    # dnn2 last layer: Linear(256, 257). torch.split([1, 256]) => col 0 is sigma.
    w2_4, b2_4 = linear(keys[9], HIDDEN, HIDDEN + 1)
    p["w2_4s"], p["b2_4s"] = w2_4[:, 0:1], b2_4[:, 0:1]
    p["w2_4f"], p["b2_4f"] = w2_4[:, 1:], b2_4[:, 1:]
    # color head (first layer input is cat(F, d))
    wc_0, p["bc_0"] = linear(keys[10], HIDDEN + dd, COLOR_HIDDEN)
    p["wc_0f"], p["wc_0d"] = wc_0[:HIDDEN], wc_0[HIDDEN:]
    p["wc_1"], p["bc_1"] = linear(keys[11], COLOR_HIDDEN, 3)
    return p


_PARAM_ORDER = [
    "w1_0", "b1_0", "w1_1", "b1_1", "w1_2", "b1_2", "w1_3", "b1_3", "w1_4", "b1_4",
    "w2_0f", "w2_0x", "b2_0", "w2_1", "b2_1", "w2_2", "b2_2", "w2_3", "b2_3",
    "w2_4f", "b2_4f", "w2_4s", "b2_4s",
    "wc_0f", "wc_0d", "bc_0", "wc_1", "bc_1",
]


def _kernel_params(params):
    """Pad only the tiny output heads (to OUT_WIDTH) and cast weights to bf16."""
    p = dict(params)
    # sigma head -> output column 0 of the OUT_WIDTH slab (exact zeros elsewhere)
    p["w2_4s"] = jnp.pad(p["w2_4s"], ((0, 0), (0, OUT_WIDTH - 1)))
    p["b2_4s"] = jnp.pad(p["b2_4s"], ((0, 0), (0, OUT_WIDTH - 1)))
    # color head -> output columns 1..3; unused bias lanes get NEG_BIAS so the
    # sigmoid underflows to exactly 0 there (lane 0 must NOT be zero: 0.5 leak).
    p["wc_1"] = jnp.pad(p["wc_1"], ((0, 0), (1, OUT_WIDTH - 4)))
    p["bc_1"] = jnp.pad(p["bc_1"], ((0, 0), (1, OUT_WIDTH - 4)),
                        constant_values=NEG_BIAS)

    out = []
    for k in _PARAM_ORDER:
        v = p[k]
        if k.startswith("w"):
            v = v.astype(jnp.bfloat16)   # MXU bf16 inputs
        else:
            v = v.astype(jnp.float32)    # f32 bias add on f32 accumulators
        out.append(v)
    return out


def _is_v5e():
    try:
        kind = jax.devices()[0].device_kind.lower()
    except Exception:
        return False
    return ("v5 lite" in kind) or ("v5e" in kind) or ("v5lite" in kind)


def _pick_row_tile(bn):
    """Row tile: large enough to amortize the ~0.35 us/grid-step overhead,
    >= 2 (ideally >= 8) grid steps so v7x megacore stays busy, capped at 512
    on v5e (per-step overhead already <10% there; bigger tiles just add VMEM
    pressure)."""
    cap = 512 if _is_v5e() else 1024
    if bn < 512:
        return max(8, _round_up(bn, 8))
    return min(cap, max(256, _round_up(pl.cdiv(bn, 8), 256)))


@jax.jit
def nerf_forward(x, d, params):
    """x: (B, N, 2*pos_dim*Lp), d: (B, N, 2*3*Ld) -> sigma (B,N,1), color (B,N,3)."""
    B, N, dx = x.shape
    dd = d.shape[-1]
    bn = B * N

    # No pad / cast copies in HBM: stream the original f32 rows, cast in-kernel.
    x2 = x.reshape(bn, dx)
    d2 = d.reshape(bn, dd)

    row_tile = _pick_row_tile(bn)
    # Ragged last block is safe: rows are independent; OOB reads are unused,
    # OOB writes are dropped.
    grid = (pl.cdiv(bn, row_tile),)

    weight_args = _kernel_params(params)

    def row_spec(c):
        # last dim == full array dim -> (8,128) rule satisfied without lane padding
        return pl.BlockSpec((row_tile, c), lambda i: (i, 0))

    # Grid-invariant weights/biases: one untiled copy resident in VMEM.
    vmem_spec = pl.BlockSpec(memory_space=pltpu.MemorySpace.VMEM)
    in_specs = [row_spec(dx), row_spec(dd)] + [vmem_spec] * len(weight_args)

    out = pl.pallas_call(
        nerf_kernel,
        out_shape=jax.ShapeDtypeStruct((bn, OUT_WIDTH), jnp.float32),
        grid_spec=pltpu.PrefetchScalarGridSpec(
            num_scalar_prefetch=0,
            grid=grid,
            in_specs=in_specs,
            out_specs=row_spec(OUT_WIDTH),
        ),
        compiler_params=pltpu.CompilerParams(
            dimension_semantics=("parallel",),
            # Footprint-based: ~1.3 MiB bf16 weights + <1 MiB double-buffered
            # row tiles + O(10 MiB) f32 intermediates at the largest row tile.
            vmem_limit_bytes=32 * 1024 * 1024,
        ),
    )(x2, d2, *weight_args)

    packed = out[:, :4]                       # single contiguous epilogue slice
    sigma = packed[:, 0:1].reshape(B, N, 1)
    color = packed[:, 1:4].reshape(B, N, 3)
    return sigma, color


def nerf_reference(x, d, p):
    """Pure-JAX reference mirroring the kernel numerics (bf16 MXU inputs, f32 acc)."""
    B, N, _ = x.shape
    x2 = x.reshape(B * N, -1).astype(jnp.float32)
    d2 = d.reshape(B * N, -1).astype(jnp.float32)

    def dot(a, b):
        return jnp.dot(a.astype(jnp.bfloat16), b.astype(jnp.bfloat16),
                       preferred_element_type=jnp.float32)

    def act(v):
        return jnp.maximum(v, 0.0).astype(jnp.bfloat16).astype(jnp.float32)

    f = x2
    for i in range(5):
        f = act(dot(f, p[f"w1_{i}"]) + p[f"b1_{i}"])
    g = act(dot(f, p["w2_0f"]) + dot(x2, p["w2_0x"]) + p["b2_0"])
    for i in range(1, 4):
        g = act(dot(g, p[f"w2_{i}"]) + p[f"b2_{i}"])
    sigma = jnp.maximum(dot(g, p["w2_4s"]) + p["b2_4s"], 0.0)
    ff = act(dot(g, p["w2_4f"]) + p["b2_4f"])
    h = act(dot(ff, p["wc_0f"]) + dot(d2, p["wc_0d"]) + p["bc_0"])
    col = jax.nn.sigmoid(dot(h, p["wc_1"]) + p["bc_1"])
    return sigma.reshape(B, N, 1), col.reshape(B, N, 3)


if __name__ == "__main__":
    # Small deterministic example: Lp=4, Ld=2, pos_dim=3 -> x feat 24, d feat 12
    Lp, Ld = 4, 2
    B, N = 2, 8
    dx = 2 * 3 * Lp
    dd = 2 * 3 * Ld

    key = jax.random.PRNGKey(0)
    kp, kx, kd = jax.random.split(key, 3)
    params = init_params(kp, Lp, Ld)
    x = jax.random.normal(kx, (B, N, dx), jnp.float32)
    d = jax.random.normal(kd, (B, N, dd), jnp.float32)

    sigma, color = nerf_forward(x, d, params)
    jax.block_until_ready((sigma, color))

    # correctness check against a pure-JAX reference with matching bf16 numerics
    sigma_ref, color_ref = nerf_reference(x, d, params)
    assert sigma.shape == (B, N, 1) and color.shape == (B, N, 3)
    assert jnp.allclose(sigma, sigma_ref, atol=2e-2, rtol=2e-2), float(
        jnp.max(jnp.abs(sigma - sigma_ref)))
    assert jnp.allclose(color, color_ref, atol=2e-2, rtol=2e-2), float(
        jnp.max(jnp.abs(color - color_ref)))

    # TODO(synk): self.density (Linear + Noise(1.0) + ReLU) is defined in the
    # PyTorch module but never used in forward(), so it is not implemented.

    print("KERNEL_OK")
</pallas_src>

<mosaic_0001>
module attributes {stable_mosaic.version = 11 : i64} {
  func.func @nerf_kernel(%arg0: i32, %arg1: memref<16x24xf32, #tpu.memory_space<vmem>>, %arg2: memref<16x12xf32, #tpu.memory_space<vmem>>, %arg3: memref<24x256xbf16, #tpu.memory_space<vmem>>, %arg4: memref<1x256xf32, #tpu.memory_space<vmem>>, %arg5: memref<256x256xbf16, #tpu.memory_space<vmem>>, %arg6: memref<1x256xf32, #tpu.memory_space<vmem>>, %arg7: memref<256x256xbf16, #tpu.memory_space<vmem>>, %arg8: memref<1x256xf32, #tpu.memory_space<vmem>>, %arg9: memref<256x256xbf16, #tpu.memory_space<vmem>>, %arg10: memref<1x256xf32, #tpu.memory_space<vmem>>, %arg11: memref<256x256xbf16, #tpu.memory_space<vmem>>, %arg12: memref<1x256xf32, #tpu.memory_space<vmem>>, %arg13: memref<256x256xbf16, #tpu.memory_space<vmem>>, %arg14: memref<24x256xbf16, #tpu.memory_space<vmem>>, %arg15: memref<1x256xf32, #tpu.memory_space<vmem>>, %arg16: memref<256x256xbf16, #tpu.memory_space<vmem>>, %arg17: memref<1x256xf32, #tpu.memory_space<vmem>>, %arg18: memref<256x256xbf16, #tpu.memory_space<vmem>>, %arg19: memref<1x256xf32, #tpu.memory_space<vmem>>, %arg20: memref<256x256xbf16, #tpu.memory_space<vmem>>, %arg21: memref<1x256xf32, #tpu.memory_space<vmem>>, %arg22: memref<256x256xbf16, #tpu.memory_space<vmem>>, %arg23: memref<1x256xf32, #tpu.memory_space<vmem>>, %arg24: memref<256x8xbf16, #tpu.memory_space<vmem>>, %arg25: memref<1x8xf32, #tpu.memory_space<vmem>>, %arg26: memref<256x128xbf16, #tpu.memory_space<vmem>>, %arg27: memref<12x128xbf16, #tpu.memory_space<vmem>>, %arg28: memref<1x128xf32, #tpu.memory_space<vmem>>, %arg29: memref<128x8xbf16, #tpu.memory_space<vmem>>, %arg30: memref<1x8xf32, #tpu.memory_space<vmem>>, %arg31: memref<16x8xf32, #tpu.memory_space<vmem>>) attributes {dimension_semantics = [#tpu.dimension_semantics<parallel>], iteration_bounds = array<i64: 1>, scalar_prefetch = 0 : i64, scratch_operands = 0 : i64, tpu.core_type = #tpu.core_type<tc>, window_params = [{transform_indices = @transform_0, window_bounds = array<i64: 16, 24>}, {transform_indices = @transform_1, window_bounds = array<i64: 16, 12>}, {pipeline_mode = #tpu.pipeline_mode<synchronous>, transform_indices = @transform_2, window_bounds = array<i64: 24, 256>}, {pipeline_mode = #tpu.pipeline_mode<synchronous>, transform_indices = @transform_3, window_bounds = array<i64: 1, 256>}, {pipeline_mode = #tpu.pipeline_mode<synchronous>, transform_indices = @transform_4, window_bounds = array<i64: 256, 256>}, {pipeline_mode = #tpu.pipeline_mode<synchronous>, transform_indices = @transform_5, window_bounds = array<i64: 1, 256>}, {pipeline_mode = #tpu.pipeline_mode<synchronous>, transform_indices = @transform_6, window_bounds = array<i64: 256, 256>}, {pipeline_mode = #tpu.pipeline_mode<synchronous>, transform_indices = @transform_7, window_bounds = array<i64: 1, 256>}, {pipeline_mode = #tpu.pipeline_mode<synchronous>, transform_indices = @transform_8, window_bounds = array<i64: 256, 256>}, {pipeline_mode = #tpu.pipeline_mode<synchronous>, transform_indices = @transform_9, window_bounds = array<i64: 1, 256>}, {pipeline_mode = #tpu.pipeline_mode<synchronous>, transform_indices = @transform_10, window_bounds = array<i64: 256, 256>}, {pipeline_mode = #tpu.pipeline_mode<synchronous>, transform_indices = @transform_11, window_bounds = array<i64: 1, 256>}, {pipeline_mode = #tpu.pipeline_mode<synchronous>, transform_indices = @transform_12, window_bounds = array<i64: 256, 256>}, {pipeline_mode = #tpu.pipeline_mode<synchronous>, transform_indices = @transform_13, window_bounds = array<i64: 24, 256>}, {pipeline_mode = #tpu.pipeline_mode<synchronous>, transform_indices = @transform_14, window_bounds = array<i64: 1, 256>}, {pipeline_mode = #tpu.pipeline_mode<synchronous>, transform_indices = @transform_15, window_bounds = array<i64: 256, 256>}, {pipeline_mode = #tpu.pipeline_mode<synchronous>, transform_indices = @transform_16, window_bounds = array<i64: 1, 256>}, {pipeline_mode = #tpu.pipeline_mode<synchronous>, transform_indices = @transform_17, window_bounds = array<i64: 256, 256>}, {pipeline_mode = #tpu.pipeline_mode<synchronous>, transform_indices = @transform_18, window_bounds = array<i64: 1, 256>}, {pipeline_mode = #tpu.pipeline_mode<synchronous>, transform_indices = @transform_19, window_bounds = array<i64: 256, 256>}, {pipeline_mode = #tpu.pipeline_mode<synchronous>, transform_indices = @transform_20, window_bounds = array<i64: 1, 256>}, {pipeline_mode = #tpu.pipeline_mode<synchronous>, transform_indices = @transform_21, window_bounds = array<i64: 256, 256>}, {pipeline_mode = #tpu.pipeline_mode<synchronous>, transform_indices = @transform_22, window_bounds = array<i64: 1, 256>}, {pipeline_mode = #tpu.pipeline_mode<synchronous>, transform_indices = @transform_23, window_bounds = array<i64: 256, 8>}, {pipeline_mode = #tpu.pipeline_mode<synchronous>, transform_indices = @transform_24, window_bounds = array<i64: 1, 8>}, {pipeline_mode = #tpu.pipeline_mode<synchronous>, transform_indices = @transform_25, window_bounds = array<i64: 256, 128>}, {pipeline_mode = #tpu.pipeline_mode<synchronous>, transform_indices = @transform_26, window_bounds = array<i64: 12, 128>}, {pipeline_mode = #tpu.pipeline_mode<synchronous>, transform_indices = @transform_27, window_bounds = array<i64: 1, 128>}, {pipeline_mode = #tpu.pipeline_mode<synchronous>, transform_indices = @transform_28, window_bounds = array<i64: 128, 8>}, {pipeline_mode = #tpu.pipeline_mode<synchronous>, transform_indices = @transform_29, window_bounds = array<i64: 1, 8>}, {transform_indices = @transform_30, window_bounds = array<i64: 16, 8>}]} {
    %c0 = arith.constant 0 : index
    %c0_0 = arith.constant 0 : index
    %0 = vector.load %arg1[%c0, %c0_0] : memref<16x24xf32, #tpu.memory_space<vmem>>, vector<16x24xf32>
    %1 = arith.truncf %0 : vector<16x24xf32> to vector<16x24xbf16>
    %c0_1 = arith.constant 0 : index
    %c0_2 = arith.constant 0 : index
    %2 = vector.load %arg2[%c0_1, %c0_2] : memref<16x12xf32, #tpu.memory_space<vmem>>, vector<16x12xf32>
    %3 = arith.truncf %2 : vector<16x12xf32> to vector<16x12xbf16>
    %c0_3 = arith.constant 0 : index
    %c0_4 = arith.constant 0 : index
    %4 = vector.load %arg3[%c0_3, %c0_4] : memref<24x256xbf16, #tpu.memory_space<vmem>>, vector<24x256xbf16>
    %cst = arith.constant dense<0.000000e+00> : vector<16x256xf32>
    %5 = tpu.matmul %1, %4, %cst {dimension_numbers = #tpu.dot_dimension_numbers<[1], [0], [0], [1], [0, 0, 1, 1], [], []>} : vector<16x24xbf16>, vector<24x256xbf16>, vector<16x256xf32> -> vector<16x256xf32>
    %c0_5 = arith.constant 0 : index
    %c0_6 = arith.constant 0 : index
    %6 = vector.load %arg4[%c0_5, %c0_6] : memref<1x256xf32, #tpu.memory_space<vmem>>, vector<1x256xf32>
    %7 = vector.broadcast %6 : vector<1x256xf32> to vector<16x256xf32>
    %8 = arith.addf %5, %7 : vector<16x256xf32>
    %cst_7 = arith.constant 0.000000e+00 : f32
    %9 = vector.broadcast %cst_7 : f32 to vector<16x256xf32>
    %10 = arith.maximumf %8, %9 : vector<16x256xf32>
    %11 = arith.truncf %10 : vector<16x256xf32> to vector<16x256xbf16>
    %c0_8 = arith.constant 0 : index
    %c0_9 = arith.constant 0 : index
    %12 = vector.load %arg5[%c0_8, %c0_9] : memref<256x256xbf16, #tpu.memory_space<vmem>>, vector<256x256xbf16>
    %cst_10 = arith.constant dense<0.000000e+00> : vector<16x256xf32>
    %13 = tpu.matmul %11, %12, %cst_10 {dimension_numbers = #tpu.dot_dimension_numbers<[1], [0], [0], [1], [0, 0, 1, 1], [], []>} : vector<16x256xbf16>, vector<256x256xbf16>, vector<16x256xf32> -> vector<16x256xf32>
    %c0_11 = arith.constant 0 : index
    %c0_12 = arith.constant 0 : index
    %14 = vector.load %arg6[%c0_11, %c0_12] : memref<1x256xf32, #tpu.memory_space<vmem>>, vector<1x256xf32>
    %15 = vector.broadcast %14 : vector<1x256xf32> to vector<16x256xf32>
    %16 = arith.addf %13, %15 : vector<16x256xf32>
    %cst_13 = arith.constant 0.000000e+00 : f32
    %17 = vector.broadcast %cst_13 : f32 to vector<16x256xf32>
    %18 = arith.maximumf %16, %17 : vector<16x256xf32>
    %19 = arith.truncf %18 : vector<16x256xf32> to vector<16x256xbf16>
    %c0_14 = arith.constant 0 : index
    %c0_15 = arith.constant 0 : index
    %20 = vector.load %arg7[%c0_14, %c0_15] : memref<256x256xbf16, #tpu.memory_space<vmem>>, vector<256x256xbf16>
    %cst_16 = arith.constant dense<0.000000e+00> : vector<16x256xf32>
    %21 = tpu.matmul %19, %20, %cst_16 {dimension_numbers = #tpu.dot_dimension_numbers<[1], [0], [0], [1], [0, 0, 1, 1], [], []>} : vector<16x256xbf16>, vector<256x256xbf16>, vector<16x256xf32> -> vector<16x256xf32>
    %c0_17 = arith.constant 0 : index
    %c0_18 = arith.constant 0 : index
    %22 = vector.load %arg8[%c0_17, %c0_18] : memref<1x256xf32, #tpu.memory_space<vmem>>, vector<1x256xf32>
    %23 = vector.broadcast %22 : vector<1x256xf32> to vector<16x256xf32>
    %24 = arith.addf %21, %23 : vector<16x256xf32>
    %cst_19 = arith.constant 0.000000e+00 : f32
    %25 = vector.broadcast %cst_19 : f32 to vector<16x256xf32>
    %26 = arith.maximumf %24, %25 : vector<16x256xf32>
    %27 = arith.truncf %26 : vector<16x256xf32> to vector<16x256xbf16>
    %c0_20 = arith.constant 0 : index
    %c0_21 = arith.constant 0 : index
    %28 = vector.load %arg9[%c0_20, %c0_21] : memref<256x256xbf16, #tpu.memory_space<vmem>>, vector<256x256xbf16>
    %cst_22 = arith.constant dense<0.000000e+00> : vector<16x256xf32>
    %29 = tpu.matmul %27, %28, %cst_22 {dimension_numbers = #tpu.dot_dimension_numbers<[1], [0], [0], [1], [0, 0, 1, 1], [], []>} : vector<16x256xbf16>, vector<256x256xbf16>, vector<16x256xf32> -> vector<16x256xf32>
    %c0_23 = arith.constant 0 : index
    %c0_24 = arith.constant 0 : index
    %30 = vector.load %arg10[%c0_23, %c0_24] : memref<1x256xf32, #tpu.memory_space<vmem>>, vector<1x256xf32>
    %31 = vector.broadcast %30 : vector<1x256xf32> to vector<16x256xf32>
    %32 = arith.addf %29, %31 : vector<16x256xf32>
    %cst_25 = arith.constant 0.000000e+00 : f32
    %33 = vector.broadcast %cst_25 : f32 to vector<16x256xf32>
    %34 = arith.maximumf %32, %33 : vector<16x256xf32>
    %35 = arith.truncf %34 : vector<16x256xf32> to vector<16x256xbf16>
    %c0_26 = arith.constant 0 : index
    %c0_27 = arith.constant 0 : index
    %36 = vector.load %arg11[%c0_26, %c0_27] : memref<256x256xbf16, #tpu.memory_space<vmem>>, vector<256x256xbf16>
    %cst_28 = arith.constant dense<0.000000e+00> : vector<16x256xf32>
    %37 = tpu.matmul %35, %36, %cst_28 {dimension_numbers = #tpu.dot_dimension_numbers<[1], [0], [0], [1], [0, 0, 1, 1], [], []>} : vector<16x256xbf16>, vector<256x256xbf16>, vector<16x256xf32> -> vector<16x256xf32>
    %c0_29 = arith.constant 0 : index
    %c0_30 = arith.constant 0 : index
    %38 = vector.load %arg12[%c0_29, %c0_30] : memref<1x256xf32, #tpu.memory_space<vmem>>, vector<1x256xf32>
    %39 = vector.broadcast %38 : vector<1x256xf32> to vector<16x256xf32>
    %40 = arith.addf %37, %39 : vector<16x256xf32>
    %cst_31 = arith.constant 0.000000e+00 : f32
    %41 = vector.broadcast %cst_31 : f32 to vector<16x256xf32>
    %42 = arith.maximumf %40, %41 : vector<16x256xf32>
    %43 = arith.truncf %42 : vector<16x256xf32> to vector<16x256xbf16>
    %c0_32 = arith.constant 0 : index
    %c0_33 = arith.constant 0 : index
    %44 = vector.load %arg13[%c0_32, %c0_33] : memref<256x256xbf16, #tpu.memory_space<vmem>>, vector<256x256xbf16>
    %cst_34 = arith.constant dense<0.000000e+00> : vector<16x256xf32>
    %45 = tpu.matmul %43, %44, %cst_34 {dimension_numbers = #tpu.dot_dimension_numbers<[1], [0], [0], [1], [0, 0, 1, 1], [], []>} : vector<16x256xbf16>, vector<256x256xbf16>, vector<16x256xf32> -> vector<16x256xf32>
    %c0_35 = arith.constant 0 : index
    %c0_36 = arith.constant 0 : index
    %46 = vector.load %arg14[%c0_35, %c0_36] : memref<24x256xbf16, #tpu.memory_space<vmem>>, vector<24x256xbf16>
    %cst_37 = arith.constant dense<0.000000e+00> : vector<16x256xf32>
    %47 = tpu.matmul %1, %46, %cst_37 {dimension_numbers = #tpu.dot_dimension_numbers<[1], [0], [0], [1], [0, 0, 1, 1], [], []>} : vector<16x24xbf16>, vector<24x256xbf16>, vector<16x256xf32> -> vector<16x256xf32>
    %48 = arith.addf %45, %47 : vector<16x256xf32>
    %c0_38 = arith.constant 0 : index
    %c0_39 = arith.constant 0 : index
    %49 = vector.load %arg15[%c0_38, %c0_39] : memref<1x256xf32, #tpu.memory_space<vmem>>, vector<1x256xf32>
    %50 = vector.broadcast %49 : vector<1x256xf32> to vector<16x256xf32>
    %51 = arith.addf %48, %50 : vector<16x256xf32>
    %cst_40 = arith.constant 0.000000e+00 : f32
    %52 = vector.broadcast %cst_40 : f32 to vector<16x256xf32>
    %53 = arith.maximumf %51, %52 : vector<16x256xf32>
    %54 = arith.truncf %53 : vector<16x256xf32> to vector<16x256xbf16>
    %c0_41 = arith.constant 0 : index
    %c0_42 = arith.constant 0 : index
    %55 = vector.load %arg16[%c0_41, %c0_42] : memref<256x256xbf16, #tpu.memory_space<vmem>>, vector<256x256xbf16>
    %cst_43 = arith.constant dense<0.000000e+00> : vector<16x256xf32>
    %56 = tpu.matmul %54, %55, %cst_43 {dimension_numbers = #tpu.dot_dimension_numbers<[1], [0], [0], [1], [0, 0, 1, 1], [], []>} : vector<16x256xbf16>, vector<256x256xbf16>, vector<16x256xf32> -> vector<16x256xf32>
    %c0_44 = arith.constant 0 : index
    %c0_45 = arith.constant 0 : index
    %57 = vector.load %arg17[%c0_44, %c0_45] : memref<1x256xf32, #tpu.memory_space<vmem>>, vector<1x256xf32>
    %58 = vector.broadcast %57 : vector<1x256xf32> to vector<16x256xf32>
    %59 = arith.addf %56, %58 : vector<16x256xf32>
    %cst_46 = arith.constant 0.000000e+00 : f32
    %60 = vector.broadcast %cst_46 : f32 to vector<16x256xf32>
    %61 = arith.maximumf %59, %60 : vector<16x256xf32>
    %62 = arith.truncf %61 : vector<16x256xf32> to vector<16x256xbf16>
    %c0_47 = arith.constant 0 : index
    %c0_48 = arith.constant 0 : index
    %63 = vector.load %arg18[%c0_47, %c0_48] : memref<256x256xbf16, #tpu.memory_space<vmem>>, vector<256x256xbf16>
    %cst_49 = arith.constant dense<0.000000e+00> : vector<16x256xf32>
    %64 = tpu.matmul %62, %63, %cst_49 {dimension_numbers = #tpu.dot_dimension_numbers<[1], [0], [0], [1], [0, 0, 1, 1], [], []>} : vector<16x256xbf16>, vector<256x256xbf16>, vector<16x256xf32> -> vector<16x256xf32>
    %c0_50 = arith.constant 0 : index
    %c0_51 = arith.constant 0 : index
    %65 = vector.load %arg19[%c0_50, %c0_51] : memref<1x256xf32, #tpu.memory_space<vmem>>, vector<1x256xf32>
    %66 = vector.broadcast %65 : vector<1x256xf32> to vector<16x256xf32>
    %67 = arith.addf %64, %66 : vector<16x256xf32>
    %cst_52 = arith.constant 0.000000e+00 : f32
    %68 = vector.broadcast %cst_52 : f32 to vector<16x256xf32>
    %69 = arith.maximumf %67, %68 : vector<16x256xf32>
    %70 = arith.truncf %69 : vector<16x256xf32> to vector<16x256xbf16>
    %c0_53 = arith.constant 0 : index
    %c0_54 = arith.constant 0 : index
    %71 = vector.load %arg20[%c0_53, %c0_54] : memref<256x256xbf16, #tpu.memory_space<vmem>>, vector<256x256xbf16>
    %cst_55 = arith.constant dense<0.000000e+00> : vector<16x256xf32>
    %72 = tpu.matmul %70, %71, %cst_55 {dimension_numbers = #tpu.dot_dimension_numbers<[1], [0], [0], [1], [0, 0, 1, 1], [], []>} : vector<16x256xbf16>, vector<256x256xbf16>, vector<16x256xf32> -> vector<16x256xf32>
    %c0_56 = arith.constant 0 : index
    %c0_57 = arith.constant 0 : index
    %73 = vector.load %arg21[%c0_56, %c0_57] : memref<1x256xf32, #tpu.memory_space<vmem>>, vector<1x256xf32>
    %74 = vector.broadcast %73 : vector<1x256xf32> to vector<16x256xf32>
    %75 = arith.addf %72, %74 : vector<16x256xf32>
    %cst_58 = arith.constant 0.000000e+00 : f32
    %76 = vector.broadcast %cst_58 : f32 to vector<16x256xf32>
    %77 = arith.maximumf %75, %76 : vector<16x256xf32>
    %78 = arith.truncf %77 : vector<16x256xf32> to vector<16x256xbf16>
    %c0_59 = arith.constant 0 : index
    %c0_60 = arith.constant 0 : index
    %79 = vector.load %arg24[%c0_59, %c0_60] : memref<256x8xbf16, #tpu.memory_space<vmem>>, vector<256x8xbf16>
    %cst_61 = arith.constant dense<0.000000e+00> : vector<16x8xf32>
    %80 = tpu.matmul %78, %79, %cst_61 {dimension_numbers = #tpu.dot_dimension_numbers<[1], [0], [0], [1], [0, 0, 1, 1], [], []>} : vector<16x256xbf16>, vector<256x8xbf16>, vector<16x8xf32> -> vector<16x8xf32>
    %c0_62 = arith.constant 0 : index
    %c0_63 = arith.constant 0 : index
    %81 = vector.load %arg25[%c0_62, %c0_63] : memref<1x8xf32, #tpu.memory_space<vmem>>, vector<1x8xf32>
    %82 = vector.broadcast %81 : vector<1x8xf32> to vector<16x8xf32>
    %83 = arith.addf %80, %82 : vector<16x8xf32>
    %cst_64 = arith.constant 0.000000e+00 : f32
    %84 = vector.broadcast %cst_64 : f32 to vector<16x8xf32>
    %85 = arith.maximumf %83, %84 : vector<16x8xf32>
    %c0_65 = arith.constant 0 : index
    %c0_66 = arith.constant 0 : index
    %86 = vector.load %arg22[%c0_65, %c0_66] : memref<256x256xbf16, #tpu.memory_space<vmem>>, vector<256x256xbf16>
    %cst_67 = arith.constant dense<0.000000e+00> : vector<16x256xf32>
    %87 = tpu.matmul %78, %86, %cst_67 {dimension_numbers = #tpu.dot_dimension_numbers<[1], [0], [0], [1], [0, 0, 1, 1], [], []>} : vector<16x256xbf16>, vector<256x256xbf16>, vector<16x256xf32> -> vector<16x256xf32>
    %c0_68 = arith.constant 0 : index
    %c0_69 = arith.constant 0 : index
    %88 = vector.load %arg23[%c0_68, %c0_69] : memref<1x256xf32, #tpu.memory_space<vmem>>, vector<1x256xf32>
    %89 = vector.broadcast %88 : vector<1x256xf32> to vector<16x256xf32>
    %90 = arith.addf %87, %89 : vector<16x256xf32>
    %cst_70 = arith.constant 0.000000e+00 : f32
    %91 = vector.broadcast %cst_70 : f32 to vector<16x256xf32>
    %92 = arith.maximumf %90, %91 : vector<16x256xf32>
    %93 = arith.truncf %92 : vector<16x256xf32> to vector<16x256xbf16>
    %c0_71 = arith.constant 0 : index
    %c0_72 = arith.constant 0 : index
    %94 = vector.load %arg26[%c0_71, %c0_72] : memref<256x128xbf16, #tpu.memory_space<vmem>>, vector<256x128xbf16>
    %cst_73 = arith.constant dense<0.000000e+00> : vector<16x128xf32>
    %95 = tpu.matmul %93, %94, %cst_73 {dimension_numbers = #tpu.dot_dimension_numbers<[1], [0], [0], [1], [0, 0, 1, 1], [], []>} : vector<16x256xbf16>, vector<256x128xbf16>, vector<16x128xf32> -> vector<16x128xf32>
    %c0_74 = arith.constant 0 : index
    %c0_75 = arith.constant 0 : index
    %96 = vector.load %arg27[%c0_74, %c0_75] : memref<12x128xbf16, #tpu.memory_space<vmem>>, vector<12x128xbf16>
    %cst_76 = arith.constant dense<0.000000e+00> : vector<16x128xf32>
    %97 = tpu.matmul %3, %96, %cst_76 {dimension_numbers = #tpu.dot_dimension_numbers<[1], [0], [0], [1], [0, 0, 1, 1], [], []>} : vector<16x12xbf16>, vector<12x128xbf16>, vector<16x128xf32> -> vector<16x128xf32>
    %98 = arith.addf %95, %97 : vector<16x128xf32>
    %c0_77 = arith.constant 0 : index
    %c0_78 = arith.constant 0 : index
    %99 = vector.load %arg28[%c0_77, %c0_78] : memref<1x128xf32, #tpu.memory_space<vmem>>, vector<1x128xf32>
    %100 = vector.broadcast %99 : vector<1x128xf32> to vector<16x128xf32>
    %101 = arith.addf %98, %100 : vector<16x128xf32>
    %cst_79 = arith.constant 0.000000e+00 : f32
    %102 = vector.broadcast %cst_79 : f32 to vector<16x128xf32>
    %103 = arith.maximumf %101, %102 : vector<16x128xf32>
    %104 = arith.truncf %103 : vector<16x128xf32> to vector<16x128xbf16>
    %c0_80 = arith.constant 0 : index
    %c0_81 = arith.constant 0 : index
    %105 = vector.load %arg29[%c0_80, %c0_81] : memref<128x8xbf16, #tpu.memory_space<vmem>>, vector<128x8xbf16>
    %cst_82 = arith.constant dense<0.000000e+00> : vector<16x8xf32>
    %106 = tpu.matmul %104, %105, %cst_82 {dimension_numbers = #tpu.dot_dimension_numbers<[1], [0], [0], [1], [0, 0, 1, 1], [], []>} : vector<16x128xbf16>, vector<128x8xbf16>, vector<16x8xf32> -> vector<16x8xf32>
    %c0_83 = arith.constant 0 : index
    %c0_84 = arith.constant 0 : index
    %107 = vector.load %arg30[%c0_83, %c0_84] : memref<1x8xf32, #tpu.memory_space<vmem>>, vector<1x8xf32>
    %108 = vector.broadcast %107 : vector<1x8xf32> to vector<16x8xf32>
    %109 = arith.addf %106, %108 : vector<16x8xf32>
    %110 = arith.negf %109 : vector<16x8xf32>
    %111 = math.exp %110 : vector<16x8xf32>
    %cst_85 = arith.constant 1.000000e+00 : f32
    %112 = vector.broadcast %cst_85 : f32 to vector<16x8xf32>
    %113 = arith.addf %112, %111 : vector<16x8xf32>
    %114 = arith.divf %112, %113 : vector<16x8xf32>
    %115 = arith.addf %85, %114 : vector<16x8xf32>
    %c0_86 = arith.constant 0 : index
    %c0_87 = arith.constant 0 : index
    %116 = vector.load %arg31[%c0_86, %c0_87] : memref<16x8xf32, #tpu.memory_space<vmem>>, vector<16x8xf32>
    tpu.vector_store %arg31[%c0_86, %c0_87], %115 {strides = array<i32>} : memref<16x8xf32, #tpu.memory_space<vmem>>, vector<16x8xf32>,
    return
  }
  func.func @transform_0(%arg0: i32) -> (i32, i32) {
    %c0_i32 = arith.constant 0 : i32
    %c0_i32_0 = arith.constant 0 : i32
    return %arg0, %c0_i32 : i32, i32
  }
  func.func @transform_1(%arg0: i32) -> (i32, i32) {
    %c0_i32 = arith.constant 0 : i32
    %c0_i32_0 = arith.constant 0 : i32
    return %arg0, %c0_i32 : i32, i32
  }
  func.func @transform_2(%arg0: i32) -> (i32, i32) {
    %c0_i32 = arith.constant 0 : i32
    %c0_i32_0 = arith.constant 0 : i32
    %c0_i32_1 = arith.constant 0 : i32
    return %c0_i32, %c0_i32_0 : i32, i32
  }
  func.func @transform_3(%arg0: i32) -> (i32, i32) {
    %c0_i32 = arith.constant 0 : i32
    %c0_i32_0 = arith.constant 0 : i32
    %c0_i32_1 = arith.constant 0 : i32
    return %c0_i32, %c0_i32_0 : i32, i32
  }
  func.func @transform_4(%arg0: i32) -> (i32, i32) {
    %c0_i32 = arith.constant 0 : i32
    %c0_i32_0 = arith.constant 0 : i32
    %c0_i32_1 = arith.constant 0 : i32
    return %c0_i32, %c0_i32_0 : i32, i32
  }
  func.func @transform_5(%arg0: i32) -> (i32, i32) {
    %c0_i32 = arith.constant 0 : i32
    %c0_i32_0 = arith.constant 0 : i32
    %c0_i32_1 = arith.constant 0 : i32
    return %c0_i32, %c0_i32_0 : i32, i32
  }
  func.func @transform_6(%arg0: i32) -> (i32, i32) {
    %c0_i32 = arith.constant 0 : i32
    %c0_i32_0 = arith.constant 0 : i32
    %c0_i32_1 = arith.constant 0 : i32
    return %c0_i32, %c0_i32_0 : i32, i32
  }
  func.func @transform_7(%arg0: i32) -> (i32, i32) {
    %c0_i32 = arith.constant 0 : i32
    %c0_i32_0 = arith.constant 0 : i32
    %c0_i32_1 = arith.constant 0 : i32
    return %c0_i32, %c0_i32_0 : i32, i32
  }
  func.func @transform_8(%arg0: i32) -> (i32, i32) {
    %c0_i32 = arith.constant 0 : i32
    %c0_i32_0 = arith.constant 0 : i32
    %c0_i32_1 = arith.constant 0 : i32
    return %c0_i32, %c0_i32_0 : i32, i32
  }
  func.func @transform_9(%arg0: i32) -> (i32, i32) {
    %c0_i32 = arith.constant 0 : i32
    %c0_i32_0 = arith.constant 0 : i32
    %c0_i32_1 = arith.constant 0 : i32
    return %c0_i32, %c0_i32_0 : i32, i32
  }
  func.func @transform_10(%arg0: i32) -> (i32, i32) {
    %c0_i32 = arith.constant 0 : i32
    %c0_i32_0 = arith.constant 0 : i32
    %c0_i32_1 = arith.constant 0 : i32
    return %c0_i32, %c0_i32_0 : i32, i32
  }
  func.func @transform_11(%arg0: i32) -> (i32, i32) {
    %c0_i32 = arith.constant 0 : i32
    %c0_i32_0 = arith.constant 0 : i32
    %c0_i32_1 = arith.constant 0 : i32
    return %c0_i32, %c0_i32_0 : i32, i32
  }
  func.func @transform_12(%arg0: i32) -> (i32, i32) {
    %c0_i32 = arith.constant 0 : i32
    %c0_i32_0 = arith.constant 0 : i32
    %c0_i32_1 = arith.constant 0 : i32
    return %c0_i32, %c0_i32_0 : i32, i32
  }
  func.func @transform_13(%arg0: i32) -> (i32, i32) {
    %c0_i32 = arith.constant 0 : i32
    %c0_i32_0 = arith.constant 0 : i32
    %c0_i32_1 = arith.constant 0 : i32
    return %c0_i32, %c0_i32_0 : i32, i32
  }
  func.func @transform_14(%arg0: i32) -> (i32, i32) {
    %c0_i32 = arith.constant 0 : i32
    %c0_i32_0 = arith.constant 0 : i32
    %c0_i32_1 = arith.constant 0 : i32
    return %c0_i32, %c0_i32_0 : i32, i32
  }
  func.func @transform_15(%arg0: i32) -> (i32, i32) {
    %c0_i32 = arith.constant 0 : i32
    %c0_i32_0 = arith.constant 0 : i32
    %c0_i32_1 = arith.constant 0 : i32
    return %c0_i32, %c0_i32_0 : i32, i32
  }
  func.func @transform_16(%arg0: i32) -> (i32, i32) {
    %c0_i32 = arith.constant 0 : i32
    %c0_i32_0 = arith.constant 0 : i32
    %c0_i32_1 = arith.constant 0 : i32
    return %c0_i32, %c0_i32_0 : i32, i32
  }
  func.func @transform_17(%arg0: i32) -> (i32, i32) {
    %c0_i32 = arith.constant 0 : i32
    %c0_i32_0 = arith.constant 0 : i32
    %c0_i32_1 = arith.constant 0 : i32
    return %c0_i32, %c0_i32_0 : i32, i32
  }
  func.func @transform_18(%arg0: i32) -> (i32, i32) {
    %c0_i32 = arith.constant 0 : i32
    %c0_i32_0 = arith.constant 0 : i32
    %c0_i32_1 = arith.constant 0 : i32
    return %c0_i32, %c0_i32_0 : i32, i32
  }
  func.func @transform_19(%arg0: i32) -> (i32, i32) {
    %c0_i32 = arith.constant 0 : i32
    %c0_i32_0 = arith.constant 0 : i32
    %c0_i32_1 = arith.constant 0 : i32
    return %c0_i32, %c0_i32_0 : i32, i32
  }
  func.func @transform_20(%arg0: i32) -> (i32, i32) {
    %c0_i32 = arith.constant 0 : i32
    %c0_i32_0 = arith.constant 0 : i32
    %c0_i32_1 = arith.constant 0 : i32
    return %c0_i32, %c0_i32_0 : i32, i32
  }
  func.func @transform_21(%arg0: i32) -> (i32, i32) {
    %c0_i32 = arith.constant 0 : i32
    %c0_i32_0 = arith.constant 0 : i32
    %c0_i32_1 = arith.constant 0 : i32
    return %c0_i32, %c0_i32_0 : i32, i32
  }
  func.func @transform_22(%arg0: i32) -> (i32, i32) {
    %c0_i32 = arith.constant 0 : i32
    %c0_i32_0 = arith.constant 0 : i32
    %c0_i32_1 = arith.constant 0 : i32
    return %c0_i32, %c0_i32_0 : i32, i32
  }
  func.func @transform_23(%arg0: i32) -> (i32, i32) {
    %c0_i32 = arith.constant 0 : i32
    %c0_i32_0 = arith.constant 0 : i32
    %c0_i32_1 = arith.constant 0 : i32
    return %c0_i32, %c0_i32_0 : i32, i32
  }
  func.func @transform_24(%arg0: i32) -> (i32, i32) {
    %c0_i32 = arith.constant 0 : i32
    %c0_i32_0 = arith.constant 0 : i32
    %c0_i32_1 = arith.constant 0 : i32
    return %c0_i32, %c0_i32_0 : i32, i32
  }
  func.func @transform_25(%arg0: i32) -> (i32, i32) {
    %c0_i32 = arith.constant 0 : i32
    %c0_i32_0 = arith.constant 0 : i32
    %c0_i32_1 = arith.constant 0 : i32
    return %c0_i32, %c0_i32_0 : i32, i32
  }
  func.func @transform_26(%arg0: i32) -> (i32, i32) {
    %c0_i32 = arith.constant 0 : i32
    %c0_i32_0 = arith.constant 0 : i32
    %c0_i32_1 = arith.constant 0 : i32
    return %c0_i32, %c0_i32_0 : i32, i32
  }
  func.func @transform_27(%arg0: i32) -> (i32, i32) {
    %c0_i32 = arith.constant 0 : i32
    %c0_i32_0 = arith.constant 0 : i32
    %c0_i32_1 = arith.constant 0 : i32
    return %c0_i32, %c0_i32_0 : i32, i32
  }
  func.func @transform_28(%arg0: i32) -> (i32, i32) {
    %c0_i32 = arith.constant 0 : i32
    %c0_i32_0 = arith.constant 0 : i32
    %c0_i32_1 = arith.constant 0 : i32
    return %c0_i32, %c0_i32_0 : i32, i32
  }
  func.func @transform_29(%arg0: i32) -> (i32, i32) {
    %c0_i32 = arith.constant 0 : i32
    %c0_i32_0 = arith.constant 0 : i32
    %c0_i32_1 = arith.constant 0 : i32
    return %c0_i32, %c0_i32_0 : i32, i32
  }
  func.func @transform_30(%arg0: i32) -> (i32, i32) {
    %c0_i32 = arith.constant 0 : i32
    %c0_i32_0 = arith.constant 0 : i32
    return %arg0, %c0_i32 : i32, i32
  }
}

</mosaic_0001>

<llo_original>
// kernel: nerf_forward.1
$region0: #{nerf_forward.1}
  #allocation0 [shape = 'u32[]', space=smem, size = 0x4, offset = 0x4, fixed_abs, tag = 'smem constant byte address 0x4 - core index']
  #allocation1 [shape = 'u32[72,128]{1,0:T(1,128)}', space=vmem, size = 0x9000, scoped, tag = 'internal scratch']
  %s0 = inlined_call_operand.smem [shape: u32[31], index: -1, kind: input, shape index: {}]
  %s1 = sld [smem:[%s0]]
  %s2 = scalar_lea.smem %s0, 1
  %s3 = sld [smem:[%s2]]
  %s4 = scalar_lea.smem %s0, 2
  %s5 = sld [smem:[%s4]]
  %s6 = scalar_lea.smem %s0, 3
  %s7 = sld [smem:[%s6]]
  %s8 = scalar_lea.smem %s0, 4
  %s9 = sld [smem:[%s8]]
  %s10 = scalar_lea.smem %s0, 5
  %s11 = sld [smem:[%s10]]
  %s12 = scalar_lea.smem %s0, 6
  %s13 = sld [smem:[%s12]]
  %s14 = scalar_lea.smem %s0, 7
  %s15 = sld [smem:[%s14]]
  %s16 = scalar_lea.smem %s0, 8
  %s17 = sld [smem:[%s16]]
  %s18 = scalar_lea.smem %s0, 9
  %s19 = sld [smem:[%s18]]
  %s20 = scalar_lea.smem %s0, 10
  %s21 = sld [smem:[%s20]]
  %s22 = scalar_lea.smem %s0, 11
  %s23 = sld [smem:[%s22]]
  %s24 = scalar_lea.smem %s0, 12
  %s25 = sld [smem:[%s24]]
  %s26 = scalar_lea.smem %s0, 13
  %s27 = sld [smem:[%s26]]
  %s28 = scalar_lea.smem %s0, 14
  %s29 = sld [smem:[%s28]]
  %s30 = scalar_lea.smem %s0, 15
  %s31 = sld [smem:[%s30]]
  %s32 = scalar_lea.smem %s0, 16
  %s33 = sld [smem:[%s32]]
  %s34 = scalar_lea.smem %s0, 17
  %s35 = sld [smem:[%s34]]
  %s36 = scalar_lea.smem %s0, 18
  %s37 = sld [smem:[%s36]]
  %s38 = scalar_lea.smem %s0, 19
  %s39 = sld [smem:[%s38]]
  %s40 = scalar_lea.smem %s0, 20
  %s41 = sld [smem:[%s40]]
  %s42 = scalar_lea.smem %s0, 21
  %s43 = sld [smem:[%s42]]
  %s44 = scalar_lea.smem %s0, 22
  %s45 = sld [smem:[%s44]]
  %s46 = scalar_lea.smem %s0, 23
  %s47 = sld [smem:[%s46]]
  %s48 = scalar_lea.smem %s0, 24
  %s49 = sld [smem:[%s48]]
  %s50 = scalar_lea.smem %s0, 25
  %s51 = sld [smem:[%s50]]
  %s52 = scalar_lea.smem %s0, 26
  %s53 = sld [smem:[%s52]]
  %s54 = scalar_lea.smem %s0, 27
  %s55 = sld [smem:[%s54]]
  %s56 = scalar_lea.smem %s0, 28
  %s57 = sld [smem:[%s56]]
  %s58 = scalar_lea.smem %s0, 29
  %s59 = sld [smem:[%s58]]
  %s60 = scalar_lea.smem %s0, 30
  %s61 = sld [smem:[%s60]]
  %s62 = sld [smem:[#allocation0]]
  $region130: #{nerf_forward.1} parent=0
    _
  %s64 = ssub.s32 1, %s62
  %s65 = scalar_select 0, %s64, %s62
  // Predicated region
  $region2: #{nerf_forward.1} parent=0 // pred_check
    _
  $region3: #{nerf_forward.1} parent=0 // pred_check_branch
    %67 = sbr.rel (0) target = $region5
  $region4: #{nerf_forward.1} parent=0 // pred_region
    _
  $region5: #{nerf_forward.1} parent=0 // pred_fallthru
    _
  // Predicated region
  $region6: #{nerf_forward.1} parent=0 // pred_check
    _
  $region7: #{nerf_forward.1} parent=0 // pred_check_branch
    %69 = sbr.rel (0) target = $region9
  $region8: #{nerf_forward.1} parent=0 // pred_region
    _
  $region9: #{nerf_forward.1} parent=0 // pred_fallthru
    _
  // Predicated region
  $region10: #{nerf_forward.1} parent=0 // pred_check
    _
  $region11: #{nerf_forward.1} parent=0 // pred_check_branch
    %71 = sbr.rel (0) target = $region13
  $region12: #{nerf_forward.1} parent=0 // pred_region
    _
  $region13: #{nerf_forward.1} parent=0 // pred_fallthru
    _
  // Predicated region
  $region14: #{nerf_forward.1} parent=0 // pred_check
    _
  $region15: #{nerf_forward.1} parent=0 // pred_check_branch
    %73 = sbr.rel (0) target = $region17
  $region16: #{nerf_forward.1} parent=0 // pred_region
    _
  $region17: #{nerf_forward.1} parent=0 // pred_fallthru
    _
  // Predicated region
  $region18: #{nerf_forward.1} parent=0 // pred_check
    _
  $region19: #{nerf_forward.1} parent=0 // pred_check_branch
    %75 = sbr.rel (0) target = $region21
  $region20: #{nerf_forward.1} parent=0 // pred_region
    _
  $region21: #{nerf_forward.1} parent=0 // pred_fallthru
    _
  // Predicated region
  $region22: #{nerf_forward.1} parent=0 // pred_check
    _
  $region23: #{nerf_forward.1} parent=0 // pred_check_branch
    %77 = sbr.rel (0) target = $region25
  $region24: #{nerf_forward.1} parent=0 // pred_region
    _
  $region25: #{nerf_forward.1} parent=0 // pred_fallthru
    _
  // Predicated region
  $region26: #{nerf_forward.1} parent=0 // pred_check
    _
  $region27: #{nerf_forward.1} parent=0 // pred_check_branch
    %79 = sbr.rel (0) target = $region29
  $region28: #{nerf_forward.1} parent=0 // pred_region
    _
  $region29: #{nerf_forward.1} parent=0 // pred_fallthru
    _
  // Predicated region
  $region30: #{nerf_forward.1} parent=0 // pred_check
    _
  $region31: #{nerf_forward.1} parent=0 // pred_check_branch
    %81 = sbr.rel (0) target = $region33
  $region32: #{nerf_forward.1} parent=0 // pred_region
    _
  $region33: #{nerf_forward.1} parent=0 // pred_fallthru
    _
  // Predicated region
  $region34: #{nerf_forward.1} parent=0 // pred_check
    _
  $region35: #{nerf_forward.1} parent=0 // pred_check_branch
    %83 = sbr.rel (0) target = $region37
  $region36: #{nerf_forward.1} parent=0 // pred_region
    _
  $region37: #{nerf_forward.1} parent=0 // pred_fallthru
    _
  // Predicated region
  $region38: #{nerf_forward.1} parent=0 // pred_check
    _
  $region39: #{nerf_forward.1} parent=0 // pred_check_branch
    %85 = sbr.rel (0) target = $region41
  $region40: #{nerf_forward.1} parent=0 // pred_region
    _
  $region41: #{nerf_forward.1} parent=0 // pred_fallthru
    _
  // Predicated region
  $region42: #{nerf_forward.1} parent=0 // pred_check
    _
  $region43: #{nerf_forward.1} parent=0 // pred_check_branch
    %87 = sbr.rel (0) target = $region45
  $region44: #{nerf_forward.1} parent=0 // pred_region
    _
  $region45: #{nerf_forward.1} parent=0 // pred_fallthru
    _
  // Predicated region
  $region46: #{nerf_forward.1} parent=0 // pred_check
    _
  $region47: #{nerf_forward.1} parent=0 // pred_check_branch
    %89 = sbr.rel (0) target = $region49
  $region48: #{nerf_forward.1} parent=0 // pred_region
    _
  $region49: #{nerf_forward.1} parent=0 // pred_fallthru
    _
  // Predicated region
  $region50: #{nerf_forward.1} parent=0 // pred_check
    _
  $region51: #{nerf_forward.1} parent=0 // pred_check_branch
    %91 = sbr.rel (0) target = $region53
  $region52: #{nerf_forward.1} parent=0 // pred_region
    _
  $region53: #{nerf_forward.1} parent=0 // pred_fallthru
    _
  // Predicated region
  $region54: #{nerf_forward.1} parent=0 // pred_check
    _
  $region55: #{nerf_forward.1} parent=0 // pred_check_branch
    %93 = sbr.rel (0) target = $region57
  $region56: #{nerf_forward.1} parent=0 // pred_region
    _
  $region57: #{nerf_forward.1} parent=0 // pred_fallthru
    _
  // Predicated region
  $region58: #{nerf_forward.1} parent=0 // pred_check
    _
  $region59: #{nerf_forward.1} parent=0 // pred_check_branch
    %95 = sbr.rel (0) target = $region61
  $region60: #{nerf_forward.1} parent=0 // pred_region
    _
  $region61: #{nerf_forward.1} parent=0 // pred_fallthru
    _
  // Predicated region
  $region62: #{nerf_forward.1} parent=0 // pred_check
    _
  $region63: #{nerf_forward.1} parent=0 // pred_check_branch
    %97 = sbr.rel (0) target = $region65
  $region64: #{nerf_forward.1} parent=0 // pred_region
    _
  $region65: #{nerf_forward.1} parent=0 // pred_fallthru
    _
  // Predicated region
  $region66: #{nerf_forward.1} parent=0 // pred_check
    _
  $region67: #{nerf_forward.1} parent=0 // pred_check_branch
    %99 = sbr.rel (0) target = $region69
  $region68: #{nerf_forward.1} parent=0 // pred_region
    _
  $region69: #{nerf_forward.1} parent=0 // pred_fallthru
    _
  // Predicated region
  $region70: #{nerf_forward.1} parent=0 // pred_check
    _
  $region71: #{nerf_forward.1} parent=0 // pred_check_branch
    %101 = sbr.rel (0) target = $region73
  $region72: #{nerf_forward.1} parent=0 // pred_region
    _
  $region73: #{nerf_forward.1} parent=0 // pred_fallthru
    _
  // Predicated region
  $region74: #{nerf_forward.1} parent=0 // pred_check
    _
  $region75: #{nerf_forward.1} parent=0 // pred_check_branch
    %103 = sbr.rel (0) target = $region77
  $region76: #{nerf_forward.1} parent=0 // pred_region
    _
  $region77: #{nerf_forward.1} parent=0 // pred_fallthru
    _
  // Predicated region
  $region78: #{nerf_forward.1} parent=0 // pred_check
    _
  $region79: #{nerf_forward.1} parent=0 // pred_check_branch
    %105 = sbr.rel (0) target = $region81
  $region80: #{nerf_forward.1} parent=0 // pred_region
    _
  $region81: #{nerf_forward.1} parent=0 // pred_fallthru
    _
  // Predicated region
  $region82: #{nerf_forward.1} parent=0 // pred_check
    _
  $region83: #{nerf_forward.1} parent=0 // pred_check_branch
    %107 = sbr.rel (0) target = $region85
  $region84: #{nerf_forward.1} parent=0 // pred_region
    _
  $region85: #{nerf_forward.1} parent=0 // pred_fallthru
    _
  // Predicated region
  $region86: #{nerf_forward.1} parent=0 // pred_check
    _
  $region87: #{nerf_forward.1} parent=0 // pred_check_branch
    %109 = sbr.rel (0) target = $region89
  $region88: #{nerf_forward.1} parent=0 // pred_region
    _
  $region89: #{nerf_forward.1} parent=0 // pred_fallthru
    _
  // Predicated region
  $region90: #{nerf_forward.1} parent=0 // pred_check
    _
  $region91: #{nerf_forward.1} parent=0 // pred_check_branch
    %111 = sbr.rel (0) target = $region93
  $region92: #{nerf_forward.1} parent=0 // pred_region
    _
  $region93: #{nerf_forward.1} parent=0 // pred_fallthru
    _
  // Predicated region
  $region94: #{nerf_forward.1} parent=0 // pred_check
    _
  $region95: #{nerf_forward.1} parent=0 // pred_check_branch
    %113 = sbr.rel (0) target = $region97
  $region96: #{nerf_forward.1} parent=0 // pred_region
    _
  $region97: #{nerf_forward.1} parent=0 // pred_fallthru
    _
  // Predicated region
  $region98: #{nerf_forward.1} parent=0 // pred_check
    _
  $region99: #{nerf_forward.1} parent=0 // pred_check_branch
    %115 = sbr.rel (0) target = $region101
  $region100: #{nerf_forward.1} parent=0 // pred_region
    _
  $region101: #{nerf_forward.1} parent=0 // pred_fallthru
    _
  // Predicated region
  $region102: #{nerf_forward.1} parent=0 // pred_check
    _
  $region103: #{nerf_forward.1} parent=0 // pred_check_branch
    %117 = sbr.rel (0) target = $region105
  $region104: #{nerf_forward.1} parent=0 // pred_region
    _
  $region105: #{nerf_forward.1} parent=0 // pred_fallthru
    _
  // Predicated region
  $region106: #{nerf_forward.1} parent=0 // pred_check
    _
  $region107: #{nerf_forward.1} parent=0 // pred_check_branch
    %119 = sbr.rel (0) target = $region109
  $region108: #{nerf_forward.1} parent=0 // pred_region
    _
  $region109: #{nerf_forward.1} parent=0 // pred_fallthru
    _
  // Predicated region
  $region110: #{nerf_forward.1} parent=0 // pred_check
    _
  $region111: #{nerf_forward.1} parent=0 // pred_check_branch
    %121 = sbr.rel (0) target = $region113
  $region112: #{nerf_forward.1} parent=0 // pred_region
    _
  $region113: #{nerf_forward.1} parent=0 // pred_fallthru
    _
  // Predicated region
  $region114: #{nerf_forward.1} parent=0 // pred_check
    _
  $region115: #{nerf_forward.1} parent=0 // pred_check_branch
    %123 = sbr.rel (0) target = $region117
  $region116: #{nerf_forward.1} parent=0 // pred_region
    _
  $region117: #{nerf_forward.1} parent=0 // pred_fallthru
    _
  // Predicated region
  $region118: #{nerf_forward.1} parent=0 // pred_check
    _
  $region119: #{nerf_forward.1} parent=0 // pred_check_branch
    %125 = sbr.rel (0) target = $region121
  $region120: #{nerf_forward.1} parent=0 // pred_region
    _
  $region121: #{nerf_forward.1} parent=0 // pred_fallthru
    _
  %v127 = vld [vmem:[%s1] sm:$0xff]
  %v128 = vld [vmem:[%s1 + $0x8] sm:$0xff]
  %v129 = vpack.c.bf16 %v128, %v127
  %v130 = vld [vmem:[%s3] sm:$0xff]
  %v131 = vld [vmem:[%s3 + $0x8] sm:$0xff]
  %v132 = vpack.c.bf16 %v131, %v130
  %v133 = vld [vmem:[%s5] sm:$0xff]
  %v134 = vld [vmem:[%s5 + $0x8] sm:$0xff]
  %v135 = vld [vmem:[%s5 + $0x10] sm:$0xff]
  %v136 = vld [vmem:[%s7] sm:$0x3]
  %v138 = vperm.slane %v136, 0
  %v139 = vperm.slane %v136, 1
  %v145 = vunpack.c.l.b16 %v133
  %v146 = vunpack.c.h.b16 %v133
  %v147 = vunpack.c.l.b16 %v134
  %v148 = vunpack.c.h.b16 %v134
  %v149 = vunpack.c.l.b16 %v135
  %v150 = vunpack.c.h.b16 %v135
  %v151 = vpack.c.b16 %v147, %v145
  %v152 = vpack.c.b16 %v148, %v146
  %v153 = vpack.c.b16 %v149, %v149
  %v154 = vpack.c.b16 %v150, %v150
  %vm157 = vcmask 195584
  %v159 = vsel %vm157, %v129, 0
  %vm161 = vcmask 1043456
  %v163 = vsel %vm161, %v153, 0
  %v166 = vsel %vm161, %v154, 0
  %168 = vmatpush.bf16.msra.mxu0 0
  %169 = vmatpush.bf16.msra.mxu0 0
  %170 = vmatpush.bf16.msra.mxu0 0
  %171 = vmatpush.bf16.msra.mxu0 0
  %172 = vmatpush.bf16.msra.mxu0 0
  %173 = vmatpush.bf16.msra.mxu0 0
  %174 = vmatpush.bf16.msra.mxu0 %v163
  %175 = vmatpush.bf16.msra.mxu0 %v151
  %176 = vmatmul.bf16.gmra.mxu0 %v159
  %v177 = vpop.f32.mrf.mxu0
  %v178 = vadd.f32 %v138, %v177
  %v179 = vpop.f32.mrf.mxu0
  %v180 = vadd.f32 %v138, %v179
  %181 = vdwg.mxu0
  %182 = vmatpush.bf16.msra.mxu0 0
  %183 = vmatpush.bf16.msra.mxu0 0
  %184 = vmatpush.bf16.msra.mxu0 0
  %185 = vmatpush.bf16.msra.mxu0 0
  %186 = vmatpush.bf16.msra.mxu0 0
  %187 = vmatpush.bf16.msra.mxu0 0
  %188 = vmatpush.bf16.msra.mxu0 %v166
  %189 = vmatpush.bf16.msra.mxu0 %v152
  %190 = vmatmul.bf16.gmra.mxu0 %v159
  %v191 = vpop.f32.mrf.mxu0
  %v192 = vadd.f32 %v139, %v191
  %v193 = vpop.f32.mrf.mxu0
  %v194 = vadd.f32 %v139, %v193
  %195 = vdwg.mxu0
  %v196 = vmax.f32 %v178, 0.0
  %v197 = vmax.f32 %v192, 0.0
  %v198 = vmax.f32 %v180, 0.0
  %v199 = vmax.f32 %v194, 0.0
  %v200 = vpack.c.bf16 %v198, %v196
  %v201 = vpack.c.bf16 %v199, %v197
  %v202 = vld [vmem:[%s9] sm:$0xff]
  %v203 = vld [vmem:[%s9 + $0x8] sm:$0xff]
  %v204 = vld [vmem:[%s9 + $0x10] sm:$0xff]
  %v205 = vld [vmem:[%s9 + $0x18] sm:$0xff]
  %v206 = vld [vmem:[%s9 + $0x20] sm:$0xff]
  %v207 = vld [vmem:[%s9 + $0x28] sm:$0xff]
  %v208 = vld [vmem:[%s9 + $0x30] sm:$0xff]
  %v209 = vld [vmem:[%s9 + $0x38] sm:$0xff]
  %v210 = vld [vmem:[%s9 + $0x40] sm:$0xff]
  %v211 = vld [vmem:[%s9 + $0x48] sm:$0xff]
  %v212 = vld [vmem:[%s9 + $0x50] sm:$0xff]
  %v213 = vld [vmem:[%s9 + $0x58] sm:$0xff]
  %v214 = vld [vmem:[%s9 + $0x60] sm:$0xff]
  %v215 = vld [vmem:[%s9 + $0x68] sm:$0xff]
  %v216 = vld [vmem:[%s9 + $0x70] sm:$0xff]
  %v217 = vld [vmem:[%s9 + $0x78] sm:$0xff]
  %v218 = vld [vmem:[%s9 + $0x80] sm:$0xff]
  %v219 = vld [vmem:[%s9 + $0x88] sm:$0xff]
  %v220 = vld [vmem:[%s9 + $0x90] sm:$0xff]
  %v221 = vld [vmem:[%s9 + $0x98] sm:$0xff]
  %v222 = vld [vmem:[%s9 + $0xa0] sm:$0xff]
  %v223 = vld [vmem:[%s9 + $0xa8] sm:$0xff]
  %v224 = vld [vmem:[%s9 + $0xb0] sm:$0xff]
  %v225 = vld [vmem:[%s9 + $0xb8] sm:$0xff]
  %v226 = vld [vmem:[%s9 + $0xc0] sm:$0xff]
  %v227 = vld [vmem:[%s9 + $0xc8] sm:$0xff]
  %v228 = vld [vmem:[%s9 + $0xd0] sm:$0xff]
  %v229 = vld [vmem:[%s9 + $0xd8] sm:$0xff]
  %v230 = vld [vmem:[%s9 + $0xe0] sm:$0xff]
  %v231 = vld [vmem:[%s9 + $0xe8] sm:$0xff]
  %v232 = vld [vmem:[%s9 + $0xf0] sm:$0xff]
  %v233 = vld [vmem:[%s9 + $0xf8] sm:$0xff]
  %v234 = vld [vmem:[%s11] sm:$0x3]
  %v236 = vperm.slane %v234, 0
  %v237 = vperm.slane %v234, 1
  %v272 = vunpack.c.l.b16 %v202
  %v273 = vunpack.c.h.b16 %v202
  %v274 = vunpack.c.l.b16 %v203
  %v275 = vunpack.c.h.b16 %v203
  %v276 = vunpack.c.l.b16 %v204
  %v277 = vunpack.c.h.b16 %v204
  %v278 = vunpack.c.l.b16 %v205
  %v279 = vunpack.c.h.b16 %v205
  %v280 = vunpack.c.l.b16 %v206
  %v281 = vunpack.c.h.b16 %v206
  %v282 = vunpack.c.l.b16 %v207
  %v283 = vunpack.c.h.b16 %v207
  %v284 = vunpack.c.l.b16 %v208
  %v285 = vunpack.c.h.b16 %v208
  %v286 = vunpack.c.l.b16 %v209
  %v287 = vunpack.c.h.b16 %v209
  %v288 = vunpack.c.l.b16 %v210
  %v289 = vunpack.c.h.b16 %v210
  %v290 = vunpack.c.l.b16 %v211
  %v291 = vunpack.c.h.b16 %v211
  %v292 = vunpack.c.l.b16 %v212
  %v293 = vunpack.c.h.b16 %v212
  %v294 = vunpack.c.l.b16 %v213
  %v295 = vunpack.c.h.b16 %v213
  %v296 = vunpack.c.l.b16 %v214
  %v297 = vunpack.c.h.b16 %v214
  %v298 = vunpack.c.l.b16 %v215
  %v299 = vunpack.c.h.b16 %v215
  %v300 = vunpack.c.l.b16 %v216
  %v301 = vunpack.c.h.b16 %v216
  %v302 = vunpack.c.l.b16 %v217
  %v303 = vunpack.c.h.b16 %v217
  %v304 = vunpack.c.l.b16 %v218
  %v305 = vunpack.c.h.b16 %v218
  %v306 = vunpack.c.l.b16 %v219
  %v307 = vunpack.c.h.b16 %v219
  %v308 = vunpack.c.l.b16 %v220
  %v309 = vunpack.c.h.b16 %v220
  %v310 = vunpack.c.l.b16 %v221
  %v311 = vunpack.c.h.b16 %v221
  %v312 = vunpack.c.l.b16 %v222
  %v313 = vunpack.c.h.b16 %v222
  %v314 = vunpack.c.l.b16 %v223
  %v315 = vunpack.c.h.b16 %v223
  %v316 = vunpack.c.l.b16 %v224
  %v317 = vunpack.c.h.b16 %v224
  %v318 = vunpack.c.l.b16 %v225
  %v319 = vunpack.c.h.b16 %v225
  %v320 = vunpack.c.l.b16 %v226
  %v321 = vunpack.c.h.b16 %v226
  %v322 = vunpack.c.l.b16 %v227
  %v323 = vunpack.c.h.b16 %v227
  %v324 = vunpack.c.l.b16 %v228
  %v325 = vunpack.c.h.b16 %v228
  %v326 = vunpack.c.l.b16 %v229
  %v327 = vunpack.c.h.b16 %v229
  %v328 = vunpack.c.l.b16 %v230
  %v329 = vunpack.c.h.b16 %v230
  %v330 = vunpack.c.l.b16 %v231
  %v331 = vunpack.c.h.b16 %v231
  %v332 = vunpack.c.l.b16 %v232
  %v333 = vunpack.c.h.b16 %v232
  %v334 = vunpack.c.l.b16 %v233
  %v335 = vunpack.c.h.b16 %v233
  %v336 = vpack.c.b16 %v274, %v272
  %v337 = vpack.c.b16 %v275, %v273
  %v338 = vpack.c.b16 %v278, %v276
  %v339 = vpack.c.b16 %v279, %v277
  %v340 = vpack.c.b16 %v282, %v280
  %v341 = vpack.c.b16 %v283, %v281
  %v342 = vpack.c.b16 %v286, %v284
  %v343 = vpack.c.b16 %v287, %v285
  %v344 = vpack.c.b16 %v290, %v288
  %v345 = vpack.c.b16 %v291, %v289
  %v346 = vpack.c.b16 %v294, %v292
  %v347 = vpack.c.b16 %v295, %v293
  %v348 = vpack.c.b16 %v298, %v296
  %v349 = vpack.c.b16 %v299, %v297
  %v350 = vpack.c.b16 %v302, %v300
  %v351 = vpack.c.b16 %v303, %v301
  %v352 = vpack.c.b16 %v306, %v304
  %v353 = vpack.c.b16 %v307, %v305
  %v354 = vpack.c.b16 %v310, %v308
  %v355 = vpack.c.b16 %v311, %v309
  %v356 = vpack.c.b16 %v314, %v312
  %v357 = vpack.c.b16 %v315, %v313
  %v358 = vpack.c.b16 %v318, %v316
  %v359 = vpack.c.b16 %v319, %v317
  %v360 = vpack.c.b16 %v322, %v320
  %v361 = vpack.c.b16 %v323, %v321
  %v362 = vpack.c.b16 %v326, %v324
  %v363 = vpack.c.b16 %v327, %v325
  %v364 = vpack.c.b16 %v330, %v328
  %v365 = vpack.c.b16 %v331, %v329
  %v366 = vpack.c.b16 %v334, %v332
  %v367 = vpack.c.b16 %v335, %v333
  %400 = vmatpush.bf16.msra.mxu0 %v350
  %401 = vmatpush.bf16.msra.mxu0 %v348
  %402 = vmatpush.bf16.msra.mxu0 %v346
  %403 = vmatpush.bf16.msra.mxu0 %v344
  %404 = vmatpush.bf16.msra.mxu0 %v342
  %405 = vmatpush.bf16.msra.mxu0 %v340
  %406 = vmatpush.bf16.msra.mxu0 %v338
  %407 = vmatpush.bf16.msra.mxu0 %v336
  %408 = vmatmul.bf16.gmra.mxu0 %v200
  %v409 = vpop.f32.mrf.mxu0
  %v410 = vadd.f32 %v236, %v409
  %v411 = vpop.f32.mrf.mxu0
  %v412 = vadd.f32 %v236, %v411
  %413 = vdwg.mxu0
  %414 = vmatpush.bf16.msra.mxu0 %v366
  %415 = vmatpush.bf16.msra.mxu0 %v364
  %416 = vmatpush.bf16.msra.mxu0 %v362
  %417 = vmatpush.bf16.msra.mxu0 %v360
  %418 = vmatpush.bf16.msra.mxu0 %v358
  %419 = vmatpush.bf16.msra.mxu0 %v356
  %420 = vmatpush.bf16.msra.mxu0 %v354
  %421 = vmatpush.bf16.msra.mxu0 %v352
  %422 = vmatmul.bf16.gmra.mxu0 %v201
  %v423 = vpop.f32.mrf.mxu0
  %v424 = vadd.f32 %v410, %v423
  %v425 = vpop.f32.mrf.mxu0
  %v426 = vadd.f32 %v412, %v425
  %427 = vdwg.mxu0
  %428 = vmatpush.bf16.msra.mxu0 %v351
  %429 = vmatpush.bf16.msra.mxu0 %v349
  %430 = vmatpush.bf16.msra.mxu0 %v347
  %431 = vmatpush.bf16.msra.mxu0 %v345
  %432 = vmatpush.bf16.msra.mxu0 %v343
  %433 = vmatpush.bf16.msra.mxu0 %v341
  %434 = vmatpush.bf16.msra.mxu0 %v339
  %435 = vmatpush.bf16.msra.mxu0 %v337
  %436 = vmatmul.bf16.gmra.mxu0 %v200
  %v437 = vpop.f32.mrf.mxu0
  %v438 = vadd.f32 %v237, %v437
  %v439 = vpop.f32.mrf.mxu0
  %v440 = vadd.f32 %v237, %v439
  %441 = vdwg.mxu0
  %442 = vmatpush.bf16.msra.mxu0 %v367
  %443 = vmatpush.bf16.msra.mxu0 %v365
  %444 = vmatpush.bf16.msra.mxu0 %v363
  %445 = vmatpush.bf16.msra.mxu0 %v361
  %446 = vmatpush.bf16.msra.mxu0 %v359
  %447 = vmatpush.bf16.msra.mxu0 %v357
  %448 = vmatpush.bf16.msra.mxu0 %v355
  %449 = vmatpush.bf16.msra.mxu0 %v353
  %450 = vmatmul.bf16.gmra.mxu0 %v201
  %v451 = vpop.f32.mrf.mxu0
  %v452 = vadd.f32 %v438, %v451
  %v453 = vpop.f32.mrf.mxu0
  %v454 = vadd.f32 %v440, %v453
  %455 = vdwg.mxu0
  %v456 = vmax.f32 %v424, 0.0
  %v457 = vmax.f32 %v452, 0.0
  %v458 = vmax.f32 %v426, 0.0
  %v459 = vmax.f32 %v454, 0.0
  %v460 = vpack.c.bf16 %v458, %v456
  %v461 = vpack.c.bf16 %v459, %v457
  %v462 = vld [vmem:[%s13] sm:$0xff]
  %v463 = vld [vmem:[%s13 + $0x8] sm:$0xff]
  %v464 = vld [vmem:[%s13 + $0x10] sm:$0xff]
  %v465 = vld [vmem:[%s13 + $0x18] sm:$0xff]
  %v466 = vld [vmem:[%s13 + $0x20] sm:$0xff]
  %v467 = vld [vmem:[%s13 + $0x28] sm:$0xff]
  %v468 = vld [vmem:[%s13 + $0x30] sm:$0xff]
  %v469 = vld [vmem:[%s13 + $0x38] sm:$0xff]
  %v470 = vld [vmem:[%s13 + $0x40] sm:$0xff]
  %v471 = vld [vmem:[%s13 + $0x48] sm:$0xff]
  %v472 = vld [vmem:[%s13 + $0x50] sm:$0xff]
  %v473 = vld [vmem:[%s13 + $0x58] sm:$0xff]
  %v474 = vld [vmem:[%s13 + $0x60] sm:$0xff]
  %v475 = vld [vmem:[%s13 + $0x68] sm:$0xff]
  %v476 = vld [vmem:[%s13 + $0x70] sm:$0xff]
  %v477 = vld [vmem:[%s13 + $0x78] sm:$0xff]
  %v478 = vld [vmem:[%s13 + $0x80] sm:$0xff]
  %v479 = vld [vmem:[%s13 + $0x88] sm:$0xff]
  %v480 = vld [vmem:[%s13 + $0x90] sm:$0xff]
  %v481 = vld [vmem:[%s13 + $0x98] sm:$0xff]
  %v482 = vld [vmem:[%s13 + $0xa0] sm:$0xff]
  %v483 = vld [vmem:[%s13 + $0xa8] sm:$0xff]
  %v484 = vld [vmem:[%s13 + $0xb0] sm:$0xff]
  %v485 = vld [vmem:[%s13 + $0xb8] sm:$0xff]
  %v486 = vld [vmem:[%s13 + $0xc0] sm:$0xff]
  %v487 = vld [vmem:[%s13 + $0xc8] sm:$0xff]
  %v488 = vld [vmem:[%s13 + $0xd0] sm:$0xff]
  %v489 = vld [vmem:[%s13 + $0xd8] sm:$0xff]
  %v490 = vld [vmem:[%s13 + $0xe0] sm:$0xff]
  %v491 = vld [vmem:[%s13 + $0xe8] sm:$0xff]
  %v492 = vld [vmem:[%s13 + $0xf0] sm:$0xff]
  %v493 = vld [vmem:[%s13 + $0xf8] sm:$0xff]
  %v494 = vld [vmem:[%s15] sm:$0x3]
  %v496 = vperm.slane %v494, 0
  %v497 = vperm.slane %v494, 1
  %v532 = vunpack.c.l.b16 %v462
  %v533 = vunpack.c.h.b16 %v462
  %v534 = vunpack.c.l.b16 %v463
  %v535 = vunpack.c.h.b16 %v463
  %v536 = vunpack.c.l.b16 %v464
  %v537 = vunpack.c.h.b16 %v464
  %v538 = vunpack.c.l.b16 %v465
  %v539 = vunpack.c.h.b16 %v465
  %v540 = vunpack.c.l.b16 %v466
  %v541 = vunpack.c.h.b16 %v466
  %v542 = vunpack.c.l.b16 %v467
  %v543 = vunpack.c.h.b16 %v467
  %v544 = vunpack.c.l.b16 %v468
  %v545 = vunpack.c.h.b16 %v468
  %v546 = vunpack.c.l.b16 %v469
  %v547 = vunpack.c.h.b16 %v469
  %v548 = vunpack.c.l.b16 %v470
  %v549 = vunpack.c.h.b16 %v470
  %v550 = vunpack.c.l.b16 %v471
  %v551 = vunpack.c.h.b16 %v471
  %v552 = vunpack.c.l.b16 %v472
  %v553 = vunpack.c.h.b16 %v472
  %v554 = vunpack.c.l.b16 %v473
  %v555 = vunpack.c.h.b16 %v473
  %v556 = vunpack.c.l.b16 %v474
  %v557 = vunpack.c.h.b16 %v474
  %v558 = vunpack.c.l.b16 %v475
  %v559 = vunpack.c.h.b16 %v475
  %v560 = vunpack.c.l.b16 %v476
  %v561 = vunpack.c.h.b16 %v476
  %v562 = vunpack.c.l.b16 %v477
  %v563 = vunpack.c.h.b16 %v477
  %v564 = vunpack.c.l.b16 %v478
  %v565 = vunpack.c.h.b16 %v478
  %v566 = vunpack.c.l.b16 %v479
  %v567 = vunpack.c.h.b16 %v479
  %v568 = vunpack.c.l.b16 %v480
  %v569 = vunpack.c.h.b16 %v480
  %v570 = vunpack.c.l.b16 %v481
  %v571 = vunpack.c.h.b16 %v481
  %v572 = vunpack.c.l.b16 %v482
  %v573 = vunpack.c.h.b16 %v482
  %v574 = vunpack.c.l.b16 %v483
  %v575 = vunpack.c.h.b16 %v483
  %v576 = vunpack.c.l.b16 %v484
  %v577 = vunpack.c.h.b16 %v484
  %v578 = vunpack.c.l.b16 %v485
  %v579 = vunpack.c.h.b16 %v485
  %v580 = vunpack.c.l.b16 %v486
  %v581 = vunpack.c.h.b16 %v486
  %v582 = vunpack.c.l.b16 %v487
  %v583 = vunpack.c.h.b16 %v487
  %v584 = vunpack.c.l.b16 %v488
  %v585 = vunpack.c.h.b16 %v488
  %v586 = vunpack.c.l.b16 %v489
  %v587 = vunpack.c.h.b16 %v489
  %v588 = vunpack.c.l.b16 %v490
  %v589 = vunpack.c.h.b16 %v490
  %v590 = vunpack.c.l.b16 %v491
  %v591 = vunpack.c.h.b16 %v491
  %v592 = vunpack.c.l.b16 %v492
  %v593 = vunpack.c.h.b16 %v492
  %v594 = vunpack.c.l.b16 %v493
  %v595 = vunpack.c.h.b16 %v493
  %v596 = vpack.c.b16 %v534, %v532
  %v597 = vpack.c.b16 %v535, %v533
  %v598 = vpack.c.b16 %v538, %v536
  %v599 = vpack.c.b16 %v539, %v537
  %v600 = vpack.c.b16 %v542, %v540
  %v601 = vpack.c.b16 %v543, %v541
  %v602 = vpack.c.b16 %v546, %v544
  %v603 = vpack.c.b16 %v547, %v545
  %v604 = vpack.c.b16 %v550, %v548
  %v605 = vpack.c.b16 %v551, %v549
  %v606 = vpack.c.b16 %v554, %v552
  %v607 = vpack.c.b16 %v555, %v553
  %v608 = vpack.c.b16 %v558, %v556
  %v609 = vpack.c.b16 %v559, %v557
  %v610 = vpack.c.b16 %v562, %v560
  %v611 = vpack.c.b16 %v563, %v561
  %v612 = vpack.c.b16 %v566, %v564
  %v613 = vpack.c.b16 %v567, %v565
  %v614 = vpack.c.b16 %v570, %v568
  %v615 = vpack.c.b16 %v571, %v569
  %v616 = vpack.c.b16 %v574, %v572
  %v617 = vpack.c.b16 %v575, %v573
  %v618 = vpack.c.b16 %v578, %v576
  %v619 = vpack.c.b16 %v579, %v577
  %v620 = vpack.c.b16 %v582, %v580
  %v621 = vpack.c.b16 %v583, %v581
  %v622 = vpack.c.b16 %v586, %v584
  %v623 = vpack.c.b16 %v587, %v585
  %v624 = vpack.c.b16 %v590, %v588
  %v625 = vpack.c.b16 %v591, %v589
  %v626 = vpack.c.b16 %v594, %v592
  %v627 = vpack.c.b16 %v595, %v593
  %660 = vmatpush.bf16.msra.mxu0 %v610
  %661 = vmatpush.bf16.msra.mxu0 %v608
  %662 = vmatpush.bf16.msra.mxu0 %v606
  %663 = vmatpush.bf16.msra.mxu0 %v604
  %664 = vmatpush.bf16.msra.mxu0 %v602
  %665 = vmatpush.bf16.msra.mxu0 %v600
  %666 = vmatpush.bf16.msra.mxu0 %v598
  %667 = vmatpush.bf16.msra.mxu0 %v596
  %668 = vmatmul.bf16.gmra.mxu0 %v460
  %v669 = vpop.f32.mrf.mxu0
  %v670 = vadd.f32 %v496, %v669
  %v671 = vpop.f32.mrf.mxu0
  %v672 = vadd.f32 %v496, %v671
  %673 = vdwg.mxu0
  %674 = vmatpush.bf16.msra.mxu0 %v626
  %675 = vmatpush.bf16.msra.mxu0 %v624
  %676 = vmatpush.bf16.msra.mxu0 %v622
  %677 = vmatpush.bf16.msra.mxu0 %v620
  %678 = vmatpush.bf16.msra.mxu0 %v618
  %679 = vmatpush.bf16.msra.mxu0 %v616
  %680 = vmatpush.bf16.msra.mxu0 %v614
  %681 = vmatpush.bf16.msra.mxu0 %v612
  %682 = vmatmul.bf16.gmra.mxu0 %v461
  %v683 = vpop.f32.mrf.mxu0
  %v684 = vadd.f32 %v670, %v683
  %v685 = vpop.f32.mrf.mxu0
  %v686 = vadd.f32 %v672, %v685
  %687 = vdwg.mxu0
  %688 = vmatpush.bf16.msra.mxu0 %v611
  %689 = vmatpush.bf16.msra.mxu0 %v609
  %690 = vmatpush.bf16.msra.mxu0 %v607
  %691 = vmatpush.bf16.msra.mxu0 %v605
  %692 = vmatpush.bf16.msra.mxu0 %v603
  %693 = vmatpush.bf16.msra.mxu0 %v601
  %694 = vmatpush.bf16.msra.mxu0 %v599
  %695 = vmatpush.bf16.msra.mxu0 %v597
  %696 = vmatmul.bf16.gmra.mxu0 %v460
  %v697 = vpop.f32.mrf.mxu0
  %v698 = vadd.f32 %v497, %v697
  %v699 = vpop.f32.mrf.mxu0
  %v700 = vadd.f32 %v497, %v699
  %701 = vdwg.mxu0
  %702 = vmatpush.bf16.msra.mxu0 %v627
  %703 = vmatpush.bf16.msra.mxu0 %v625
  %704 = vmatpush.bf16.msra.mxu0 %v623
  %705 = vmatpush.bf16.msra.mxu0 %v621
  %706 = vmatpush.bf16.msra.mxu0 %v619
  %707 = vmatpush.bf16.msra.mxu0 %v617
  %708 = vmatpush.bf16.msra.mxu0 %v615
  %709 = vmatpush.bf16.msra.mxu0 %v613
  %710 = vmatmul.bf16.gmra.mxu0 %v461
  %v711 = vpop.f32.mrf.mxu0
  %v712 = vadd.f32 %v698, %v711
  %v713 = vpop.f32.mrf.mxu0
  %v714 = vadd.f32 %v700, %v713
  %715 = vdwg.mxu0
  %v716 = vmax.f32 %v684, 0.0
  %v717 = vmax.f32 %v712, 0.0
  %v718 = vmax.f32 %v686, 0.0
  %v719 = vmax.f32 %v714, 0.0
  %v720 = vpack.c.bf16 %v718, %v716
  %v721 = vpack.c.bf16 %v719, %v717
  %v722 = vld [vmem:[%s17] sm:$0xff]
  %v723 = vld [vmem:[%s17 + $0x8] sm:$0xff]
  %v724 = vld [vmem:[%s17 + $0x10] sm:$0xff]
  %v725 = vld [vmem:[%s17 + $0x18] sm:$0xff]
  %v726 = vld [vmem:[%s17 + $0x20] sm:$0xff]
  %v727 = vld [vmem:[%s17 + $0x28] sm:$0xff]
  %v728 = vld [vmem:[%s17 + $0x30] sm:$0xff]
  %v729 = vld [vmem:[%s17 + $0x38] sm:$0xff]
  %v730 = vld [vmem:[%s17 + $0x40] sm:$0xff]
  %v731 = vld [vmem:[%s17 + $0x48] sm:$0xff]
  %v732 = vld [vmem:[%s17 + $0x50] sm:$0xff]
  %v733 = vld [vmem:[%s17 + $0x58] sm:$0xff]
  %v734 = vld [vmem:[%s17 + $0x60] sm:$0xff]
  %v735 = vld [vmem:[%s17 + $0x68] sm:$0xff]
  %v736 = vld [vmem:[%s17 + $0x70] sm:$0xff]
  %v737 = vld [vmem:[%s17 + $0x78] sm:$0xff]
  %v738 = vld [vmem:[%s17 + $0x80] sm:$0xff]
  %v739 = vld [vmem:[%s17 + $0x88] sm:$0xff]
  %v740 = vld [vmem:[%s17 + $0x90] sm:$0xff]
  %v741 = vld [vmem:[%s17 + $0x98] sm:$0xff]
  %v742 = vld [vmem:[%s17 + $0xa0] sm:$0xff]
  %v743 = vld [vmem:[%s17 + $0xa8] sm:$0xff]
  %v744 = vld [vmem:[%s17 + $0xb0] sm:$0xff]
  %v745 = vld [vmem:[%s17 + $0xb8] sm:$0xff]
  %v746 = vld [vmem:[%s17 + $0xc0] sm:$0xff]
  %v747 = vld [vmem:[%s17 + $0xc8] sm:$0xff]
  %v748 = vld [vmem:[%s17 + $0xd0] sm:$0xff]
  %v749 = vld [vmem:[%s17 + $0xd8] sm:$0xff]
  %v750 = vld [vmem:[%s17 + $0xe0] sm:$0xff]
  %v751 = vld [vmem:[%s17 + $0xe8] sm:$0xff]
  %v752 = vld [vmem:[%s17 + $0xf0] sm:$0xff]
  %v753 = vld [vmem:[%s17 + $0xf8] sm:$0xff]
  %v754 = vld [vmem:[%s19] sm:$0x3]
  %v756 = vperm.slane %v754, 0
  %v757 = vperm.slane %v754, 1
  %v792 = vunpack.c.l.b16 %v722
  %v793 = vunpack.c.h.b16 %v722
  %v794 = vunpack.c.l.b16 %v723
  %v795 = vunpack.c.h.b16 %v723
  %v796 = vunpack.c.l.b16 %v724
  %v797 = vunpack.c.h.b16 %v724
  %v798 = vunpack.c.l.b16 %v725
  %v799 = vunpack.c.h.b16 %v725
  %v800 = vunpack.c.l.b16 %v726
  %v801 = vunpack.c.h.b16 %v726
  %v802 = vunpack.c.l.b16 %v727
  %v803 = vunpack.c.h.b16 %v727
  %v804 = vunpack.c.l.b16 %v728
  %v805 = vunpack.c.h.b16 %v728
  %v806 = vunpack.c.l.b16 %v729
  %v807 = vunpack.c.h.b16 %v729
  %v808 = vunpack.c.l.b16 %v730
  %v809 = vunpack.c.h.b16 %v730
  %v810 = vunpack.c.l.b16 %v731
  %v811 = vunpack.c.h.b16 %v731
  %v812 = vunpack.c.l.b16 %v732
  %v813 = vunpack.c.h.b16 %v732
  %v814 = vunpack.c.l.b16 %v733
  %v815 = vunpack.c.h.b16 %v733
  %v816 = vunpack.c.l.b16 %v734
  %v817 = vunpack.c.h.b16 %v734
  %v818 = vunpack.c.l.b16 %v735
  %v819 = vunpack.c.h.b16 %v735
  %v820 = vunpack.c.l.b16 %v736
  %v821 = vunpack.c.h.b16 %v736
  %v822 = vunpack.c.l.b16 %v737
  %v823 = vunpack.c.h.b16 %v737
  %v824 = vunpack.c.l.b16 %v738
  %v825 = vunpack.c.h.b16 %v738
  %v826 = vunpack.c.l.b16 %v739
  %v827 = vunpack.c.h.b16 %v739
  %v828 = vunpack.c.l.b16 %v740
  %v829 = vunpack.c.h.b16 %v740
  %v830 = vunpack.c.l.b16 %v741
  %v831 = vunpack.c.h.b16 %v741
  %v832 = vunpack.c.l.b16 %v742
  %v833 = vunpack.c.h.b16 %v742
  %v834 = vunpack.c.l.b16 %v743
  %v835 = vunpack.c.h.b16 %v743
  %v836 = vunpack.c.l.b16 %v744
  %v837 = vunpack.c.h.b16 %v744
  %v838 = vunpack.c.l.b16 %v745
  %v839 = vunpack.c.h.b16 %v745
  %v840 = vunpack.c.l.b16 %v746
  %v841 = vunpack.c.h.b16 %v746
  %v842 = vunpack.c.l.b16 %v747
  %v843 = vunpack.c.h.b16 %v747
  %v844 = vunpack.c.l.b16 %v748
  %v845 = vunpack.c.h.b16 %v748
  %v846 = vunpack.c.l.b16 %v749
  %v847 = vunpack.c.h.b16 %v749
  %v848 = vunpack.c.l.b16 %v750
  %v849 = vunpack.c.h.b16 %v750
  %v850 = vunpack.c.l.b16 %v751
  %v851 = vunpack.c.h.b16 %v751
  %v852 = vunpack.c.l.b16 %v752
  %v853 = vunpack.c.h.b16 %v752
  %v854 = vunpack.c.l.b16 %v753
  %v855 = vunpack.c.h.b16 %v753
  %v856 = vpack.c.b16 %v794, %v792
  %v857 = vpack.c.b16 %v795, %v793
  %v858 = vpack.c.b16 %v798, %v796
  %v859 = vpack.c.b16 %v799, %v797
  %v860 = vpack.c.b16 %v802, %v800
  %v861 = vpack.c.b16 %v803, %v801
  %v862 = vpack.c.b16 %v806, %v804
  %v863 = vpack.c.b16 %v807, %v805
  %v864 = vpack.c.b16 %v810, %v808
  %v865 = vpack.c.b16 %v811, %v809
  %v866 = vpack.c.b16 %v814, %v812
  %v867 = vpack.c.b16 %v815, %v813
  %v868 = vpack.c.b16 %v818, %v816
  %v869 = vpack.c.b16 %v819, %v817
  %v870 = vpack.c.b16 %v822, %v820
  %v871 = vpack.c.b16 %v823, %v821
  %v872 = vpack.c.b16 %v826, %v824
  %v873 = vpack.c.b16 %v827, %v825
  %v874 = vpack.c.b16 %v830, %v828
  %v875 = vpack.c.b16 %v831, %v829
  %v876 = vpack.c.b16 %v834, %v832
  %v877 = vpack.c.b16 %v835, %v833
  %v878 = vpack.c.b16 %v838, %v836
  %v879 = vpack.c.b16 %v839, %v837
  %v880 = vpack.c.b16 %v842, %v840
  %v881 = vpack.c.b16 %v843, %v841
  %v882 = vpack.c.b16 %v846, %v844
  %v883 = vpack.c.b16 %v847, %v845
  %v884 = vpack.c.b16 %v850, %v848
  %v885 = vpack.c.b16 %v851, %v849
  %v886 = vpack.c.b16 %v854, %v852
  %v887 = vpack.c.b16 %v855, %v853
  %920 = vmatpush.bf16.msra.mxu0 %v870
  %921 = vmatpush.bf16.msra.mxu0 %v868
  %922 = vmatpush.bf16.msra.mxu0 %v866
  %923 = vmatpush.bf16.msra.mxu0 %v864
  %924 = vmatpush.bf16.msra.mxu0 %v862
  %925 = vmatpush.bf16.msra.mxu0 %v860
  %926 = vmatpush.bf16.msra.mxu0 %v858
  %927 = vmatpush.bf16.msra.mxu0 %v856
  %928 = vmatmul.bf16.gmra.mxu0 %v720
  %v929 = vpop.f32.mrf.mxu0
  %v930 = vadd.f32 %v756, %v929
  %v931 = vpop.f32.mrf.mxu0
  %v932 = vadd.f32 %v756, %v931
  %933 = vdwg.mxu0
  %934 = vmatpush.bf16.msra.mxu0 %v886
  %935 = vmatpush.bf16.msra.mxu0 %v884
  %936 = vmatpush.bf16.msra.mxu0 %v882
  %937 = vmatpush.bf16.msra.mxu0 %v880
  %938 = vmatpush.bf16.msra.mxu0 %v878
  %939 = vmatpush.bf16.msra.mxu0 %v876
  %940 = vmatpush.bf16.msra.mxu0 %v874
  %941 = vmatpush.bf16.msra.mxu0 %v872
  %942 = vmatmul.bf16.gmra.mxu0 %v721
  %v943 = vpop.f32.mrf.mxu0
  %v944 = vadd.f32 %v930, %v943
  %v945 = vpop.f32.mrf.mxu0
  %v946 = vadd.f32 %v932, %v945
  %947 = vdwg.mxu0
  %948 = vmatpush.bf16.msra.mxu0 %v871
  %949 = vmatpush.bf16.msra.mxu0 %v869
  %950 = vmatpush.bf16.msra.mxu0 %v867
  %951 = vmatpush.bf16.msra.mxu0 %v865
  %952 = vmatpush.bf16.msra.mxu0 %v863
  %953 = vmatpush.bf16.msra.mxu0 %v861
  %954 = vmatpush.bf16.msra.mxu0 %v859
  %955 = vmatpush.bf16.msra.mxu0 %v857
  %956 = vmatmul.bf16.gmra.mxu0 %v720
  %v957 = vpop.f32.mrf.mxu0
  %v958 = vadd.f32 %v757, %v957
  %v959 = vpop.f32.mrf.mxu0
  %v960 = vadd.f32 %v757, %v959
  %961 = vdwg.mxu0
  %962 = vmatpush.bf16.msra.mxu0 %v887
  %963 = vmatpush.bf16.msra.mxu0 %v885
  %964 = vmatpush.bf16.msra.mxu0 %v883
  %965 = vmatpush.bf16.msra.mxu0 %v881
  %966 = vmatpush.bf16.msra.mxu0 %v879
  %967 = vmatpush.bf16.msra.mxu0 %v877
  %968 = vmatpush.bf16.msra.mxu0 %v875
  %969 = vmatpush.bf16.msra.mxu0 %v873
  %970 = vmatmul.bf16.gmra.mxu0 %v721
  %v971 = vpop.f32.mrf.mxu0
  %v972 = vadd.f32 %v958, %v971
  %v973 = vpop.f32.mrf.mxu0
  %v974 = vadd.f32 %v960, %v973
  %975 = vdwg.mxu0
  %v976 = vmax.f32 %v944, 0.0
  %v977 = vmax.f32 %v972, 0.0
  %v978 = vmax.f32 %v946, 0.0
  %v979 = vmax.f32 %v974, 0.0
  %v980 = vpack.c.bf16 %v978, %v976
  %v981 = vpack.c.bf16 %v979, %v977
  %v982 = vld [vmem:[%s21] sm:$0xff]
  %v983 = vld [vmem:[%s21 + $0x8] sm:$0xff]
  %v984 = vld [vmem:[%s21 + $0x10] sm:$0xff]
  %v985 = vld [vmem:[%s21 + $0x18] sm:$0xff]
  %v986 = vld [vmem:[%s21 + $0x20] sm:$0xff]
  %v987 = vld [vmem:[%s21 + $0x28] sm:$0xff]
  %v988 = vld [vmem:[%s21 + $0x30] sm:$0xff]
  %v989 = vld [vmem:[%s21 + $0x38] sm:$0xff]
  %v990 = vld [vmem:[%s21 + $0x40] sm:$0xff]
  %v991 = vld [vmem:[%s21 + $0x48] sm:$0xff]
  %v992 = vld [vmem:[%s21 + $0x50] sm:$0xff]
  %v993 = vld [vmem:[%s21 + $0x58] sm:$0xff]
  %v994 = vld [vmem:[%s21 + $0x60] sm:$0xff]
  %v995 = vld [vmem:[%s21 + $0x68] sm:$0xff]
  %v996 = vld [vmem:[%s21 + $0x70] sm:$0xff]
  %v997 = vld [vmem:[%s21 + $0x78] sm:$0xff]
  %v998 = vld [vmem:[%s21 + $0x80] sm:$0xff]
  %v999 = vld [vmem:[%s21 + $0x88] sm:$0xff]
  %v1000 = vld [vmem:[%s21 + $0x90] sm:$0xff]
  %v1001 = vld [vmem:[%s21 + $0x98] sm:$0xff]
  %v1002 = vld [vmem:[%s21 + $0xa0] sm:$0xff]
  %v1003 = vld [vmem:[%s21 + $0xa8] sm:$0xff]
  %v1004 = vld [vmem:[%s21 + $0xb0] sm:$0xff]
  %v1005 = vld [vmem:[%s21 + $0xb8] sm:$0xff]
  %v1006 = vld [vmem:[%s21 + $0xc0] sm:$0xff]
  %v1007 = vld [vmem:[%s21 + $0xc8] sm:$0xff]
  %v1008 = vld [vmem:[%s21 + $0xd0] sm:$0xff]
  %v1009 = vld [vmem:[%s21 + $0xd8] sm:$0xff]
  %v1010 = vld [vmem:[%s21 + $0xe0] sm:$0xff]
  %v1011 = vld [vmem:[%s21 + $0xe8] sm:$0xff]
  %v1012 = vld [vmem:[%s21 + $0xf0] sm:$0xff]
  %v1013 = vld [vmem:[%s21 + $0xf8] sm:$0xff]
  %v1014 = vld [vmem:[%s23] sm:$0x3]
  %v1016 = vperm.slane %v1014, 0
  %v1017 = vperm.slane %v1014, 1
  %v1052 = vunpack.c.l.b16 %v982
  %v1053 = vunpack.c.h.b16 %v982
  %v1054 = vunpack.c.l.b16 %v983
  %v1055 = vunpack.c.h.b16 %v983
  %v1056 = vunpack.c.l.b16 %v984
  %v1057 = vunpack.c.h.b16 %v984
  %v1058 = vunpack.c.l.b16 %v985
  %v1059 = vunpack.c.h.b16 %v985
  %v1060 = vunpack.c.l.b16 %v986
  %v1061 = vunpack.c.h.b16 %v986
  %v1062 = vunpack.c.l.b16 %v987
  %v1063 = vunpack.c.h.b16 %v987
  %v1064 = vunpack.c.l.b16 %v988
  %v1065 = vunpack.c.h.b16 %v988
  %v1066 = vunpack.c.l.b16 %v989
  %v1067 = vunpack.c.h.b16 %v989
  %v1068 = vunpack.c.l.b16 %v990
  %v1069 = vunpack.c.h.b16 %v990
  %v1070 = vunpack.c.l.b16 %v991
  %v1071 = vunpack.c.h.b16 %v991
  %v1072 = vunpack.c.l.b16 %v992
  %v1073 = vunpack.c.h.b16 %v992
  %v1074 = vunpack.c.l.b16 %v993
  %v1075 = vunpack.c.h.b16 %v993
  %v1076 = vunpack.c.l.b16 %v994
  %v1077 = vunpack.c.h.b16 %v994
  %v1078 = vunpack.c.l.b16 %v995
  %v1079 = vunpack.c.h.b16 %v995
  %v1080 = vunpack.c.l.b16 %v996
  %v1081 = vunpack.c.h.b16 %v996
  %v1082 = vunpack.c.l.b16 %v997
  %v1083 = vunpack.c.h.b16 %v997
  %v1084 = vunpack.c.l.b16 %v998
  %v1085 = vunpack.c.h.b16 %v998
  %v1086 = vunpack.c.l.b16 %v999
  %v1087 = vunpack.c.h.b16 %v999
  %v1088 = vunpack.c.l.b16 %v1000
  %v1089 = vunpack.c.h.b16 %v1000
  %v1090 = vunpack.c.l.b16 %v1001
  %v1091 = vunpack.c.h.b16 %v1001
  %v1092 = vunpack.c.l.b16 %v1002
  %v1093 = vunpack.c.h.b16 %v1002
  %v1094 = vunpack.c.l.b16 %v1003
  %v1095 = vunpack.c.h.b16 %v1003
  %v1096 = vunpack.c.l.b16 %v1004
  %v1097 = vunpack.c.h.b16 %v1004
  %v1098 = vunpack.c.l.b16 %v1005
  %v1099 = vunpack.c.h.b16 %v1005
  %v1100 = vunpack.c.l.b16 %v1006
  %v1101 = vunpack.c.h.b16 %v1006
  %v1102 = vunpack.c.l.b16 %v1007
  %v1103 = vunpack.c.h.b16 %v1007
  %v1104 = vunpack.c.l.b16 %v1008
  %v1105 = vunpack.c.h.b16 %v1008
  %v1106 = vunpack.c.l.b16 %v1009
  %v1107 = vunpack.c.h.b16 %v1009
  %v1108 = vunpack.c.l.b16 %v1010
  %v1109 = vunpack.c.h.b16 %v1010
  %v1110 = vunpack.c.l.b16 %v1011
  %v1111 = vunpack.c.h.b16 %v1011
  %v1112 = vunpack.c.l.b16 %v1012
  %v1113 = vunpack.c.h.b16 %v1012
  %v1114 = vunpack.c.l.b16 %v1013
  %v1115 = vunpack.c.h.b16 %v1013
  %v1116 = vpack.c.b16 %v1054, %v1052
  %v1117 = vpack.c.b16 %v1055, %v1053
  %v1118 = vpack.c.b16 %v1058, %v1056
  %v1119 = vpack.c.b16 %v1059, %v1057
  %v1120 = vpack.c.b16 %v1062, %v1060
  %v1121 = vpack.c.b16 %v1063, %v1061
  %v1122 = vpack.c.b16 %v1066, %v1064
  %v1123 = vpack.c.b16 %v1067, %v1065
  %v1124 = vpack.c.b16 %v1070, %v1068
  %v1125 = vpack.c.b16 %v1071, %v1069
  %v1126 = vpack.c.b16 %v1074, %v1072
  %v1127 = vpack.c.b16 %v1075, %v1073
  %v1128 = vpack.c.b16 %v1078, %v1076
  %v1129 = vpack.c.b16 %v1079, %v1077
  %v1130 = vpack.c.b16 %v1082, %v1080
  %v1131 = vpack.c.b16 %v1083, %v1081
  %v1132 = vpack.c.b16 %v1086, %v1084
  %v1133 = vpack.c.b16 %v1087, %v1085
  %v1134 = vpack.c.b16 %v1090, %v1088
  %v1135 = vpack.c.b16 %v1091, %v1089
  %v1136 = vpack.c.b16 %v1094, %v1092
  %v1137 = vpack.c.b16 %v1095, %v1093
  %v1138 = vpack.c.b16 %v1098, %v1096
  %v1139 = vpack.c.b16 %v1099, %v1097
  %v1140 = vpack.c.b16 %v1102, %v1100
  %v1141 = vpack.c.b16 %v1103, %v1101
  %v1142 = vpack.c.b16 %v1106, %v1104
  %v1143 = vpack.c.b16 %v1107, %v1105
  %v1144 = vpack.c.b16 %v1110, %v1108
  %v1145 = vpack.c.b16 %v1111, %v1109
  %v1146 = vpack.c.b16 %v1114, %v1112
  %v1147 = vpack.c.b16 %v1115, %v1113
  %1180 = vmatpush.bf16.msra.mxu0 %v1130
  %1181 = vmatpush.bf16.msra.mxu0 %v1128
  %1182 = vmatpush.bf16.msra.mxu0 %v1126
  %1183 = vmatpush.bf16.msra.mxu0 %v1124
  %1184 = vmatpush.bf16.msra.mxu0 %v1122
  %1185 = vmatpush.bf16.msra.mxu0 %v1120
  %1186 = vmatpush.bf16.msra.mxu0 %v1118
  %1187 = vmatpush.bf16.msra.mxu0 %v1116
  %1188 = vmatmul.bf16.gmra.mxu0 %v980
  %v1189 = vpop.f32.mrf.mxu0
  %v1190 = vadd.f32 %v1016, %v1189
  %v1191 = vpop.f32.mrf.mxu0
  %v1192 = vadd.f32 %v1016, %v1191
  %1193 = vdwg.mxu0
  %1194 = vmatpush.bf16.msra.mxu0 %v1146
  %1195 = vmatpush.bf16.msra.mxu0 %v1144
  %1196 = vmatpush.bf16.msra.mxu0 %v1142
  %1197 = vmatpush.bf16.msra.mxu0 %v1140
  %1198 = vmatpush.bf16.msra.mxu0 %v1138
  %1199 = vmatpush.bf16.msra.mxu0 %v1136
  %1200 = vmatpush.bf16.msra.mxu0 %v1134
  %1201 = vmatpush.bf16.msra.mxu0 %v1132
  %1202 = vmatmul.bf16.gmra.mxu0 %v981
  %v1203 = vpop.f32.mrf.mxu0
  %v1204 = vadd.f32 %v1190, %v1203
  %v1205 = vpop.f32.mrf.mxu0
  %v1206 = vadd.f32 %v1192, %v1205
  %1207 = vdwg.mxu0
  %1208 = vmatpush.bf16.msra.mxu0 %v1131
  %1209 = vmatpush.bf16.msra.mxu0 %v1129
  %1210 = vmatpush.bf16.msra.mxu0 %v1127
  %1211 = vmatpush.bf16.msra.mxu0 %v1125
  %1212 = vmatpush.bf16.msra.mxu0 %v1123
  %1213 = vmatpush.bf16.msra.mxu0 %v1121
  %1214 = vmatpush.bf16.msra.mxu0 %v1119
  %1215 = vmatpush.bf16.msra.mxu0 %v1117
  %1216 = vmatmul.bf16.gmra.mxu0 %v980
  %v1217 = vpop.f32.mrf.mxu0
  %v1218 = vadd.f32 %v1017, %v1217
  %v1219 = vpop.f32.mrf.mxu0
  %v1220 = vadd.f32 %v1017, %v1219
  %1221 = vdwg.mxu0
  %1222 = vmatpush.bf16.msra.mxu0 %v1147
  %1223 = vmatpush.bf16.msra.mxu0 %v1145
  %1224 = vmatpush.bf16.msra.mxu0 %v1143
  %1225 = vmatpush.bf16.msra.mxu0 %v1141
  %1226 = vmatpush.bf16.msra.mxu0 %v1139
  %1227 = vmatpush.bf16.msra.mxu0 %v1137
  %1228 = vmatpush.bf16.msra.mxu0 %v1135
  %1229 = vmatpush.bf16.msra.mxu0 %v1133
  %1230 = vmatmul.bf16.gmra.mxu0 %v981
  %v1231 = vpop.f32.mrf.mxu0
  %v1232 = vadd.f32 %v1218, %v1231
  %v1233 = vpop.f32.mrf.mxu0
  %v1234 = vadd.f32 %v1220, %v1233
  %1235 = vdwg.mxu0
  %v1236 = vmax.f32 %v1204, 0.0
  %v1237 = vmax.f32 %v1232, 0.0
  %v1238 = vmax.f32 %v1206, 0.0
  %v1239 = vmax.f32 %v1234, 0.0
  %v1240 = vpack.c.bf16 %v1238, %v1236
  %v1241 = vpack.c.bf16 %v1239, %v1237
  %v1242 = vld [vmem:[%s25] sm:$0xff]
  %v1243 = vld [vmem:[%s25 + $0x8] sm:$0xff]
  %v1244 = vld [vmem:[%s25 + $0x10] sm:$0xff]
  %v1245 = vld [vmem:[%s25 + $0x18] sm:$0xff]
  %v1246 = vld [vmem:[%s25 + $0x20] sm:$0xff]
  %v1247 = vld [vmem:[%s25 + $0x28] sm:$0xff]
  %v1248 = vld [vmem:[%s25 + $0x30] sm:$0xff]
  %v1249 = vld [vmem:[%s25 + $0x38] sm:$0xff]
  %v1250 = vld [vmem:[%s25 + $0x40] sm:$0xff]
  %v1251 = vld [vmem:[%s25 + $0x48] sm:$0xff]
  %v1252 = vld [vmem:[%s25 + $0x50] sm:$0xff]
  %v1253 = vld [vmem:[%s25 + $0x58] sm:$0xff]
  %v1254 = vld [vmem:[%s25 + $0x60] sm:$0xff]
  %v1255 = vld [vmem:[%s25 + $0x68] sm:$0xff]
  %v1256 = vld [vmem:[%s25 + $0x70] sm:$0xff]
  %v1257 = vld [vmem:[%s25 + $0x78] sm:$0xff]
  %v1258 = vld [vmem:[%s25 + $0x80] sm:$0xff]
  %v1259 = vld [vmem:[%s25 + $0x88] sm:$0xff]
  %v1260 = vld [vmem:[%s25 + $0x90] sm:$0xff]
  %v1261 = vld [vmem:[%s25 + $0x98] sm:$0xff]
  %v1262 = vld [vmem:[%s25 + $0xa0] sm:$0xff]
  %v1263 = vld [vmem:[%s25 + $0xa8] sm:$0xff]
  %v1264 = vld [vmem:[%s25 + $0xb0] sm:$0xff]
  %v1265 = vld [vmem:[%s25 + $0xb8] sm:$0xff]
  %v1266 = vld [vmem:[%s25 + $0xc0] sm:$0xff]
  %v1267 = vld [vmem:[%s25 + $0xc8] sm:$0xff]
  %v1268 = vld [vmem:[%s25 + $0xd0] sm:$0xff]
  %v1269 = vld [vmem:[%s25 + $0xd8] sm:$0xff]
  %v1270 = vld [vmem:[%s25 + $0xe0] sm:$0xff]
  %v1271 = vld [vmem:[%s25 + $0xe8] sm:$0xff]
  %v1272 = vld [vmem:[%s25 + $0xf0] sm:$0xff]
  %v1273 = vld [vmem:[%s25 + $0xf8] sm:$0xff]
  %v1274 = vld [vmem:[%s27] sm:$0xff]
  %v1275 = vld [vmem:[%s27 + $0x8] sm:$0xff]
  %v1276 = vld [vmem:[%s27 + $0x10] sm:$0xff]
  %v1280 = vunpack.c.l.b16 %v1274
  %v1281 = vunpack.c.h.b16 %v1274
  %v1282 = vunpack.c.l.b16 %v1275
  %v1283 = vunpack.c.h.b16 %v1275
  %v1284 = vunpack.c.l.b16 %v1276
  %v1285 = vunpack.c.h.b16 %v1276
  %v1286 = vpack.c.b16 %v1282, %v1280
  %v1287 = vpack.c.b16 %v1283, %v1281
  %v1288 = vpack.c.b16 %v1284, %v1284
  %v1289 = vpack.c.b16 %v1285, %v1285
  %v1293 = vsel %vm161, %v1288, 0
  %v1296 = vsel %vm161, %v1289, 0
  %1298 = vmatpush.bf16.msra.mxu0 0
  %1299 = vmatpush.bf16.msra.mxu0 0
  %1300 = vmatpush.bf16.msra.mxu0 0
  %1301 = vmatpush.bf16.msra.mxu0 0
  %1302 = vmatpush.bf16.msra.mxu0 0
  %1303 = vmatpush.bf16.msra.mxu0 0
  %1304 = vmatpush.bf16.msra.mxu0 %v1293
  %1305 = vmatpush.bf16.msra.mxu0 %v1286
  %1306 = vmatmul.bf16.gmra.mxu0 %v159
  %v1307 = vpop.f32.mrf.mxu0
  %v1308 = vadd.f32 0.0, %v1307
  %v1309 = vpop.f32.mrf.mxu0
  %v1310 = vadd.f32 0.0, %v1309
  %1311 = vdwg.mxu0
  %1312 = vmatpush.bf16.msra.mxu0 0
  %1313 = vmatpush.bf16.msra.mxu0 0
  %1314 = vmatpush.bf16.msra.mxu0 0
  %1315 = vmatpush.bf16.msra.mxu0 0
  %1316 = vmatpush.bf16.msra.mxu0 0
  %1317 = vmatpush.bf16.msra.mxu0 0
  %1318 = vmatpush.bf16.msra.mxu0 %v1296
  %1319 = vmatpush.bf16.msra.mxu0 %v1287
  %1320 = vmatmul.bf16.gmra.mxu0 %v159
  %v1321 = vpop.f32.mrf.mxu0
  %v1322 = vadd.f32 0.0, %v1321
  %v1323 = vpop.f32.mrf.mxu0
  %v1324 = vadd.f32 0.0, %v1323
  %1325 = vdwg.mxu0
  %v1358 = vunpack.c.l.b16 %v1242
  %v1359 = vunpack.c.h.b16 %v1242
  %v1360 = vunpack.c.l.b16 %v1243
  %v1361 = vunpack.c.h.b16 %v1243
  %v1362 = vunpack.c.l.b16 %v1244
  %v1363 = vunpack.c.h.b16 %v1244
  %v1364 = vunpack.c.l.b16 %v1245
  %v1365 = vunpack.c.h.b16 %v1245
  %v1366 = vunpack.c.l.b16 %v1246
  %v1367 = vunpack.c.h.b16 %v1246
  %v1368 = vunpack.c.l.b16 %v1247
  %v1369 = vunpack.c.h.b16 %v1247
  %v1370 = vunpack.c.l.b16 %v1248
  %v1371 = vunpack.c.h.b16 %v1248
  %v1372 = vunpack.c.l.b16 %v1249
  %v1373 = vunpack.c.h.b16 %v1249
  %v1374 = vunpack.c.l.b16 %v1250
  %v1375 = vunpack.c.h.b16 %v1250
  %v1376 = vunpack.c.l.b16 %v1251
  %v1377 = vunpack.c.h.b16 %v1251
  %v1378 = vunpack.c.l.b16 %v1252
  %v1379 = vunpack.c.h.b16 %v1252
  %v1380 = vunpack.c.l.b16 %v1253
  %v1381 = vunpack.c.h.b16 %v1253
  %v1382 = vunpack.c.l.b16 %v1254
  %v1383 = vunpack.c.h.b16 %v1254
  %v1384 = vunpack.c.l.b16 %v1255
  %v1385 = vunpack.c.h.b16 %v1255
  %v1386 = vunpack.c.l.b16 %v1256
  %v1387 = vunpack.c.h.b16 %v1256
  %v1388 = vunpack.c.l.b16 %v1257
  %v1389 = vunpack.c.h.b16 %v1257
  %v1390 = vunpack.c.l.b16 %v1258
  %v1391 = vunpack.c.h.b16 %v1258
  %v1392 = vunpack.c.l.b16 %v1259
  %v1393 = vunpack.c.h.b16 %v1259
  %v1394 = vunpack.c.l.b16 %v1260
  %v1395 = vunpack.c.h.b16 %v1260
  %v1396 = vunpack.c.l.b16 %v1261
  %v1397 = vunpack.c.h.b16 %v1261
  %v1398 = vunpack.c.l.b16 %v1262
  %v1399 = vunpack.c.h.b16 %v1262
  %v1400 = vunpack.c.l.b16 %v1263
  %v1401 = vunpack.c.h.b16 %v1263
  %v1402 = vunpack.c.l.b16 %v1264
  %v1403 = vunpack.c.h.b16 %v1264
  %v1404 = vunpack.c.l.b16 %v1265
  %v1405 = vunpack.c.h.b16 %v1265
  %v1406 = vunpack.c.l.b16 %v1266
  %v1407 = vunpack.c.h.b16 %v1266
  %v1408 = vunpack.c.l.b16 %v1267
  %v1409 = vunpack.c.h.b16 %v1267
  %v1410 = vunpack.c.l.b16 %v1268
  %v1411 = vunpack.c.h.b16 %v1268
  %v1412 = vunpack.c.l.b16 %v1269
  %v1413 = vunpack.c.h.b16 %v1269
  %v1414 = vunpack.c.l.b16 %v1270
  %v1415 = vunpack.c.h.b16 %v1270
  %v1416 = vunpack.c.l.b16 %v1271
  %v1417 = vunpack.c.h.b16 %v1271
  %v1418 = vunpack.c.l.b16 %v1272
  %v1419 = vunpack.c.h.b16 %v1272
  %v1420 = vunpack.c.l.b16 %v1273
  %v1421 = vunpack.c.h.b16 %v1273
  %v1422 = vpack.c.b16 %v1360, %v1358
  %v1423 = vpack.c.b16 %v1361, %v1359
  %v1424 = vpack.c.b16 %v1364, %v1362
  %v1425 = vpack.c.b16 %v1365, %v1363
  %v1426 = vpack.c.b16 %v1368, %v1366
  %v1427 = vpack.c.b16 %v1369, %v1367
  %v1428 = vpack.c.b16 %v1372, %v1370
  %v1429 = vpack.c.b16 %v1373, %v1371
  %v1430 = vpack.c.b16 %v1376, %v1374
  %v1431 = vpack.c.b16 %v1377, %v1375
  %v1432 = vpack.c.b16 %v1380, %v1378
  %v1433 = vpack.c.b16 %v1381, %v1379
  %v1434 = vpack.c.b16 %v1384, %v1382
  %v1435 = vpack.c.b16 %v1385, %v1383
  %v1436 = vpack.c.b16 %v1388, %v1386
  %v1437 = vpack.c.b16 %v1389, %v1387
  %v1438 = vpack.c.b16 %v1392, %v1390
  %v1439 = vpack.c.b16 %v1393, %v1391
  %v1440 = vpack.c.b16 %v1396, %v1394
  %v1441 = vpack.c.b16 %v1397, %v1395
  %v1442 = vpack.c.b16 %v1400, %v1398
  %v1443 = vpack.c.b16 %v1401, %v1399
  %v1444 = vpack.c.b16 %v1404, %v1402
  %v1445 = vpack.c.b16 %v1405, %v1403
  %v1446 = vpack.c.b16 %v1408, %v1406
  %v1447 = vpack.c.b16 %v1409, %v1407
  %v1448 = vpack.c.b16 %v1412, %v1410
  %v1449 = vpack.c.b16 %v1413, %v1411
  %v1450 = vpack.c.b16 %v1416, %v1414
  %v1451 = vpack.c.b16 %v1417, %v1415
  %v1452 = vpack.c.b16 %v1420, %v1418
  %v1453 = vpack.c.b16 %v1421, %v1419
  %1486 = vmatpush.bf16.msra.mxu0 %v1436
  %1487 = vmatpush.bf16.msra.mxu0 %v1434
  %1488 = vmatpush.bf16.msra.mxu0 %v1432
  %1489 = vmatpush.bf16.msra.mxu0 %v1430
  %1490 = vmatpush.bf16.msra.mxu0 %v1428
  %1491 = vmatpush.bf16.msra.mxu0 %v1426
  %1492 = vmatpush.bf16.msra.mxu0 %v1424
  %1493 = vmatpush.bf16.msra.mxu0 %v1422
  %1494 = vmatmul.bf16.gmra.mxu0 %v1240
  %v1495 = vpop.f32.mrf.mxu0
  %v1496 = vadd.f32 %v1308, %v1495
  %v1497 = vpop.f32.mrf.mxu0
  %v1498 = vadd.f32 %v1310, %v1497
  %1499 = vdwg.mxu0
  %1500 = vmatpush.bf16.msra.mxu0 %v1452
  %1501 = vmatpush.bf16.msra.mxu0 %v1450
  %1502 = vmatpush.bf16.msra.mxu0 %v1448
  %1503 = vmatpush.bf16.msra.mxu0 %v1446
  %1504 = vmatpush.bf16.msra.mxu0 %v1444
  %1505 = vmatpush.bf16.msra.mxu0 %v1442
  %1506 = vmatpush.bf16.msra.mxu0 %v1440
  %1507 = vmatpush.bf16.msra.mxu0 %v1438
  %1508 = vmatmul.bf16.gmra.mxu0 %v1241
  %v1509 = vpop.f32.mrf.mxu0
  %v1510 = vadd.f32 %v1496, %v1509
  %v1511 = vpop.f32.mrf.mxu0
  %v1512 = vadd.f32 %v1498, %v1511
  %1513 = vdwg.mxu0
  %1514 = vmatpush.bf16.msra.mxu0 %v1437
  %1515 = vmatpush.bf16.msra.mxu0 %v1435
  %1516 = vmatpush.bf16.msra.mxu0 %v1433
  %1517 = vmatpush.bf16.msra.mxu0 %v1431
  %1518 = vmatpush.bf16.msra.mxu0 %v1429
  %1519 = vmatpush.bf16.msra.mxu0 %v1427
  %1520 = vmatpush.bf16.msra.mxu0 %v1425
  %1521 = vmatpush.bf16.msra.mxu0 %v1423
  %1522 = vmatmul.bf16.gmra.mxu0 %v1240
  %v1523 = vpop.f32.mrf.mxu0
  %v1524 = vadd.f32 %v1322, %v1523
  %v1525 = vpop.f32.mrf.mxu0
  %v1526 = vadd.f32 %v1324, %v1525
  %1527 = vdwg.mxu0
  %1528 = vmatpush.bf16.msra.mxu0 %v1453
  %1529 = vmatpush.bf16.msra.mxu0 %v1451
  %1530 = vmatpush.bf16.msra.mxu0 %v1449
  %1531 = vmatpush.bf16.msra.mxu0 %v1447
  %1532 = vmatpush.bf16.msra.mxu0 %v1445
  %1533 = vmatpush.bf16.msra.mxu0 %v1443
  %1534 = vmatpush.bf16.msra.mxu0 %v1441
  %1535 = vmatpush.bf16.msra.mxu0 %v1439
  %1536 = vmatmul.bf16.gmra.mxu0 %v1241
  %v1537 = vpop.f32.mrf.mxu0
  %v1538 = vadd.f32 %v1524, %v1537
  %v1539 = vpop.f32.mrf.mxu0
  %v1540 = vadd.f32 %v1526, %v1539
  %1541 = vdwg.mxu0
  %v1542 = vld [vmem:[%s29] sm:$0x3]
  %v1544 = vperm.slane %v1542, 0
  %v1545 = vperm.slane %v1542, 1
  %v1548 = vadd.f32 %v1510, %v1544
  %v1549 = vadd.f32 %v1538, %v1545
  %v1550 = vadd.f32 %v1512, %v1544
  %v1551 = vadd.f32 %v1540, %v1545
  %v1552 = vmax.f32 %v1548, 0.0
  %v1553 = vmax.f32 %v1549, 0.0
  %v1554 = vmax.f32 %v1550, 0.0
  %v1555 = vmax.f32 %v1551, 0.0
  %v1556 = vpack.c.bf16 %v1554, %v1552
  %v1557 = vpack.c.bf16 %v1555, %v1553
  %v1558 = vld [vmem:[%s31] sm:$0xff]
  %v1559 = vld [vmem:[%s31 + $0x8] sm:$0xff]
  %v1560 = vld [vmem:[%s31 + $0x10] sm:$0xff]
  %v1561 = vld [vmem:[%s31 + $0x18] sm:$0xff]
  %v1562 = vld [vmem:[%s31 + $0x20] sm:$0xff]
  %v1563 = vld [vmem:[%s31 + $0x28] sm:$0xff]
  %v1564 = vld [vmem:[%s31 + $0x30] sm:$0xff]
  %v1565 = vld [vmem:[%s31 + $0x38] sm:$0xff]
  %v1566 = vld [vmem:[%s31 + $0x40] sm:$0xff]
  %v1567 = vld [vmem:[%s31 + $0x48] sm:$0xff]
  %v1568 = vld [vmem:[%s31 + $0x50] sm:$0xff]
  %v1569 = vld [vmem:[%s31 + $0x58] sm:$0xff]
  %v1570 = vld [vmem:[%s31 + $0x60] sm:$0xff]
  %v1571 = vld [vmem:[%s31 + $0x68] sm:$0xff]
  %v1572 = vld [vmem:[%s31 + $0x70] sm:$0xff]
  %v1573 = vld [vmem:[%s31 + $0x78] sm:$0xff]
  %v1574 = vld [vmem:[%s31 + $0x80] sm:$0xff]
  %v1575 = vld [vmem:[%s31 + $0x88] sm:$0xff]
  %v1576 = vld [vmem:[%s31 + $0x90] sm:$0xff]
  %v1577 = vld [vmem:[%s31 + $0x98] sm:$0xff]
  %v1578 = vld [vmem:[%s31 + $0xa0] sm:$0xff]
  %v1579 = vld [vmem:[%s31 + $0xa8] sm:$0xff]
  %v1580 = vld [vmem:[%s31 + $0xb0] sm:$0xff]
  %v1581 = vld [vmem:[%s31 + $0xb8] sm:$0xff]
  %v1582 = vld [vmem:[%s31 + $0xc0] sm:$0xff]
  %v1583 = vld [vmem:[%s31 + $0xc8] sm:$0xff]
  %v1584 = vld [vmem:[%s31 + $0xd0] sm:$0xff]
  %v1585 = vld [vmem:[%s31 + $0xd8] sm:$0xff]
  %v1586 = vld [vmem:[%s31 + $0xe0] sm:$0xff]
  %v1587 = vld [vmem:[%s31 + $0xe8] sm:$0xff]
  %v1588 = vld [vmem:[%s31 + $0xf0] sm:$0xff]
  %v1589 = vld [vmem:[%s31 + $0xf8] sm:$0xff]
  %v1590 = vld [vmem:[%s33] sm:$0x3]
  %v1592 = vperm.slane %v1590, 0
  %v1593 = vperm.slane %v1590, 1
  %v1628 = vunpack.c.l.b16 %v1558
  %v1629 = vunpack.c.h.b16 %v1558
  %v1630 = vunpack.c.l.b16 %v1559
  %v1631 = vunpack.c.h.b16 %v1559
  %v1632 = vunpack.c.l.b16 %v1560
  %v1633 = vunpack.c.h.b16 %v1560
  %v1634 = vunpack.c.l.b16 %v1561
  %v1635 = vunpack.c.h.b16 %v1561
  %v1636 = vunpack.c.l.b16 %v1562
  %v1637 = vunpack.c.h.b16 %v1562
  %v1638 = vunpack.c.l.b16 %v1563
  %v1639 = vunpack.c.h.b16 %v1563
  %v1640 = vunpack.c.l.b16 %v1564
  %v1641 = vunpack.c.h.b16 %v1564
  %v1642 = vunpack.c.l.b16 %v1565
  %v1643 = vunpack.c.h.b16 %v1565
  %v1644 = vunpack.c.l.b16 %v1566
  %v1645 = vunpack.c.h.b16 %v1566
  %v1646 = vunpack.c.l.b16 %v1567
  %v1647 = vunpack.c.h.b16 %v1567
  %v1648 = vunpack.c.l.b16 %v1568
  %v1649 = vunpack.c.h.b16 %v1568
  %v1650 = vunpack.c.l.b16 %v1569
  %v1651 = vunpack.c.h.b16 %v1569
  %v1652 = vunpack.c.l.b16 %v1570
  %v1653 = vunpack.c.h.b16 %v1570
  %v1654 = vunpack.c.l.b16 %v1571
  %v1655 = vunpack.c.h.b16 %v1571
  %v1656 = vunpack.c.l.b16 %v1572
  %v1657 = vunpack.c.h.b16 %v1572
  %v1658 = vunpack.c.l.b16 %v1573
  %v1659 = vunpack.c.h.b16 %v1573
  %v1660 = vunpack.c.l.b16 %v1574
  %v1661 = vunpack.c.h.b16 %v1574
  %v1662 = vunpack.c.l.b16 %v1575
  %v1663 = vunpack.c.h.b16 %v1575
  %v1664 = vunpack.c.l.b16 %v1576
  %v1665 = vunpack.c.h.b16 %v1576
  %v1666 = vunpack.c.l.b16 %v1577
  %v1667 = vunpack.c.h.b16 %v1577
  %v1668 = vunpack.c.l.b16 %v1578
  %v1669 = vunpack.c.h.b16 %v1578
  %v1670 = vunpack.c.l.b16 %v1579
  %v1671 = vunpack.c.h.b16 %v1579
  %v1672 = vunpack.c.l.b16 %v1580
  %v1673 = vunpack.c.h.b16 %v1580
  %v1674 = vunpack.c.l.b16 %v1581
  %v1675 = vunpack.c.h.b16 %v1581
  %v1676 = vunpack.c.l.b16 %v1582
  %v1677 = vunpack.c.h.b16 %v1582
  %v1678 = vunpack.c.l.b16 %v1583
  %v1679 = vunpack.c.h.b16 %v1583
  %v1680 = vunpack.c.l.b16 %v1584
  %v1681 = vunpack.c.h.b16 %v1584
  %v1682 = vunpack.c.l.b16 %v1585
  %v1683 = vunpack.c.h.b16 %v1585
  %v1684 = vunpack.c.l.b16 %v1586
  %v1685 = vunpack.c.h.b16 %v1586
  %v1686 = vunpack.c.l.b16 %v1587
  %v1687 = vunpack.c.h.b16 %v1587
  %v1688 = vunpack.c.l.b16 %v1588
  %v1689 = vunpack.c.h.b16 %v1588
  %v1690 = vunpack.c.l.b16 %v1589
  %v1691 = vunpack.c.h.b16 %v1589
  %v1692 = vpack.c.b16 %v1630, %v1628
  %v1693 = vpack.c.b16 %v1631, %v1629
  %v1694 = vpack.c.b16 %v1634, %v1632
  %v1695 = vpack.c.b16 %v1635, %v1633
  %v1696 = vpack.c.b16 %v1638, %v1636
  %v1697 = vpack.c.b16 %v1639, %v1637
  %v1698 = vpack.c.b16 %v1642, %v1640
  %v1699 = vpack.c.b16 %v1643, %v1641
  %v1700 = vpack.c.b16 %v1646, %v1644
  %v1701 = vpack.c.b16 %v1647, %v1645
  %v1702 = vpack.c.b16 %v1650, %v1648
  %v1703 = vpack.c.b16 %v1651, %v1649
  %v1704 = vpack.c.b16 %v1654, %v1652
  %v1705 = vpack.c.b16 %v1655, %v1653
  %v1706 = vpack.c.b16 %v1658, %v1656
  %v1707 = vpack.c.b16 %v1659, %v1657
  %v1708 = vpack.c.b16 %v1662, %v1660
  %v1709 = vpack.c.b16 %v1663, %v1661
  %v1710 = vpack.c.b16 %v1666, %v1664
  %v1711 = vpack.c.b16 %v1667, %v1665
  %v1712 = vpack.c.b16 %v1670, %v1668
  %v1713 = vpack.c.b16 %v1671, %v1669
  %v1714 = vpack.c.b16 %v1674, %v1672
  %v1715 = vpack.c.b16 %v1675, %v1673
  %v1716 = vpack.c.b16 %v1678, %v1676
  %v1717 = vpack.c.b16 %v1679, %v1677
  %v1718 = vpack.c.b16 %v1682, %v1680
  %v1719 = vpack.c.b16 %v1683, %v1681
  %v1720 = vpack.c.b16 %v1686, %v1684
  %v1721 = vpack.c.b16 %v1687, %v1685
  %v1722 = vpack.c.b16 %v1690, %v1688
  %v1723 = vpack.c.b16 %v1691, %v1689
  %1756 = vmatpush.bf16.msra.mxu0 %v1706
  %1757 = vmatpush.bf16.msra.mxu0 %v1704
  %1758 = vmatpush.bf16.msra.mxu0 %v1702
  %1759 = vmatpush.bf16.msra.mxu0 %v1700
  %1760 = vmatpush.bf16.msra.mxu0 %v1698
  %1761 = vmatpush.bf16.msra.mxu0 %v1696
  %1762 = vmatpush.bf16.msra.mxu0 %v1694
  %1763 = vmatpush.bf16.msra.mxu0 %v1692
  %1764 = vmatmul.bf16.gmra.mxu0 %v1556
  %v1765 = vpop.f32.mrf.mxu0
  %v1766 = vadd.f32 %v1592, %v1765
  %v1767 = vpop.f32.mrf.mxu0
  %v1768 = vadd.f32 %v1592, %v1767
  %1769 = vdwg.mxu0
  %1770 = vmatpush.bf16.msra.mxu0 %v1722
  %1771 = vmatpush.bf16.msra.mxu0 %v1720
  %1772 = vmatpush.bf16.msra.mxu0 %v1718
  %1773 = vmatpush.bf16.msra.mxu0 %v1716
  %1774 = vmatpush.bf16.msra.mxu0 %v1714
  %1775 = vmatpush.bf16.msra.mxu0 %v1712
  %1776 = vmatpush.bf16.msra.mxu0 %v1710
  %1777 = vmatpush.bf16.msra.mxu0 %v1708
  %1778 = vmatmul.bf16.gmra.mxu0 %v1557
  %v1779 = vpop.f32.mrf.mxu0
  %v1780 = vadd.f32 %v1766, %v1779
  %v1781 = vpop.f32.mrf.mxu0
  %v1782 = vadd.f32 %v1768, %v1781
  %1783 = vdwg.mxu0
  %1784 = vmatpush.bf16.msra.mxu0 %v1707
  %1785 = vmatpush.bf16.msra.mxu0 %v1705
  %1786 = vmatpush.bf16.msra.mxu0 %v1703
  %1787 = vmatpush.bf16.msra.mxu0 %v1701
  %1788 = vmatpush.bf16.msra.mxu0 %v1699
  %1789 = vmatpush.bf16.msra.mxu0 %v1697
  %1790 = vmatpush.bf16.msra.mxu0 %v1695
  %1791 = vmatpush.bf16.msra.mxu0 %v1693
  %1792 = vmatmul.bf16.gmra.mxu0 %v1556
  %v1793 = vpop.f32.mrf.mxu0
  %v1794 = vadd.f32 %v1593, %v1793
  %v1795 = vpop.f32.mrf.mxu0
  %v1796 = vadd.f32 %v1593, %v1795
  %1797 = vdwg.mxu0
  %1798 = vmatpush.bf16.msra.mxu0 %v1723
  %1799 = vmatpush.bf16.msra.mxu0 %v1721
  %1800 = vmatpush.bf16.msra.mxu0 %v1719
  %1801 = vmatpush.bf16.msra.mxu0 %v1717
  %1802 = vmatpush.bf16.msra.mxu0 %v1715
  %1803 = vmatpush.bf16.msra.mxu0 %v1713
  %1804 = vmatpush.bf16.msra.mxu0 %v1711
  %1805 = vmatpush.bf16.msra.mxu0 %v1709
  %1806 = vmatmul.bf16.gmra.mxu0 %v1557
  %v1807 = vpop.f32.mrf.mxu0
  %v1808 = vadd.f32 %v1794, %v1807
  %v1809 = vpop.f32.mrf.mxu0
  %v1810 = vadd.f32 %v1796, %v1809
  %1811 = vdwg.mxu0
  %v1812 = vmax.f32 %v1780, 0.0
  %v1813 = vmax.f32 %v1808, 0.0
  %v1814 = vmax.f32 %v1782, 0.0
  %v1815 = vmax.f32 %v1810, 0.0
  %v1816 = vpack.c.bf16 %v1814, %v1812
  %v1817 = vpack.c.bf16 %v1815, %v1813
  %v1818 = vld [vmem:[%s35] sm:$0xff]
  %v1819 = vld [vmem:[%s35 + $0x8] sm:$0xff]
  %v1820 = vld [vmem:[%s35 + $0x10] sm:$0xff]
  %v1821 = vld [vmem:[%s35 + $0x18] sm:$0xff]
  %v1822 = vld [vmem:[%s35 + $0x20] sm:$0xff]
  %v1823 = vld [vmem:[%s35 + $0x28] sm:$0xff]
  %v1824 = vld [vmem:[%s35 + $0x30] sm:$0xff]
  %v1825 = vld [vmem:[%s35 + $0x38] sm:$0xff]
  %v1826 = vld [vmem:[%s35 + $0x40] sm:$0xff]
  %v1827 = vld [vmem:[%s35 + $0x48] sm:$0xff]
  %v1828 = vld [vmem:[%s35 + $0x50] sm:$0xff]
  %v1829 = vld [vmem:[%s35 + $0x58] sm:$0xff]
  %v1830 = vld [vmem:[%s35 + $0x60] sm:$0xff]
  %v1831 = vld [vmem:[%s35 + $0x68] sm:$0xff]
  %v1832 = vld [vmem:[%s35 + $0x70] sm:$0xff]
  %v1833 = vld [vmem:[%s35 + $0x78] sm:$0xff]
  %v1834 = vld [vmem:[%s35 + $0x80] sm:$0xff]
  %v1835 = vld [vmem:[%s35 + $0x88] sm:$0xff]
  %v1836 = vld [vmem:[%s35 + $0x90] sm:$0xff]
  %v1837 = vld [vmem:[%s35 + $0x98] sm:$0xff]
  %v1838 = vld [vmem:[%s35 + $0xa0] sm:$0xff]
  %v1839 = vld [vmem:[%s35 + $0xa8] sm:$0xff]
  %v1840 = vld [vmem:[%s35 + $0xb0] sm:$0xff]
  %v1841 = vld [vmem:[%s35 + $0xb8] sm:$0xff]
  %v1842 = vld [vmem:[%s35 + $0xc0] sm:$0xff]
  %v1843 = vld [vmem:[%s35 + $0xc8] sm:$0xff]
  %v1844 = vld [vmem:[%s35 + $0xd0] sm:$0xff]
  %v1845 = vld [vmem:[%s35 + $0xd8] sm:$0xff]
  %v1846 = vld [vmem:[%s35 + $0xe0] sm:$0xff]
  %v1847 = vld [vmem:[%s35 + $0xe8] sm:$0xff]
  %v1848 = vld [vmem:[%s35 + $0xf0] sm:$0xff]
  %v1849 = vld [vmem:[%s35 + $0xf8] sm:$0xff]
  %v1850 = vld [vmem:[%s37] sm:$0x3]
  %v1852 = vperm.slane %v1850, 0
  %v1853 = vperm.slane %v1850, 1
  %v1888 = vunpack.c.l.b16 %v1818
  %v1889 = vunpack.c.h.b16 %v1818
  %v1890 = vunpack.c.l.b16 %v1819
  %v1891 = vunpack.c.h.b16 %v1819
  %v1892 = vunpack.c.l.b16 %v1820
  %v1893 = vunpack.c.h.b16 %v1820
  %v1894 = vunpack.c.l.b16 %v1821
  %v1895 = vunpack.c.h.b16 %v1821
  %v1896 = vunpack.c.l.b16 %v1822
  %v1897 = vunpack.c.h.b16 %v1822
  %v1898 = vunpack.c.l.b16 %v1823
  %v1899 = vunpack.c.h.b16 %v1823
  %v1900 = vunpack.c.l.b16 %v1824
  %v1901 = vunpack.c.h.b16 %v1824
  %v1902 = vunpack.c.l.b16 %v1825
  %v1903 = vunpack.c.h.b16 %v1825
  %v1904 = vunpack.c.l.b16 %v1826
  %v1905 = vunpack.c.h.b16 %v1826
  %v1906 = vunpack.c.l.b16 %v1827
  %v1907 = vunpack.c.h.b16 %v1827
  %v1908 = vunpack.c.l.b16 %v1828
  %v1909 = vunpack.c.h.b16 %v1828
  %v1910 = vunpack.c.l.b16 %v1829
  %v1911 = vunpack.c.h.b16 %v1829
  %v1912 = vunpack.c.l.b16 %v1830
  %v1913 = vunpack.c.h.b16 %v1830
  %v1914 = vunpack.c.l.b16 %v1831
  %v1915 = vunpack.c.h.b16 %v1831
  %v1916 = vunpack.c.l.b16 %v1832
  %v1917 = vunpack.c.h.b16 %v1832
  %v1918 = vunpack.c.l.b16 %v1833
  %v1919 = vunpack.c.h.b16 %v1833
  %v1920 = vunpack.c.l.b16 %v1834
  %v1921 = vunpack.c.h.b16 %v1834
  %v1922 = vunpack.c.l.b16 %v1835
  %v1923 = vunpack.c.h.b16 %v1835
  %v1924 = vunpack.c.l.b16 %v1836
  %v1925 = vunpack.c.h.b16 %v1836
  %v1926 = vunpack.c.l.b16 %v1837
  %v1927 = vunpack.c.h.b16 %v1837
  %v1928 = vunpack.c.l.b16 %v1838
  %v1929 = vunpack.c.h.b16 %v1838
  %v1930 = vunpack.c.l.b16 %v1839
  %v1931 = vunpack.c.h.b16 %v1839
  %v1932 = vunpack.c.l.b16 %v1840
  %v1933 = vunpack.c.h.b16 %v1840
  %v1934 = vunpack.c.l.b16 %v1841
  %v1935 = vunpack.c.h.b16 %v1841
  %v1936 = vunpack.c.l.b16 %v1842
  %v1937 = vunpack.c.h.b16 %v1842
  %v1938 = vunpack.c.l.b16 %v1843
  %v1939 = vunpack.c.h.b16 %v1843
  %v1940 = vunpack.c.l.b16 %v1844
  %v1941 = vunpack.c.h.b16 %v1844
  %v1942 = vunpack.c.l.b16 %v1845
  %v1943 = vunpack.c.h.b16 %v1845
  %v1944 = vunpack.c.l.b16 %v1846
  %v1945 = vunpack.c.h.b16 %v1846
  %v1946 = vunpack.c.l.b16 %v1847
  %v1947 = vunpack.c.h.b16 %v1847
  %v1948 = vunpack.c.l.b16 %v1848
  %v1949 = vunpack.c.h.b16 %v1848
  %v1950 = vunpack.c.l.b16 %v1849
  %v1951 = vunpack.c.h.b16 %v1849
  %v1952 = vpack.c.b16 %v1890, %v1888
  %v1953 = vpack.c.b16 %v1891, %v1889
  %v1954 = vpack.c.b16 %v1894, %v1892
  %v1955 = vpack.c.b16 %v1895, %v1893
  %v1956 = vpack.c.b16 %v1898, %v1896
  %v1957 = vpack.c.b16 %v1899, %v1897
  %v1958 = vpack.c.b16 %v1902, %v1900
  %v1959 = vpack.c.b16 %v1903, %v1901
  %v1960 = vpack.c.b16 %v1906, %v1904
  %v1961 = vpack.c.b16 %v1907, %v1905
  %v1962 = vpack.c.b16 %v1910, %v1908
  %v1963 = vpack.c.b16 %v1911, %v1909
  %v1964 = vpack.c.b16 %v1914, %v1912
  %v1965 = vpack.c.b16 %v1915, %v1913
  %v1966 = vpack.c.b16 %v1918, %v1916
  %v1967 = vpack.c.b16 %v1919, %v1917
  %v1968 = vpack.c.b16 %v1922, %v1920
  %v1969 = vpack.c.b16 %v1923, %v1921
  %v1970 = vpack.c.b16 %v1926, %v1924
  %v1971 = vpack.c.b16 %v1927, %v1925
  %v1972 = vpack.c.b16 %v1930, %v1928
  %v1973 = vpack.c.b16 %v1931, %v1929
  %v1974 = vpack.c.b16 %v1934, %v1932
  %v1975 = vpack.c.b16 %v1935, %v1933
  %v1976 = vpack.c.b16 %v1938, %v1936
  %v1977 = vpack.c.b16 %v1939, %v1937
  %v1978 = vpack.c.b16 %v1942, %v1940
  %v1979 = vpack.c.b16 %v1943, %v1941
  %v1980 = vpack.c.b16 %v1946, %v1944
  %v1981 = vpack.c.b16 %v1947, %v1945
  %v1982 = vpack.c.b16 %v1950, %v1948
  %v1983 = vpack.c.b16 %v1951, %v1949
  %2016 = vmatpush.bf16.msra.mxu0 %v1966
  %2017 = vmatpush.bf16.msra.mxu0 %v1964
  %2018 = vmatpush.bf16.msra.mxu0 %v1962
  %2019 = vmatpush.bf16.msra.mxu0 %v1960
  %2020 = vmatpush.bf16.msra.mxu0 %v1958
  %2021 = vmatpush.bf16.msra.mxu0 %v1956
  %2022 = vmatpush.bf16.msra.mxu0 %v1954
  %2023 = vmatpush.bf16.msra.mxu0 %v1952
  %2024 = vmatmul.bf16.gmra.mxu0 %v1816
  %v2025 = vpop.f32.mrf.mxu0
  %v2026 = vadd.f32 %v1852, %v2025
  %v2027 = vpop.f32.mrf.mxu0
  %v2028 = vadd.f32 %v1852, %v2027
  %2029 = vdwg.mxu0
  %2030 = vmatpush.bf16.msra.mxu0 %v1982
  %2031 = vmatpush.bf16.msra.mxu0 %v1980
  %2032 = vmatpush.bf16.msra.mxu0 %v1978
  %2033 = vmatpush.bf16.msra.mxu0 %v1976
  %2034 = vmatpush.bf16.msra.mxu0 %v1974
  %2035 = vmatpush.bf16.msra.mxu0 %v1972
  %2036 = vmatpush.bf16.msra.mxu0 %v1970
  %2037 = vmatpush.bf16.msra.mxu0 %v1968
  %2038 = vmatmul.bf16.gmra.mxu0 %v1817
  %v2039 = vpop.f32.mrf.mxu0
  %v2040 = vadd.f32 %v2026, %v2039
  %v2041 = vpop.f32.mrf.mxu0
  %v2042 = vadd.f32 %v2028, %v2041
  %2043 = vdwg.mxu0
  %2044 = vmatpush.bf16.msra.mxu0 %v1967
  %2045 = vmatpush.bf16.msra.mxu0 %v1965
  %2046 = vmatpush.bf16.msra.mxu0 %v1963
  %2047 = vmatpush.bf16.msra.mxu0 %v1961
  %2048 = vmatpush.bf16.msra.mxu0 %v1959
  %2049 = vmatpush.bf16.msra.mxu0 %v1957
  %2050 = vmatpush.bf16.msra.mxu0 %v1955
  %2051 = vmatpush.bf16.msra.mxu0 %v1953
  %2052 = vmatmul.bf16.gmra.mxu0 %v1816
  %v2053 = vpop.f32.mrf.mxu0
  %v2054 = vadd.f32 %v1853, %v2053
  %v2055 = vpop.f32.mrf.mxu0
  %v2056 = vadd.f32 %v1853, %v2055
  %2057 = vdwg.mxu0
  %2058 = vmatpush.bf16.msra.mxu0 %v1983
  %2059 = vmatpush.bf16.msra.mxu0 %v1981
  %2060 = vmatpush.bf16.msra.mxu0 %v1979
  %2061 = vmatpush.bf16.msra.mxu0 %v1977
  %2062 = vmatpush.bf16.msra.mxu0 %v1975
  %2063 = vmatpush.bf16.msra.mxu0 %v1973
  %2064 = vmatpush.bf16.msra.mxu0 %v1971
  %2065 = vmatpush.bf16.msra.mxu0 %v1969
  %2066 = vmatmul.bf16.gmra.mxu0 %v1817
  %v2067 = vpop.f32.mrf.mxu0
  %v2068 = vadd.f32 %v2054, %v2067
  %v2069 = vpop.f32.mrf.mxu0
  %v2070 = vadd.f32 %v2056, %v2069
  %2071 = vdwg.mxu0
  %v2072 = vmax.f32 %v2040, 0.0
  %v2073 = vmax.f32 %v2068, 0.0
  %v2074 = vmax.f32 %v2042, 0.0
  %v2075 = vmax.f32 %v2070, 0.0
  %v2076 = vpack.c.bf16 %v2074, %v2072
  %v2077 = vpack.c.bf16 %v2075, %v2073
  %v2078 = vld [vmem:[%s39] sm:$0xff]
  %v2079 = vld [vmem:[%s39 + $0x8] sm:$0xff]
  %v2080 = vld [vmem:[%s39 + $0x10] sm:$0xff]
  %v2081 = vld [vmem:[%s39 + $0x18] sm:$0xff]
  %v2082 = vld [vmem:[%s39 + $0x20] sm:$0xff]
  %v2083 = vld [vmem:[%s39 + $0x28] sm:$0xff]
  %v2084 = vld [vmem:[%s39 + $0x30] sm:$0xff]
  %v2085 = vld [vmem:[%s39 + $0x38] sm:$0xff]
  %v2086 = vld [vmem:[%s39 + $0x40] sm:$0xff]
  %v2087 = vld [vmem:[%s39 + $0x48] sm:$0xff]
  %v2088 = vld [vmem:[%s39 + $0x50] sm:$0xff]
  %v2089 = vld [vmem:[%s39 + $0x58] sm:$0xff]
  %v2090 = vld [vmem:[%s39 + $0x60] sm:$0xff]
  %v2091 = vld [vmem:[%s39 + $0x68] sm:$0xff]
  %v2092 = vld [vmem:[%s39 + $0x70] sm:$0xff]
  %v2093 = vld [vmem:[%s39 + $0x78] sm:$0xff]
  %v2094 = vld [vmem:[%s39 + $0x80] sm:$0xff]
  %v2095 = vld [vmem:[%s39 + $0x88] sm:$0xff]
  %v2096 = vld [vmem:[%s39 + $0x90] sm:$0xff]
  %v2097 = vld [vmem:[%s39 + $0x98] sm:$0xff]
  %v2098 = vld [vmem:[%s39 + $0xa0] sm:$0xff]
  %v2099 = vld [vmem:[%s39 + $0xa8] sm:$0xff]
  %v2100 = vld [vmem:[%s39 + $0xb0] sm:$0xff]
  %v2101 = vld [vmem:[%s39 + $0xb8] sm:$0xff]
  %v2102 = vld [vmem:[%s39 + $0xc0] sm:$0xff]
  %v2103 = vld [vmem:[%s39 + $0xc8] sm:$0xff]
  %v2104 = vld [vmem:[%s39 + $0xd0] sm:$0xff]
  %v2105 = vld [vmem:[%s39 + $0xd8] sm:$0xff]
  %v2106 = vld [vmem:[%s39 + $0xe0] sm:$0xff]
  %v2107 = vld [vmem:[%s39 + $0xe8] sm:$0xff]
  %v2108 = vld [vmem:[%s39 + $0xf0] sm:$0xff]
  %v2109 = vld [vmem:[%s39 + $0xf8] sm:$0xff]
  %v2110 = vld [vmem:[%s41] sm:$0x3]
  %v2112 = vperm.slane %v2110, 0
  %v2113 = vperm.slane %v2110, 1
  %v2148 = vunpack.c.l.b16 %v2078
  %v2149 = vunpack.c.h.b16 %v2078
  %v2150 = vunpack.c.l.b16 %v2079
  %v2151 = vunpack.c.h.b16 %v2079
  %v2152 = vunpack.c.l.b16 %v2080
  %v2153 = vunpack.c.h.b16 %v2080
  %v2154 = vunpack.c.l.b16 %v2081
  %v2155 = vunpack.c.h.b16 %v2081
  %v2156 = vunpack.c.l.b16 %v2082
  %v2157 = vunpack.c.h.b16 %v2082
  %v2158 = vunpack.c.l.b16 %v2083
  %v2159 = vunpack.c.h.b16 %v2083
  %v2160 = vunpack.c.l.b16 %v2084
  %v2161 = vunpack.c.h.b16 %v2084
  %v2162 = vunpack.c.l.b16 %v2085
  %v2163 = vunpack.c.h.b16 %v2085
  %v2164 = vunpack.c.l.b16 %v2086
  %v2165 = vunpack.c.h.b16 %v2086
  %v2166 = vunpack.c.l.b16 %v2087
  %v2167 = vunpack.c.h.b16 %v2087
  %v2168 = vunpack.c.l.b16 %v2088
  %v2169 = vunpack.c.h.b16 %v2088
  %v2170 = vunpack.c.l.b16 %v2089
  %v2171 = vunpack.c.h.b16 %v2089
  %v2172 = vunpack.c.l.b16 %v2090
  %v2173 = vunpack.c.h.b16 %v2090
  %v2174 = vunpack.c.l.b16 %v2091
  %v2175 = vunpack.c.h.b16 %v2091
  %v2176 = vunpack.c.l.b16 %v2092
  %v2177 = vunpack.c.h.b16 %v2092
  %v2178 = vunpack.c.l.b16 %v2093
  %v2179 = vunpack.c.h.b16 %v2093
  %v2180 = vunpack.c.l.b16 %v2094
  %v2181 = vunpack.c.h.b16 %v2094
  %v2182 = vunpack.c.l.b16 %v2095
  %v2183 = vunpack.c.h.b16 %v2095
  %v2184 = vunpack.c.l.b16 %v2096
  %v2185 = vunpack.c.h.b16 %v2096
  %v2186 = vunpack.c.l.b16 %v2097
  %v2187 = vunpack.c.h.b16 %v2097
  %v2188 = vunpack.c.l.b16 %v2098
  %v2189 = vunpack.c.h.b16 %v2098
  %v2190 = vunpack.c.l.b16 %v2099
  %v2191 = vunpack.c.h.b16 %v2099
  %v2192 = vunpack.c.l.b16 %v2100
  %v2193 = vunpack.c.h.b16 %v2100
  %v2194 = vunpack.c.l.b16 %v2101
  %v2195 = vunpack.c.h.b16 %v2101
  %v2196 = vunpack.c.l.b16 %v2102
  %v2197 = vunpack.c.h.b16 %v2102
  %v2198 = vunpack.c.l.b16 %v2103
  %v2199 = vunpack.c.h.b16 %v2103
  %v2200 = vunpack.c.l.b16 %v2104
  %v2201 = vunpack.c.h.b16 %v2104
  %v2202 = vunpack.c.l.b16 %v2105
  %v2203 = vunpack.c.h.b16 %v2105
  %v2204 = vunpack.c.l.b16 %v2106
  %v2205 = vunpack.c.h.b16 %v2106
  %v2206 = vunpack.c.l.b16 %v2107
  %v2207 = vunpack.c.h.b16 %v2107
  %v2208 = vunpack.c.l.b16 %v2108
  %v2209 = vunpack.c.h.b16 %v2108
  %v2210 = vunpack.c.l.b16 %v2109
  %v2211 = vunpack.c.h.b16 %v2109
  %v2212 = vpack.c.b16 %v2150, %v2148
  %v2213 = vpack.c.b16 %v2151, %v2149
  %v2214 = vpack.c.b16 %v2154, %v2152
  %v2215 = vpack.c.b16 %v2155, %v2153
  %v2216 = vpack.c.b16 %v2158, %v2156
  %v2217 = vpack.c.b16 %v2159, %v2157
  %v2218 = vpack.c.b16 %v2162, %v2160
  %v2219 = vpack.c.b16 %v2163, %v2161
  %v2220 = vpack.c.b16 %v2166, %v2164
  %v2221 = vpack.c.b16 %v2167, %v2165
  %v2222 = vpack.c.b16 %v2170, %v2168
  %v2223 = vpack.c.b16 %v2171, %v2169
  %v2224 = vpack.c.b16 %v2174, %v2172
  %v2225 = vpack.c.b16 %v2175, %v2173
  %v2226 = vpack.c.b16 %v2178, %v2176
  %v2227 = vpack.c.b16 %v2179, %v2177
  %v2228 = vpack.c.b16 %v2182, %v2180
  %v2229 = vpack.c.b16 %v2183, %v2181
  %v2230 = vpack.c.b16 %v2186, %v2184
  %v2231 = vpack.c.b16 %v2187, %v2185
  %v2232 = vpack.c.b16 %v2190, %v2188
  %v2233 = vpack.c.b16 %v2191, %v2189
  %v2234 = vpack.c.b16 %v2194, %v2192
  %v2235 = vpack.c.b16 %v2195, %v2193
  %v2236 = vpack.c.b16 %v2198, %v2196
  %v2237 = vpack.c.b16 %v2199, %v2197
  %v2238 = vpack.c.b16 %v2202, %v2200
  %v2239 = vpack.c.b16 %v2203, %v2201
  %v2240 = vpack.c.b16 %v2206, %v2204
  %v2241 = vpack.c.b16 %v2207, %v2205
  %v2242 = vpack.c.b16 %v2210, %v2208
  %v2243 = vpack.c.b16 %v2211, %v2209
  %2276 = vmatpush.bf16.msra.mxu0 %v2226
  %2277 = vmatpush.bf16.msra.mxu0 %v2224
  %2278 = vmatpush.bf16.msra.mxu0 %v2222
  %2279 = vmatpush.bf16.msra.mxu0 %v2220
  %2280 = vmatpush.bf16.msra.mxu0 %v2218
  %2281 = vmatpush.bf16.msra.mxu0 %v2216
  %2282 = vmatpush.bf16.msra.mxu0 %v2214
  %2283 = vmatpush.bf16.msra.mxu0 %v2212
  %2284 = vmatmul.bf16.gmra.mxu0 %v2076
  %v2285 = vpop.f32.mrf.mxu0
  %v2286 = vadd.f32 %v2112, %v2285
  %v2287 = vpop.f32.mrf.mxu0
  %v2288 = vadd.f32 %v2112, %v2287
  %2289 = vdwg.mxu0
  %2290 = vmatpush.bf16.msra.mxu0 %v2242
  %2291 = vmatpush.bf16.msra.mxu0 %v2240
  %2292 = vmatpush.bf16.msra.mxu0 %v2238
  %2293 = vmatpush.bf16.msra.mxu0 %v2236
  %2294 = vmatpush.bf16.msra.mxu0 %v2234
  %2295 = vmatpush.bf16.msra.mxu0 %v2232
  %2296 = vmatpush.bf16.msra.mxu0 %v2230
  %2297 = vmatpush.bf16.msra.mxu0 %v2228
  %2298 = vmatmul.bf16.gmra.mxu0 %v2077
  %v2299 = vpop.f32.mrf.mxu0
  %v2300 = vadd.f32 %v2286, %v2299
  %v2301 = vpop.f32.mrf.mxu0
  %v2302 = vadd.f32 %v2288, %v2301
  %2303 = vdwg.mxu0
  %2304 = vmatpush.bf16.msra.mxu0 %v2227
  %2305 = vmatpush.bf16.msra.mxu0 %v2225
  %2306 = vmatpush.bf16.msra.mxu0 %v2223
  %2307 = vmatpush.bf16.msra.mxu0 %v2221
  %2308 = vmatpush.bf16.msra.mxu0 %v2219
  %2309 = vmatpush.bf16.msra.mxu0 %v2217
  %2310 = vmatpush.bf16.msra.mxu0 %v2215
  %2311 = vmatpush.bf16.msra.mxu0 %v2213
  %2312 = vmatmul.bf16.gmra.mxu0 %v2076
  %v2313 = vpop.f32.mrf.mxu0
  %v2314 = vadd.f32 %v2113, %v2313
  %v2315 = vpop.f32.mrf.mxu0
  %v2316 = vadd.f32 %v2113, %v2315
  %2317 = vdwg.mxu0
  %2318 = vmatpush.bf16.msra.mxu0 %v2243
  %2319 = vmatpush.bf16.msra.mxu0 %v2241
  %2320 = vmatpush.bf16.msra.mxu0 %v2239
  %2321 = vmatpush.bf16.msra.mxu0 %v2237
  %2322 = vmatpush.bf16.msra.mxu0 %v2235
  %2323 = vmatpush.bf16.msra.mxu0 %v2233
  %2324 = vmatpush.bf16.msra.mxu0 %v2231
  %2325 = vmatpush.bf16.msra.mxu0 %v2229
  %2326 = vmatmul.bf16.gmra.mxu0 %v2077
  %v2327 = vpop.f32.mrf.mxu0
  %v2328 = vadd.f32 %v2314, %v2327
  %v2329 = vpop.f32.mrf.mxu0
  %v2330 = vadd.f32 %v2316, %v2329
  %2331 = vdwg.mxu0
  %v2332 = vmax.f32 %v2300, 0.0
  %v2333 = vmax.f32 %v2328, 0.0
  %v2334 = vmax.f32 %v2302, 0.0
  %v2335 = vmax.f32 %v2330, 0.0
  %v2336 = vpack.c.bf16 %v2334, %v2332
  %v2337 = vpack.c.bf16 %v2335, %v2333
  %v2338 = vld [vmem:[%s47] sm:$0xf]
  %v2339 = vld [vmem:[%s47 + $0x4] sm:$0xf]
  %v2340 = vld [vmem:[%s47 + $0x8] sm:$0xf]
  %v2341 = vld [vmem:[%s47 + $0xc] sm:$0xf]
  %v2342 = vld [vmem:[%s47 + $0x10] sm:$0xf]
  %v2343 = vld [vmem:[%s47 + $0x14] sm:$0xf]
  %v2344 = vld [vmem:[%s47 + $0x18] sm:$0xf]
  %v2345 = vld [vmem:[%s47 + $0x1c] sm:$0xf]
  %v2346 = vld [vmem:[%s47 + $0x20] sm:$0xf]
  %v2347 = vld [vmem:[%s47 + $0x24] sm:$0xf]
  %v2348 = vld [vmem:[%s47 + $0x28] sm:$0xf]
  %v2349 = vld [vmem:[%s47 + $0x2c] sm:$0xf]
  %v2350 = vld [vmem:[%s47 + $0x30] sm:$0xf]
  %v2351 = vld [vmem:[%s47 + $0x34] sm:$0xf]
  %v2352 = vld [vmem:[%s47 + $0x38] sm:$0xf]
  %v2353 = vld [vmem:[%s47 + $0x3c] sm:$0xf]
  %v2354 = vld [vmem:[%s47 + $0x40] sm:$0xf]
  %v2355 = vld [vmem:[%s47 + $0x44] sm:$0xf]
  %v2356 = vld [vmem:[%s47 + $0x48] sm:$0xf]
  %v2357 = vld [vmem:[%s47 + $0x4c] sm:$0xf]
  %v2358 = vld [vmem:[%s47 + $0x50] sm:$0xf]
  %v2359 = vld [vmem:[%s47 + $0x54] sm:$0xf]
  %v2360 = vld [vmem:[%s47 + $0x58] sm:$0xf]
  %v2361 = vld [vmem:[%s47 + $0x5c] sm:$0xf]
  %v2362 = vld [vmem:[%s47 + $0x60] sm:$0xf]
  %v2363 = vld [vmem:[%s47 + $0x64] sm:$0xf]
  %v2364 = vld [vmem:[%s47 + $0x68] sm:$0xf]
  %v2365 = vld [vmem:[%s47 + $0x6c] sm:$0xf]
  %v2366 = vld [vmem:[%s47 + $0x70] sm:$0xf]
  %v2367 = vld [vmem:[%s47 + $0x74] sm:$0xf]
  %v2368 = vld [vmem:[%s47 + $0x78] sm:$0xf]
  %v2369 = vld [vmem:[%s47 + $0x7c] sm:$0xf]
  %v2370 = vld [vmem:[%s49] sm:$0x1]
  %v2372 = vperm.slane %v2370, 0
  %v2406 = vunpack.c.l.b16 %v2338
  %v2407 = vunpack.c.l.b16 %v2339
  %v2408 = vunpack.c.l.b16 %v2340
  %v2409 = vunpack.c.l.b16 %v2341
  %v2410 = vunpack.c.l.b16 %v2342
  %v2411 = vunpack.c.l.b16 %v2343
  %v2412 = vunpack.c.l.b16 %v2344
  %v2413 = vunpack.c.l.b16 %v2345
  %v2414 = vunpack.c.l.b16 %v2346
  %v2415 = vunpack.c.l.b16 %v2347
  %v2416 = vunpack.c.l.b16 %v2348
  %v2417 = vunpack.c.l.b16 %v2349
  %v2418 = vunpack.c.l.b16 %v2350
  %v2419 = vunpack.c.l.b16 %v2351
  %v2420 = vunpack.c.l.b16 %v2352
  %v2421 = vunpack.c.l.b16 %v2353
  %v2422 = vunpack.c.l.b16 %v2354
  %v2423 = vunpack.c.l.b16 %v2355
  %v2424 = vunpack.c.l.b16 %v2356
  %v2425 = vunpack.c.l.b16 %v2357
  %v2426 = vunpack.c.l.b16 %v2358
  %v2427 = vunpack.c.l.b16 %v2359
  %v2428 = vunpack.c.l.b16 %v2360
  %v2429 = vunpack.c.l.b16 %v2361
  %v2430 = vunpack.c.l.b16 %v2362
  %v2431 = vunpack.c.l.b16 %v2363
  %v2432 = vunpack.c.l.b16 %v2364
  %v2433 = vunpack.c.l.b16 %v2365
  %v2434 = vunpack.c.l.b16 %v2366
  %v2435 = vunpack.c.l.b16 %v2367
  %v2436 = vunpack.c.l.b16 %v2368
  %v2437 = vunpack.c.l.b16 %v2369
  %v2438 = vpack.c.b16 %v2407, %v2406
  %v2439 = vpack.c.b16 %v2409, %v2408
  %v2440 = vpack.c.b16 %v2411, %v2410
  %v2441 = vpack.c.b16 %v2413, %v2412
  %v2442 = vpack.c.b16 %v2415, %v2414
  %v2443 = vpack.c.b16 %v2417, %v2416
  %v2444 = vpack.c.b16 %v2419, %v2418
  %v2445 = vpack.c.b16 %v2421, %v2420
  %v2446 = vpack.c.b16 %v2423, %v2422
  %v2447 = vpack.c.b16 %v2425, %v2424
  %v2448 = vpack.c.b16 %v2427, %v2426
  %v2449 = vpack.c.b16 %v2429, %v2428
  %v2450 = vpack.c.b16 %v2431, %v2430
  %v2451 = vpack.c.b16 %v2433, %v2432
  %v2452 = vpack.c.b16 %v2435, %v2434
  %v2453 = vpack.c.b16 %v2437, %v2436
  %2470 = vmatpush.bf16.msra.mxu0 %v2445
  %2471 = vmatpush.bf16.msra.mxu0 %v2444
  %2472 = vmatpush.bf16.msra.mxu0 %v2443
  %2473 = vmatpush.bf16.msra.mxu0 %v2442
  %2474 = vmatpush.bf16.msra.mxu0 %v2441
  %2475 = vmatpush.bf16.msra.mxu0 %v2440
  %2476 = vmatpush.bf16.msra.mxu0 %v2439
  %2477 = vmatpush.bf16.msra.mxu0 %v2438
  %2478 = vmatmul.bf16.gmra.mxu0 %v2336
  %v2479 = vpop.f32.mrf.mxu0
  %v2480 = vadd.f32 %v2372, %v2479
  %v2481 = vpop.f32.mrf.mxu0
  %v2482 = vadd.f32 %v2372, %v2481
  %2483 = vdwg.mxu0
  %2484 = vmatpush.bf16.msra.mxu0 %v2453
  %2485 = vmatpush.bf16.msra.mxu0 %v2452
  %2486 = vmatpush.bf16.msra.mxu0 %v2451
  %2487 = vmatpush.bf16.msra.mxu0 %v2450
  %2488 = vmatpush.bf16.msra.mxu0 %v2449
  %2489 = vmatpush.bf16.msra.mxu0 %v2448
  %2490 = vmatpush.bf16.msra.mxu0 %v2447
  %2491 = vmatpush.bf16.msra.mxu0 %v2446
  %2492 = vmatmul.bf16.gmra.mxu0 %v2337
  %v2493 = vpop.f32.mrf.mxu0
  %v2494 = vadd.f32 %v2480, %v2493
  %v2495 = vpop.f32.mrf.mxu0
  %v2496 = vadd.f32 %v2482, %v2495
  %2497 = vdwg.mxu0
  %v2498 = vmax.f32 %v2494, 0.0
  %v2499 = vmax.f32 %v2496, 0.0
  %v2500 = vld [vmem:[%s43] sm:$0xff]
  %v2501 = vld [vmem:[%s43 + $0x8] sm:$0xff]
  %v2502 = vld [vmem:[%s43 + $0x10] sm:$0xff]
  %v2503 = vld [vmem:[%s43 + $0x18] sm:$0xff]
  %v2504 = vld [vmem:[%s43 + $0x20] sm:$0xff]
  %v2505 = vld [vmem:[%s43 + $0x28] sm:$0xff]
  %v2506 = vld [vmem:[%s43 + $0x30] sm:$0xff]
  %v2507 = vld [vmem:[%s43 + $0x38] sm:$0xff]
  %v2508 = vld [vmem:[%s43 + $0x40] sm:$0xff]
  %v2509 = vld [vmem:[%s43 + $0x48] sm:$0xff]
  %v2510 = vld [vmem:[%s43 + $0x50] sm:$0xff]
  %v2511 = vld [vmem:[%s43 + $0x58] sm:$0xff]
  %v2512 = vld [vmem:[%s43 + $0x60] sm:$0xff]
  %v2513 = vld [vmem:[%s43 + $0x68] sm:$0xff]
  %v2514 = vld [vmem:[%s43 + $0x70] sm:$0xff]
  %v2515 = vld [vmem:[%s43 + $0x78] sm:$0xff]
  %v2516 = vld [vmem:[%s43 + $0x80] sm:$0xff]
  %v2517 = vld [vmem:[%s43 + $0x88] sm:$0xff]
  %v2518 = vld [vmem:[%s43 + $0x90] sm:$0xff]
  %v2519 = vld [vmem:[%s43 + $0x98] sm:$0xff]
  %v2520 = vld [vmem:[%s43 + $0xa0] sm:$0xff]
  %v2521 = vld [vmem:[%s43 + $0xa8] sm:$0xff]
  %v2522 = vld [vmem:[%s43 + $0xb0] sm:$0xff]
  %v2523 = vld [vmem:[%s43 + $0xb8] sm:$0xff]
  %v2524 = vld [vmem:[%s43 + $0xc0] sm:$0xff]
  %v2525 = vld [vmem:[%s43 + $0xc8] sm:$0xff]
  %v2526 = vld [vmem:[%s43 + $0xd0] sm:$0xff]
  %v2527 = vld [vmem:[%s43 + $0xd8] sm:$0xff]
  %v2528 = vld [vmem:[%s43 + $0xe0] sm:$0xff]
  %v2529 = vld [vmem:[%s43 + $0xe8] sm:$0xff]
  %v2530 = vld [vmem:[%s43 + $0xf0] sm:$0xff]
  %v2531 = vld [vmem:[%s43 + $0xf8] sm:$0xff]
  %v2532 = vld [vmem:[%s45] sm:$0x3]
  %v2534 = vperm.slane %v2532, 0
  %v2535 = vperm.slane %v2532, 1
  %v2570 = vunpack.c.l.b16 %v2500
  %v2571 = vunpack.c.h.b16 %v2500
  %v2572 = vunpack.c.l.b16 %v2501
  %v2573 = vunpack.c.h.b16 %v2501
  %v2574 = vunpack.c.l.b16 %v2502
  %v2575 = vunpack.c.h.b16 %v2502
  %v2576 = vunpack.c.l.b16 %v2503
  %v2577 = vunpack.c.h.b16 %v2503
  %v2578 = vunpack.c.l.b16 %v2504
  %v2579 = vunpack.c.h.b16 %v2504
  %v2580 = vunpack.c.l.b16 %v2505
  %v2581 = vunpack.c.h.b16 %v2505
  %v2582 = vunpack.c.l.b16 %v2506
  %v2583 = vunpack.c.h.b16 %v2506
  %v2584 = vunpack.c.l.b16 %v2507
  %v2585 = vunpack.c.h.b16 %v2507
  %v2586 = vunpack.c.l.b16 %v2508
  %v2587 = vunpack.c.h.b16 %v2508
  %v2588 = vunpack.c.l.b16 %v2509
  %v2589 = vunpack.c.h.b16 %v2509
  %v2590 = vunpack.c.l.b16 %v2510
  %v2591 = vunpack.c.h.b16 %v2510
  %v2592 = vunpack.c.l.b16 %v2511
  %v2593 = vunpack.c.h.b16 %v2511
  %v2594 = vunpack.c.l.b16 %v2512
  %v2595 = vunpack.c.h.b16 %v2512
  %v2596 = vunpack.c.l.b16 %v2513
  %v2597 = vunpack.c.h.b16 %v2513
  %v2598 = vunpack.c.l.b16 %v2514
  %v2599 = vunpack.c.h.b16 %v2514
  %v2600 = vunpack.c.l.b16 %v2515
  %v2601 = vunpack.c.h.b16 %v2515
  %v2602 = vunpack.c.l.b16 %v2516
  %v2603 = vunpack.c.h.b16 %v2516
  %v2604 = vunpack.c.l.b16 %v2517
  %v2605 = vunpack.c.h.b16 %v2517
  %v2606 = vunpack.c.l.b16 %v2518
  %v2607 = vunpack.c.h.b16 %v2518
  %v2608 = vunpack.c.l.b16 %v2519
  %v2609 = vunpack.c.h.b16 %v2519
  %v2610 = vunpack.c.l.b16 %v2520
  %v2611 = vunpack.c.h.b16 %v2520
  %v2612 = vunpack.c.l.b16 %v2521
  %v2613 = vunpack.c.h.b16 %v2521
  %v2614 = vunpack.c.l.b16 %v2522
  %v2615 = vunpack.c.h.b16 %v2522
  %v2616 = vunpack.c.l.b16 %v2523
  %v2617 = vunpack.c.h.b16 %v2523
  %v2618 = vunpack.c.l.b16 %v2524
  %v2619 = vunpack.c.h.b16 %v2524
  %v2620 = vunpack.c.l.b16 %v2525
  %v2621 = vunpack.c.h.b16 %v2525
  %v2622 = vunpack.c.l.b16 %v2526
  %v2623 = vunpack.c.h.b16 %v2526
  %v2624 = vunpack.c.l.b16 %v2527
  %v2625 = vunpack.c.h.b16 %v2527
  %v2626 = vunpack.c.l.b16 %v2528
  %v2627 = vunpack.c.h.b16 %v2528
  %v2628 = vunpack.c.l.b16 %v2529
  %v2629 = vunpack.c.h.b16 %v2529
  %v2630 = vunpack.c.l.b16 %v2530
  %v2631 = vunpack.c.h.b16 %v2530
  %v2632 = vunpack.c.l.b16 %v2531
  %v2633 = vunpack.c.h.b16 %v2531
  %v2634 = vpack.c.b16 %v2572, %v2570
  %v2635 = vpack.c.b16 %v2573, %v2571
  %v2636 = vpack.c.b16 %v2576, %v2574
  %v2637 = vpack.c.b16 %v2577, %v2575
  %v2638 = vpack.c.b16 %v2580, %v2578
  %v2639 = vpack.c.b16 %v2581, %v2579
  %v2640 = vpack.c.b16 %v2584, %v2582
  %v2641 = vpack.c.b16 %v2585, %v2583
  %v2642 = vpack.c.b16 %v2588, %v2586
  %v2643 = vpack.c.b16 %v2589, %v2587
  %v2644 = vpack.c.b16 %v2592, %v2590
  %v2645 = vpack.c.b16 %v2593, %v2591
  %v2646 = vpack.c.b16 %v2596, %v2594
  %v2647 = vpack.c.b16 %v2597, %v2595
  %v2648 = vpack.c.b16 %v2600, %v2598
  %v2649 = vpack.c.b16 %v2601, %v2599
  %v2650 = vpack.c.b16 %v2604, %v2602
  %v2651 = vpack.c.b16 %v2605, %v2603
  %v2652 = vpack.c.b16 %v2608, %v2606
  %v2653 = vpack.c.b16 %v2609, %v2607
  %v2654 = vpack.c.b16 %v2612, %v2610
  %v2655 = vpack.c.b16 %v2613, %v2611
  %v2656 = vpack.c.b16 %v2616, %v2614
  %v2657 = vpack.c.b16 %v2617, %v2615
  %v2658 = vpack.c.b16 %v2620, %v2618
  %v2659 = vpack.c.b16 %v2621, %v2619
  %v2660 = vpack.c.b16 %v2624, %v2622
  %v2661 = vpack.c.b16 %v2625, %v2623
  %v2662 = vpack.c.b16 %v2628, %v2626
  %v2663 = vpack.c.b16 %v2629, %v2627
  %v2664 = vpack.c.b16 %v2632, %v2630
  %v2665 = vpack.c.b16 %v2633, %v2631
  %2698 = vmatpush.bf16.msra.mxu0 %v2648
  %2699 = vmatpush.bf16.msra.mxu0 %v2646
  %2700 = vmatpush.bf16.msra.mxu0 %v2644
  %2701 = vmatpush.bf16.msra.mxu0 %v2642
  %2702 = vmatpush.bf16.msra.mxu0 %v2640
  %2703 = vmatpush.bf16.msra.mxu0 %v2638
  %2704 = vmatpush.bf16.msra.mxu0 %v2636
  %2705 = vmatpush.bf16.msra.mxu0 %v2634
  %2706 = vmatmul.bf16.gmra.mxu0 %v2336
  %v2707 = vpop.f32.mrf.mxu0
  %v2708 = vadd.f32 %v2534, %v2707
  %v2709 = vpop.f32.mrf.mxu0
  %v2710 = vadd.f32 %v2534, %v2709
  %2711 = vdwg.mxu0
  %2712 = vmatpush.bf16.msra.mxu0 %v2664
  %2713 = vmatpush.bf16.msra.mxu0 %v2662
  %2714 = vmatpush.bf16.msra.mxu0 %v2660
  %2715 = vmatpush.bf16.msra.mxu0 %v2658
  %2716 = vmatpush.bf16.msra.mxu0 %v2656
  %2717 = vmatpush.bf16.msra.mxu0 %v2654
  %2718 = vmatpush.bf16.msra.mxu0 %v2652
  %2719 = vmatpush.bf16.msra.mxu0 %v2650
  %2720 = vmatmul.bf16.gmra.mxu0 %v2337
  %v2721 = vpop.f32.mrf.mxu0
  %v2722 = vadd.f32 %v2708, %v2721
  %v2723 = vpop.f32.mrf.mxu0
  %v2724 = vadd.f32 %v2710, %v2723
  %2725 = vdwg.mxu0
  %2726 = vmatpush.bf16.msra.mxu0 %v2649
  %2727 = vmatpush.bf16.msra.mxu0 %v2647
  %2728 = vmatpush.bf16.msra.mxu0 %v2645
  %2729 = vmatpush.bf16.msra.mxu0 %v2643
  %2730 = vmatpush.bf16.msra.mxu0 %v2641
  %2731 = vmatpush.bf16.msra.mxu0 %v2639
  %2732 = vmatpush.bf16.msra.mxu0 %v2637
  %2733 = vmatpush.bf16.msra.mxu0 %v2635
  %2734 = vmatmul.bf16.gmra.mxu0 %v2336
  %v2735 = vpop.f32.mrf.mxu0
  %v2736 = vadd.f32 %v2535, %v2735
  %v2737 = vpop.f32.mrf.mxu0
  %v2738 = vadd.f32 %v2535, %v2737
  %2739 = vdwg.mxu0
  %2740 = vmatpush.bf16.msra.mxu0 %v2665
  %2741 = vmatpush.bf16.msra.mxu0 %v2663
  %2742 = vmatpush.bf16.msra.mxu0 %v2661
  %2743 = vmatpush.bf16.msra.mxu0 %v2659
  %2744 = vmatpush.bf16.msra.mxu0 %v2657
  %2745 = vmatpush.bf16.msra.mxu0 %v2655
  %2746 = vmatpush.bf16.msra.mxu0 %v2653
  %2747 = vmatpush.bf16.msra.mxu0 %v2651
  %2748 = vmatmul.bf16.gmra.mxu0 %v2337
  %v2749 = vpop.f32.mrf.mxu0
  %v2750 = vadd.f32 %v2736, %v2749
  %v2751 = vpop.f32.mrf.mxu0
  %v2752 = vadd.f32 %v2738, %v2751
  %2753 = vdwg.mxu0
  %v2754 = vmax.f32 %v2722, 0.0
  %v2755 = vmax.f32 %v2750, 0.0
  %v2756 = vmax.f32 %v2724, 0.0
  %v2757 = vmax.f32 %v2752, 0.0
  %v2758 = vpack.c.bf16 %v2756, %v2754
  %v2759 = vpack.c.bf16 %v2757, %v2755
  %v2760 = vld [vmem:[%s51] sm:$0xf]
  %v2761 = vld [vmem:[%s51 + $0x4] sm:$0xf]
  %v2762 = vld [vmem:[%s51 + $0x8] sm:$0xf]
  %v2763 = vld [vmem:[%s51 + $0xc] sm:$0xf]
  %v2764 = vld [vmem:[%s51 + $0x10] sm:$0xf]
  %v2765 = vld [vmem:[%s51 + $0x14] sm:$0xf]
  %v2766 = vld [vmem:[%s51 + $0x18] sm:$0xf]
  %v2767 = vld [vmem:[%s51 + $0x1c] sm:$0xf]
  %v2768 = vld [vmem:[%s51 + $0x20] sm:$0xf]
  %v2769 = vld [vmem:[%s51 + $0x24] sm:$0xf]
  %v2770 = vld [vmem:[%s51 + $0x28] sm:$0xf]
  %v2771 = vld [vmem:[%s51 + $0x2c] sm:$0xf]
  %v2772 = vld [vmem:[%s51 + $0x30] sm:$0xf]
  %v2773 = vld [vmem:[%s51 + $0x34] sm:$0xf]
  %v2774 = vld [vmem:[%s51 + $0x38] sm:$0xf]
  %v2775 = vld [vmem:[%s51 + $0x3c] sm:$0xf]
  %v2776 = vld [vmem:[%s51 + $0x40] sm:$0xf]
  %v2777 = vld [vmem:[%s51 + $0x44] sm:$0xf]
  %v2778 = vld [vmem:[%s51 + $0x48] sm:$0xf]
  %v2779 = vld [vmem:[%s51 + $0x4c] sm:$0xf]
  %v2780 = vld [vmem:[%s51 + $0x50] sm:$0xf]
  %v2781 = vld [vmem:[%s51 + $0x54] sm:$0xf]
  %v2782 = vld [vmem:[%s51 + $0x58] sm:$0xf]
  %v2783 = vld [vmem:[%s51 + $0x5c] sm:$0xf]
  %v2784 = vld [vmem:[%s51 + $0x60] sm:$0xf]
  %v2785 = vld [vmem:[%s51 + $0x64] sm:$0xf]
  %v2786 = vld [vmem:[%s51 + $0x68] sm:$0xf]
  %v2787 = vld [vmem:[%s51 + $0x6c] sm:$0xf]
  %v2788 = vld [vmem:[%s51 + $0x70] sm:$0xf]
  %v2789 = vld [vmem:[%s51 + $0x74] sm:$0xf]
  %v2790 = vld [vmem:[%s51 + $0x78] sm:$0xf]
  %v2791 = vld [vmem:[%s51 + $0x7c] sm:$0xf]
  %v2792 = vld [vmem:[%s53] sm:$0xf]
  %v2793 = vld [vmem:[%s53 + $0x4] sm:$0x3]
  %v2796 = vunpack.c.l.b16 %v2792
  %v2797 = vunpack.c.l.b16 %v2793
  %v2798 = vpack.c.b16 %v2797, %v2796
  %vm2799 = vcmask 97280
  %v2801 = vsel %vm2799, %v132, 0
  %vm2803 = vcmask 1045504
  %v2805 = vsel %vm2803, %v2798, 0
  %2807 = vmatpush.bf16.msra.mxu0 0
  %2808 = vmatpush.bf16.msra.mxu0 0
  %2809 = vmatpush.bf16.msra.mxu0 0
  %2810 = vmatpush.bf16.msra.mxu0 0
  %2811 = vmatpush.bf16.msra.mxu0 0
  %2812 = vmatpush.bf16.msra.mxu0 0
  %2813 = vmatpush.bf16.msra.mxu0 0
  %2814 = vmatpush.bf16.msra.mxu0 %v2805
  %2815 = vmatmul.bf16.gmra.mxu0 %v2801
  %v2816 = vpop.f32.mrf.mxu0
  %v2817 = vadd.f32 0.0, %v2816
  %v2818 = vpop.f32.mrf.mxu0
  %v2819 = vadd.f32 0.0, %v2818
  %2820 = vdwg.mxu0
  %v2853 = vunpack.c.l.b16 %v2760
  %v2854 = vunpack.c.l.b16 %v2761
  %v2855 = vunpack.c.l.b16 %v2762
  %v2856 = vunpack.c.l.b16 %v2763
  %v2857 = vunpack.c.l.b16 %v2764
  %v2858 = vunpack.c.l.b16 %v2765
  %v2859 = vunpack.c.l.b16 %v2766
  %v2860 = vunpack.c.l.b16 %v2767
  %v2861 = vunpack.c.l.b16 %v2768
  %v2862 = vunpack.c.l.b16 %v2769
  %v2863 = vunpack.c.l.b16 %v2770
  %v2864 = vunpack.c.l.b16 %v2771
  %v2865 = vunpack.c.l.b16 %v2772
  %v2866 = vunpack.c.l.b16 %v2773
  %v2867 = vunpack.c.l.b16 %v2774
  %v2868 = vunpack.c.l.b16 %v2775
  %v2869 = vunpack.c.l.b16 %v2776
  %v2870 = vunpack.c.l.b16 %v2777
  %v2871 = vunpack.c.l.b16 %v2778
  %v2872 = vunpack.c.l.b16 %v2779
  %v2873 = vunpack.c.l.b16 %v2780
  %v2874 = vunpack.c.l.b16 %v2781
  %v2875 = vunpack.c.l.b16 %v2782
  %v2876 = vunpack.c.l.b16 %v2783
  %v2877 = vunpack.c.l.b16 %v2784
  %v2878 = vunpack.c.l.b16 %v2785
  %v2879 = vunpack.c.l.b16 %v2786
  %v2880 = vunpack.c.l.b16 %v2787
  %v2881 = vunpack.c.l.b16 %v2788
  %v2882 = vunpack.c.l.b16 %v2789
  %v2883 = vunpack.c.l.b16 %v2790
  %v2884 = vunpack.c.l.b16 %v2791
  %v2885 = vpack.c.b16 %v2854, %v2853
  %v2886 = vpack.c.b16 %v2856, %v2855
  %v2887 = vpack.c.b16 %v2858, %v2857
  %v2888 = vpack.c.b16 %v2860, %v2859
  %v2889 = vpack.c.b16 %v2862, %v2861
  %v2890 = vpack.c.b16 %v2864, %v2863
  %v2891 = vpack.c.b16 %v2866, %v2865
  %v2892 = vpack.c.b16 %v2868, %v2867
  %v2893 = vpack.c.b16 %v2870, %v2869
  %v2894 = vpack.c.b16 %v2872, %v2871
  %v2895 = vpack.c.b16 %v2874, %v2873
  %v2896 = vpack.c.b16 %v2876, %v2875
  %v2897 = vpack.c.b16 %v2878, %v2877
  %v2898 = vpack.c.b16 %v2880, %v2879
  %v2899 = vpack.c.b16 %v2882, %v2881
  %v2900 = vpack.c.b16 %v2884, %v2883
  %2917 = vmatpush.bf16.msra.mxu0 %v2892
  %2918 = vmatpush.bf16.msra.mxu0 %v2891
  %2919 = vmatpush.bf16.msra.mxu0 %v2890
  %2920 = vmatpush.bf16.msra.mxu0 %v2889
  %2921 = vmatpush.bf16.msra.mxu0 %v2888
  %2922 = vmatpush.bf16.msra.mxu0 %v2887
  %2923 = vmatpush.bf16.msra.mxu0 %v2886
  %2924 = vmatpush.bf16.msra.mxu0 %v2885
  %2925 = vmatmul.bf16.gmra.mxu0 %v2758
  %v2926 = vpop.f32.mrf.mxu0
  %v2927 = vadd.f32 %v2817, %v2926
  %v2928 = vpop.f32.mrf.mxu0
  %v2929 = vadd.f32 %v2819, %v2928
  %2930 = vdwg.mxu0
  %2931 = vmatpush.bf16.msra.mxu0 %v2900
  %2932 = vmatpush.bf16.msra.mxu0 %v2899
  %2933 = vmatpush.bf16.msra.mxu0 %v2898
  %2934 = vmatpush.bf16.msra.mxu0 %v2897
  %2935 = vmatpush.bf16.msra.mxu0 %v2896
  %2936 = vmatpush.bf16.msra.mxu0 %v2895
  %2937 = vmatpush.bf16.msra.mxu0 %v2894
  %2938 = vmatpush.bf16.msra.mxu0 %v2893
  %2939 = vmatmul.bf16.gmra.mxu0 %v2759
  %v2940 = vpop.f32.mrf.mxu0
  %v2941 = vadd.f32 %v2927, %v2940
  %v2942 = vpop.f32.mrf.mxu0
  %v2943 = vadd.f32 %v2929, %v2942
  %2944 = vdwg.mxu0
  %v2945 = vld [vmem:[%s55] sm:$0x1]
  %v2947 = vperm.slane %v2945, 0
  %v2949 = vadd.f32 %v2941, %v2947
  %v2950 = vadd.f32 %v2943, %v2947
  %v2951 = vmax.f32 %v2949, 0.0
  %v2952 = vmax.f32 %v2950, 0.0
  %v2953 = vpack.c.bf16 %v2952, %v2951
  %v2954 = vld [vmem:[%s57] sm:$0xf]
  %v2955 = vld [vmem:[%s57 + $0x4] sm:$0xf]
  %v2956 = vld [vmem:[%s57 + $0x8] sm:$0xf]
  %v2957 = vld [vmem:[%s57 + $0xc] sm:$0xf]
  %v2958 = vld [vmem:[%s57 + $0x10] sm:$0xf]
  %v2959 = vld [vmem:[%s57 + $0x14] sm:$0xf]
  %v2960 = vld [vmem:[%s57 + $0x18] sm:$0xf]
  %v2961 = vld [vmem:[%s57 + $0x1c] sm:$0xf]
  %v2962 = vld [vmem:[%s57 + $0x20] sm:$0xf]
  %v2963 = vld [vmem:[%s57 + $0x24] sm:$0xf]
  %v2964 = vld [vmem:[%s57 + $0x28] sm:$0xf]
  %v2965 = vld [vmem:[%s57 + $0x2c] sm:$0xf]
  %v2966 = vld [vmem:[%s57 + $0x30] sm:$0xf]
  %v2967 = vld [vmem:[%s57 + $0x34] sm:$0xf]
  %v2968 = vld [vmem:[%s57 + $0x38] sm:$0xf]
  %v2969 = vld [vmem:[%s57 + $0x3c] sm:$0xf]
  %v2970 = vld [vmem:[%s59] sm:$0x1]
  %v2972 = vperm.slane %v2970, 0
  %v2990 = vunpack.c.l.b16 %v2954
  %v2991 = vunpack.c.l.b16 %v2955
  %v2992 = vunpack.c.l.b16 %v2956
  %v2993 = vunpack.c.l.b16 %v2957
  %v2994 = vunpack.c.l.b16 %v2958
  %v2995 = vunpack.c.l.b16 %v2959
  %v2996 = vunpack.c.l.b16 %v2960
  %v2997 = vunpack.c.l.b16 %v2961
  %v2998 = vunpack.c.l.b16 %v2962
  %v2999 = vunpack.c.l.b16 %v2963
  %v3000 = vunpack.c.l.b16 %v2964
  %v3001 = vunpack.c.l.b16 %v2965
  %v3002 = vunpack.c.l.b16 %v2966
  %v3003 = vunpack.c.l.b16 %v2967
  %v3004 = vunpack.c.l.b16 %v2968
  %v3005 = vunpack.c.l.b16 %v2969
  %v3006 = vpack.c.b16 %v2991, %v2990
  %v3007 = vpack.c.b16 %v2993, %v2992
  %v3008 = vpack.c.b16 %v2995, %v2994
  %v3009 = vpack.c.b16 %v2997, %v2996
  %v3010 = vpack.c.b16 %v2999, %v2998
  %v3011 = vpack.c.b16 %v3001, %v3000
  %v3012 = vpack.c.b16 %v3003, %v3002
  %v3013 = vpack.c.b16 %v3005, %v3004
  %3022 = vmatpush.bf16.msra.mxu0 %v3013
  %3023 = vmatpush.bf16.msra.mxu0 %v3012
  %3024 = vmatpush.bf16.msra.mxu0 %v3011
  %3025 = vmatpush.bf16.msra.mxu0 %v3010
  %3026 = vmatpush.bf16.msra.mxu0 %v3009
  %3027 = vmatpush.bf16.msra.mxu0 %v3008
  %3028 = vmatpush.bf16.msra.mxu0 %v3007
  %3029 = vmatpush.bf16.msra.mxu0 %v3006
  %3030 = vmatmul.bf16.gmra.mxu0 %v2953
  %v3031 = vpop.f32.mrf.mxu0
  %v3032 = vadd.f32 %v2972, %v3031
  %v3033 = vpop.f32.mrf.mxu0
  %v3034 = vadd.f32 %v2972, %v3033
  %3035 = vdwg.mxu0
  %v3036 = vxor.u32 %v3032, 2147483648
  %v3037 = vxor.u32 %v3034, 2147483648
  %v3038 = vmul.f32 %v3036, 1.442695
  %v3039 = vpow.pop %v3038
  %v3040 = vmul.f32 %v3037, 1.442695
  %v3041 = vpow.pop %v3040
  %v3042 = vadd.f32 %v3039, 1.0
  %v3043 = vadd.f32 %v3041, 1.0
  %v3044 = vrcp.pop %v3042
  %v3045 = vmul.f32 %v3042, %v3044
  %v3046 = vsub.f32 1.0, %v3045
  %v3047 = vmul.f32 %v3044, %v3046
  %v3048 = vadd.f32 %v3044, %v3047
  %vm3049 = vweird.f32 %v3042
  %vm3050 = vweird.f32 %v3044
  %vm3051 = vmor %vm3049, %vm3050
  %v3052 = vsel %vm3051, %v3044, %v3048
  %v3053 = vand.u32 2147483647, %v3042
  %vm3054 = vcmp.eq.f32.partialorder %v3053, 8.507059e+37
  %v3055 = vand.u32 %v3042, 2147483648
  %v3056 = vor.u32 1.1754944e-38, %v3055
  %v3057 = vsel %vm3054, %v3056, %v3052
  %v3058 = vmul.f32 1.0, %v3057
  %v3059 = vrcp.pop %v3043
  %v3060 = vmul.f32 %v3043, %v3059
  %v3061 = vsub.f32 1.0, %v3060
  %v3062 = vmul.f32 %v3059, %v3061
  %v3063 = vadd.f32 %v3059, %v3062
  %vm3064 = vweird.f32 %v3043
  %vm3065 = vweird.f32 %v3059
  %vm3066 = vmor %vm3064, %vm3065
  %v3067 = vsel %vm3066, %v3059, %v3063
  %v3068 = vand.u32 2147483647, %v3043
  %vm3069 = vcmp.eq.f32.partialorder %v3068, 8.507059e+37
  %v3070 = vand.u32 %v3043, 2147483648
  %v3071 = vor.u32 1.1754944e-38, %v3070
  %v3072 = vsel %vm3069, %v3071, %v3067
  %v3073 = vmul.f32 1.0, %v3072
  %v3074 = vadd.f32 %v2498, %v3058
  %v3075 = vadd.f32 %v2499, %v3073
  %vm3076 = vcmask 64512
  %3077 = vst.msk [vmem:[%s61] sm:$0xff] %vm3076, %v3074
  %3078 = vst.msk [vmem:[%s61 + $0x8] sm:$0xff] %vm3076, %v3075
  // Predicated region
  $region122: #{nerf_forward.1} parent=0 // pred_check
    _
  $region123: #{nerf_forward.1} parent=0 // pred_check_branch
    %3080 = sbr.rel (0) target = $region125
  $region124: #{nerf_forward.1} parent=0 // pred_region
    _
  $region125: #{nerf_forward.1} parent=0 // pred_fallthru
    _
  // Predicated region
  $region126: #{nerf_forward.1} parent=0 // pred_check
    _
  $region127: #{nerf_forward.1} parent=0 // pred_check_branch
    %3082 = sbr.rel (0) target = $region129
  $region128: #{nerf_forward.1} parent=0 // pred_region
    _
  $region129: #{nerf_forward.1} parent=0 // pred_fallthru
    _

</llo_original>
